<compile_context>
chip_gen: v6e
topology: v6e:2x2x1
jax: 0.10.0
libtpu: 0.0.40
codegen_flags: <defaults>
</compile_context>

<pallas_src>
import jax
import jax.numpy as jnp
from jax.experimental import pallas as pl
from jax.experimental.pallas import tpu as pltpu

# ---------------- small synthetic config ----------------
VOCAB = 64
HIDDEN = 32                 # space dim D (config.hidden_size)
LORENTZ = HIDDEN + 1        # D + 1 (time-first externally)
N_LAYERS = 2
N_HEADS = 4
HEAD_DIM = HIDDEN // N_HEADS
INTERMEDIATE = 64
SEQ = 8
BATCH = 2
LN_EPS = 1e-5
VEC_ROWS = 8
VEC_WIDTH = 3 * HIDDEN      # 96 >= INTERMEDIATE


# ---------------- plain-JAX glue ----------------
def expmap0_space(v):
    """Space part of expmap0 at the origin (time = cosh(n) is recomputed in-kernel)."""
    n = jnp.sqrt(jnp.clip(jnp.sum(v * v, axis=-1, keepdims=True), 1e-12, None))
    return (jnp.sinh(n) / n) * v


def build_flat_attn_bias(attention_mask, B, S, dtype=jnp.float32):
    """_expand_mask semantics folded into a flattened [B*S, B*S] additive bias.

    Within a batch element: masked key positions get finfo.min (as in
    _expand_mask).  Cross-batch (query, key) pairs also get finfo.min so that
    attention computed jointly over the flattened B*S rows is exactly the
    per-batch attention of the reference.
    """
    neg = jnp.finfo(dtype).min
    if attention_mask is None:
        key_bias = jnp.zeros((B, S), dtype)
    else:
        inverted = 1.0 - attention_mask.astype(dtype)
        key_bias = jnp.where(inverted.astype(bool), neg, jnp.zeros((), dtype))
    same_batch = jnp.eye(B, dtype=bool)[:, None, :, None]            # [B,1,B,1]
    bias = jnp.where(same_batch, key_bias[None, None, :, :], neg)    # [B,1,B,S]
    bias = jnp.broadcast_to(bias, (B, S, B, S))
    return bias.reshape(B * S, B * S)
    # TODO(synk): a query row whose entire batch is masked degenerates to a
    # uniform distribution over all B*S keys (reference behavior is undefined
    # / NaN there); not hit by any realistic mask.


# ---------------- in-kernel helpers ----------------
def _lorentz_layer_norm_space(xs, gamma, beta):
    """LayerNorm over the D space components (LorentzLayerNorm's Euclidean core)."""
    mean = jnp.mean(xs, axis=-1, keepdims=True)
    var = jnp.mean(jnp.square(xs - mean), axis=-1, keepdims=True)
    return (xs - mean) * jax.lax.rsqrt(var + LN_EPS) * gamma + beta


# ---------------- single fused Pallas kernel (all layers + final LN) ----------------
def fused_transformer_kernel(xs_ref, bias_ref,
                             wqkv_ref, wo_ref, w1_ref, w2_ref, vec_ref, fln_ref,
                             space_out_ref, time_out_ref):
    BS = BATCH * SEQ
    x = xs_ref[...]                      # [BS, D] space coordinates (VMEM resident)
    bias = bias_ref[...]                 # [BS, BS] block-diag additive attention bias
    scale = HEAD_DIM ** -0.5

    for l in range(N_LAYERS):            # static unroll; weights are VMEM resident
        vec = vec_ref[l]                 # [8, 96] packed small vectors
        b_qkv = vec[0:1, :]                              # [1, 3D]
        b1 = vec[1:2, :INTERMEDIATE]                     # [1, I]
        ln1_g = vec[2:3, :HIDDEN]
        ln1_b = vec[3:4, :HIDDEN]
        bo = vec[4:5, :HIDDEN]
        ln2_g = vec[5:6, :HIDDEN]
        ln2_b = vec[6:7, :HIDDEN]
        b2 = vec[7:8, :HIDDEN]

        # --- LorentzLayerNorm (pre-attention) ---
        xn = _lorentz_layer_norm_space(x, ln1_g, ln1_b)

        # --- fused QKV projection: one [BS, D] @ [D, 3D] MXU op ---
        qkv = jnp.dot(xn, wqkv_ref[l], preferred_element_type=jnp.float32) + b_qkv

        # --- multi-head self-attention over flattened batch rows ---
        wo_l = wo_ref[l]                 # [D, D]
        attn = jnp.zeros((BS, HIDDEN), jnp.float32)
        for h in range(N_HEADS):
            rows = slice(h * HEAD_DIM, (h + 1) * HEAD_DIM)
            qh = qkv[:, h * HEAD_DIM:(h + 1) * HEAD_DIM] * scale
            kh = qkv[:, HIDDEN + h * HEAD_DIM:HIDDEN + (h + 1) * HEAD_DIM]
            vh = qkv[:, 2 * HIDDEN + h * HEAD_DIM:2 * HIDDEN + (h + 1) * HEAD_DIM]
            s = jnp.dot(qh, kh.T, preferred_element_type=jnp.float32) + bias
            m = jnp.max(s, axis=-1, keepdims=True)
            p = jnp.exp(s - m)
            denom = jnp.sum(p, axis=-1, keepdims=True)        # >= 1 (max-subtracted)
            p = p * pl.reciprocal(denom, approx=True)
            ctx = jnp.dot(p, vh, preferred_element_type=jnp.float32)     # [BS, Hd]
            # fold the head directly into the output projection (no lane concat)
            attn = attn + jnp.dot(ctx, wo_l[rows, :],
                                  preferred_element_type=jnp.float32)
        attn = attn + bo

        # Lorentz residual on space coordinates (time recomputed at the end)
        x = x + attn

        # --- LorentzLayerNorm (pre-MLP) + quick-gelu MLP ---
        yn = _lorentz_layer_norm_space(x, ln2_g, ln2_b)
        z = jnp.dot(yn, w1_ref[l], preferred_element_type=jnp.float32) + b1
        z = z * jax.nn.sigmoid(1.702 * z)                 # CLIP quick_gelu
        x = x + jnp.dot(z, w2_ref[l], preferred_element_type=jnp.float32) + b2

    # --- final LorentzLayerNorm + hyperboloid re-projection (time coordinate) ---
    xs = _lorentz_layer_norm_space(x, fln_ref[0:1, :], fln_ref[1:2, :])
    space_out_ref[...] = xs
    time_out_ref[...] = jnp.sqrt(1.0 + jnp.sum(xs * xs, axis=-1, keepdims=True))


def run_fused_transformer(x_space_flat, bias_flat, packed):
    BS = x_space_flat.shape[0]
    vmem = pl.BlockSpec(memory_space=pltpu.MemorySpace.VMEM)
    space, time = pl.pallas_call(
        fused_transformer_kernel,
        out_shape=(jax.ShapeDtypeStruct((BS, HIDDEN), jnp.float32),
                   jax.ShapeDtypeStruct((BS, 1), jnp.float32)),
        in_specs=[vmem] * 8,
        out_specs=(pl.BlockSpec(memory_space=pltpu.MemorySpace.VMEM),
                   pl.BlockSpec(memory_space=pltpu.MemorySpace.VMEM)),
    )(x_space_flat, bias_flat,
      packed["wqkv"], packed["wo"], packed["w1"], packed["w2"],
      packed["vec"], packed["fln"])
    return space, time


# ---------------- parameter construction & packing ----------------
def init_params(key):
    def nrm(k, shape):
        return 0.02 * jax.random.normal(k, shape, dtype=jnp.float32)

    keys = jax.random.split(key, 8)
    L, D, I = N_LAYERS, HIDDEN, INTERMEDIATE
    return {
        "token_emb": nrm(keys[0], (VOCAB, D)),
        "pos_emb": nrm(keys[1], (SEQ, D)),
        "wq": nrm(keys[2], (L, D, D)), "bq": jnp.zeros((L, D), jnp.float32),
        "wk": nrm(keys[3], (L, D, D)), "bk": jnp.zeros((L, D), jnp.float32),
        "wv": nrm(keys[4], (L, D, D)), "bv": jnp.zeros((L, D), jnp.float32),
        "wo": nrm(keys[5], (L, D, D)), "bo": jnp.zeros((L, D), jnp.float32),
        "ln1_g": jnp.ones((L, D), jnp.float32), "ln1_b": jnp.zeros((L, D), jnp.float32),
        "ln2_g": jnp.ones((L, D), jnp.float32), "ln2_b": jnp.zeros((L, D), jnp.float32),
        "w1": nrm(keys[6], (L, D, I)), "b1": jnp.zeros((L, I), jnp.float32),
        "w2": nrm(keys[7], (L, I, D)), "b2": jnp.zeros((L, D), jnp.float32),
        "final_ln_g": jnp.ones((D,), jnp.float32),
        "final_ln_b": jnp.zeros((D,), jnp.float32),
    }


def pack_params(params):
    """Pack per-layer weights into a few stacked slabs (one DMA each)."""
    def pad(v):
        return jnp.pad(v, ((0, 0), (0, VEC_WIDTH - v.shape[-1])))

    wqkv = jnp.concatenate([params["wq"], params["wk"], params["wv"]], axis=-1)  # [L,D,3D]
    b_qkv = jnp.concatenate([params["bq"], params["bk"], params["bv"]], axis=-1)  # [L,3D]
    vec = jnp.stack([
        pad(b_qkv),            # row 0: b_qkv
        pad(params["b1"]),     # row 1: b1
        pad(params["ln1_g"]),  # row 2
        pad(params["ln1_b"]),  # row 3
        pad(params["bo"]),     # row 4
        pad(params["ln2_g"]),  # row 5
        pad(params["ln2_b"]),  # row 6
        pad(params["b2"]),     # row 7
    ], axis=1)                                                    # [L, 8, 96]
    fln = jnp.stack([params["final_ln_g"], params["final_ln_b"]], axis=0)  # [2, D]
    return {"wqkv": wqkv, "wo": params["wo"], "w1": params["w1"],
            "w2": params["w2"], "vec": vec, "fln": fln}


# ---------------- full forward (HypCLIPTextTransformer.forward) ----------------
def hyp_clip_text_transformer(params, input_ids, attention_mask=None,
                              position_ids=None):
    B, S = input_ids.shape
    if position_ids is None:
        position_ids = jnp.broadcast_to(jnp.arange(S)[None, :], (B, S))

    # HybridCLIPTextEmbeddings: Euclidean token+position embeddings -> expmap0.
    tok = params["token_emb"][input_ids]          # tiny gathers: plain-JAX glue
    pos = params["pos_emb"][position_ids]
    x_space = expmap0_space(tok + pos)            # [B, S, D] space part on hyperboloid
    x_flat = x_space.reshape(B * S, HIDDEN)

    bias_flat = build_flat_attn_bias(attention_mask, B, S, jnp.float32)  # [BS, BS]

    packed = pack_params(params)
    space, time = run_fused_transformer(x_flat, bias_flat, packed)

    # re-assemble time-first Lorentz points [B, S, 1 + D]
    last_hidden_state = jnp.concatenate([time, space], axis=-1).reshape(B, S, LORENTZ)

    # pooled_output = last_hidden_state[arange(B), input_ids.argmax(-1)]  (as in spec)
    eos_idx = jnp.argmax(input_ids.astype(jnp.int32), axis=-1)
    pooled_output = last_hidden_state[jnp.arange(B), eos_idx]
    return last_hidden_state, pooled_output


if __name__ == "__main__":
    key = jax.random.PRNGKey(0)
    pkey, ikey = jax.random.split(key)
    params = init_params(pkey)

    input_ids = jax.random.randint(ikey, (BATCH, SEQ), 1, VOCAB, dtype=jnp.int32)
    attention_mask = jnp.array(
        [[1, 1, 1, 1, 1, 1, 1, 1],
         [1, 1, 1, 1, 1, 1, 0, 0]], dtype=jnp.float32)

    fwd = jax.jit(hyp_clip_text_transformer)
    last, pooled = fwd(params, input_ids, attention_mask)
    last = jax.block_until_ready(last)
    pooled = jax.block_until_ready(pooled)

    assert last.shape == (BATCH, SEQ, LORENTZ)
    assert pooled.shape == (BATCH, LORENTZ)
    assert bool(jnp.all(jnp.isfinite(last))) and bool(jnp.all(jnp.isfinite(pooled)))
    # sanity: points satisfy -t^2 + ||s||^2 = -1 (on-manifold check)
    mink = -last[..., 0] ** 2 + jnp.sum(last[..., 1:] ** 2, axis=-1)
    assert bool(jnp.allclose(mink, -1.0, atol=1e-3))
    print("KERNEL_OK")
</pallas_src>

<mosaic_0001>
module attributes {stable_mosaic.version = 11 : i64} {
  func.func @fused_transformer_kernel(%arg0: memref<16x32xf32, #tpu.memory_space<vmem>>, %arg1: memref<16x16xf32, #tpu.memory_space<vmem>>, %arg2: memref<2x32x96xf32, #tpu.memory_space<vmem>>, %arg3: memref<2x32x32xf32, #tpu.memory_space<vmem>>, %arg4: memref<2x32x64xf32, #tpu.memory_space<vmem>>, %arg5: memref<2x64x32xf32, #tpu.memory_space<vmem>>, %arg6: memref<2x8x96xf32, #tpu.memory_space<vmem>>, %arg7: memref<2x32xf32, #tpu.memory_space<vmem>>, %arg8: memref<16x32xf32, #tpu.memory_space<vmem>>, %arg9: memref<16x1xf32, #tpu.memory_space<vmem>>) attributes {dimension_semantics = [], scalar_prefetch = 0 : i64, scratch_operands = 0 : i64, tpu.core_type = #tpu.core_type<tc>} {
    %c0 = arith.constant 0 : index
    %c0_0 = arith.constant 0 : index
    %0 = vector.load %arg0[%c0, %c0_0] : memref<16x32xf32, #tpu.memory_space<vmem>>, vector<16x32xf32>
    %c0_1 = arith.constant 0 : index
    %c0_2 = arith.constant 0 : index
    %1 = vector.load %arg1[%c0_1, %c0_2] : memref<16x16xf32, #tpu.memory_space<vmem>>, vector<16x16xf32>
    %c0_3 = arith.constant 0 : index
    %c0_4 = arith.constant 0 : index
    %c0_5 = arith.constant 0 : index
    %2 = vector.load %arg6[%c0_3, %c0_4, %c0_5] : memref<2x8x96xf32, #tpu.memory_space<vmem>>, vector<1x8x96xf32>
    %3 = vector.shape_cast %2 : vector<1x8x96xf32> to vector<8x96xf32>
    %4 = vector.extract_strided_slice %3 {offsets = [0, 0], sizes = [1, 96], strides = [1, 1]} : vector<8x96xf32> to vector<1x96xf32>
    %5 = vector.extract_strided_slice %3 {offsets = [1, 0], sizes = [1, 64], strides = [1, 1]} : vector<8x96xf32> to vector<1x64xf32>
    %6 = vector.extract_strided_slice %3 {offsets = [2, 0], sizes = [1, 32], strides = [1, 1]} : vector<8x96xf32> to vector<1x32xf32>
    %7 = vector.extract_strided_slice %3 {offsets = [3, 0], sizes = [1, 32], strides = [1, 1]} : vector<8x96xf32> to vector<1x32xf32>
    %8 = vector.extract_strided_slice %3 {offsets = [4, 0], sizes = [1, 32], strides = [1, 1]} : vector<8x96xf32> to vector<1x32xf32>
    %9 = vector.extract_strided_slice %3 {offsets = [5, 0], sizes = [1, 32], strides = [1, 1]} : vector<8x96xf32> to vector<1x32xf32>
    %10 = vector.extract_strided_slice %3 {offsets = [6, 0], sizes = [1, 32], strides = [1, 1]} : vector<8x96xf32> to vector<1x32xf32>
    %11 = vector.extract_strided_slice %3 {offsets = [7, 0], sizes = [1, 32], strides = [1, 1]} : vector<8x96xf32> to vector<1x32xf32>
    %cst = arith.constant dense<0.000000e+00> : vector<16xf32>
    %12 = vector.multi_reduction <add>, %0, %cst [1] : vector<16x32xf32> to vector<16xf32>
    %13 = vector.shape_cast %12 : vector<16xf32> to vector<16x1xf32>
    %cst_6 = arith.constant 3.200000e+01 : f32
    %14 = vector.broadcast %cst_6 : f32 to vector<16x1xf32>
    %15 = arith.divf %13, %14 : vector<16x1xf32>
    %16 = vector.broadcast %15 : vector<16x1xf32> to vector<16x32xf32>
    %17 = arith.subf %0, %16 : vector<16x32xf32>
    %18 = arith.mulf %17, %17 : vector<16x32xf32>
    %cst_7 = arith.constant dense<0.000000e+00> : vector<16xf32>
    %19 = vector.multi_reduction <add>, %18, %cst_7 [1] : vector<16x32xf32> to vector<16xf32>
    %20 = vector.shape_cast %19 : vector<16xf32> to vector<16x1xf32>
    %cst_8 = arith.constant 3.200000e+01 : f32
    %21 = vector.broadcast %cst_8 : f32 to vector<16x1xf32>
    %22 = arith.divf %20, %21 : vector<16x1xf32>
    %23 = vector.broadcast %15 : vector<16x1xf32> to vector<16x32xf32>
    %24 = arith.subf %0, %23 : vector<16x32xf32>
    %cst_9 = arith.constant 9.99999974E-6 : f32
    %25 = vector.broadcast %cst_9 : f32 to vector<16x1xf32>
    %26 = arith.addf %22, %25 : vector<16x1xf32>
    %27 = math.rsqrt %26 : vector<16x1xf32>
    %28 = vector.broadcast %27 : vector<16x1xf32> to vector<16x32xf32>
    %29 = arith.mulf %24, %28 : vector<16x32xf32>
    %30 = vector.broadcast %6 : vector<1x32xf32> to vector<16x32xf32>
    %31 = arith.mulf %29, %30 : vector<16x32xf32>
    %32 = vector.broadcast %7 : vector<1x32xf32> to vector<16x32xf32>
    %33 = arith.addf %31, %32 : vector<16x32xf32>
    %c0_10 = arith.constant 0 : index
    %c0_11 = arith.constant 0 : index
    %c0_12 = arith.constant 0 : index
    %34 = vector.load %arg2[%c0_10, %c0_11, %c0_12] : memref<2x32x96xf32, #tpu.memory_space<vmem>>, vector<1x32x96xf32>
    %35 = vector.shape_cast %34 : vector<1x32x96xf32> to vector<32x96xf32>
    %cst_13 = arith.constant dense<0.000000e+00> : vector<16x96xf32>
    %36 = tpu.matmul %33, %35, %cst_13 {dimension_numbers = #tpu.dot_dimension_numbers<[1], [0], [0], [1], [0, 0, 1, 1], [], []>} : vector<16x32xf32>, vector<32x96xf32>, vector<16x96xf32> -> vector<16x96xf32>
    %37 = vector.broadcast %4 : vector<1x96xf32> to vector<16x96xf32>
    %38 = arith.addf %36, %37 : vector<16x96xf32>
    %c0_14 = arith.constant 0 : index
    %c0_15 = arith.constant 0 : index
    %c0_16 = arith.constant 0 : index
    %39 = vector.load %arg3[%c0_14, %c0_15, %c0_16] : memref<2x32x32xf32, #tpu.memory_space<vmem>>, vector<1x32x32xf32>
    %40 = vector.shape_cast %39 : vector<1x32x32xf32> to vector<32x32xf32>
    %cst_17 = arith.constant 0.000000e+00 : f32
    %41 = vector.broadcast %cst_17 : f32 to vector<16x32xf32>
    %42 = vector.extract_strided_slice %38 {offsets = [0, 0], sizes = [16, 8], strides = [1, 1]} : vector<16x96xf32> to vector<16x8xf32>
    %cst_18 = arith.constant 0.353553385 : f32
    %43 = vector.broadcast %cst_18 : f32 to vector<16x8xf32>
    %44 = arith.mulf %42, %43 : vector<16x8xf32>
    %45 = vector.extract_strided_slice %38 {offsets = [0, 32], sizes = [16, 8], strides = [1, 1]} : vector<16x96xf32> to vector<16x8xf32>
    %46 = vector.extract_strided_slice %38 {offsets = [0, 64], sizes = [16, 8], strides = [1, 1]} : vector<16x96xf32> to vector<16x8xf32>
    %47 = tpu.transpose %45, [1, 0] : vector<16x8xf32> -> vector<8x16xf32>
    %cst_19 = arith.constant dense<0.000000e+00> : vector<16x16xf32>
    %48 = tpu.matmul %44, %47, %cst_19 {dimension_numbers = #tpu.dot_dimension_numbers<[1], [0], [0], [1], [0, 0, 1, 1], [], []>} : vector<16x8xf32>, vector<8x16xf32>, vector<16x16xf32> -> vector<16x16xf32>
    %49 = arith.addf %48, %1 : vector<16x16xf32>
    %cst_20 = arith.constant dense<0xFF800000> : vector<16xf32>
    %50 = vector.multi_reduction <maximumf>, %49, %cst_20 [1] : vector<16x16xf32> to vector<16xf32>
    %51 = vector.shape_cast %50 : vector<16xf32> to vector<16x1xf32>
    %52 = vector.broadcast %51 : vector<16x1xf32> to vector<16x16xf32>
    %53 = arith.subf %49, %52 : vector<16x16xf32>
    %54 = math.exp %53 : vector<16x16xf32>
    %cst_21 = arith.constant dense<0.000000e+00> : vector<16xf32>
    %55 = vector.multi_reduction <add>, %54, %cst_21 [1] : vector<16x16xf32> to vector<16xf32>
    %56 = vector.shape_cast %55 : vector<16xf32> to vector<16x1xf32>
    %57 = tpu.reciprocal %56 {approx = true} : vector<16x1xf32> -> vector<16x1xf32>
    %58 = vector.broadcast %57 : vector<16x1xf32> to vector<16x16xf32>
    %59 = arith.mulf %54, %58 : vector<16x16xf32>
    %cst_22 = arith.constant dense<0.000000e+00> : vector<16x8xf32>
    %60 = tpu.matmul %59, %46, %cst_22 {dimension_numbers = #tpu.dot_dimension_numbers<[1], [0], [0], [1], [0, 0, 1, 1], [], []>} : vector<16x16xf32>, vector<16x8xf32>, vector<16x8xf32> -> vector<16x8xf32>
    %61 = vector.extract_strided_slice %40 {offsets = [0, 0], sizes = [8, 32], strides = [1, 1]} : vector<32x32xf32> to vector<8x32xf32>
    %cst_23 = arith.constant dense<0.000000e+00> : vector<16x32xf32>
    %62 = tpu.matmul %60, %61, %cst_23 {dimension_numbers = #tpu.dot_dimension_numbers<[1], [0], [0], [1], [0, 0, 1, 1], [], []>} : vector<16x8xf32>, vector<8x32xf32>, vector<16x32xf32> -> vector<16x32xf32>
    %63 = arith.addf %41, %62 : vector<16x32xf32>
    %64 = vector.extract_strided_slice %38 {offsets = [0, 8], sizes = [16, 8], strides = [1, 1]} : vector<16x96xf32> to vector<16x8xf32>
    %cst_24 = arith.constant 0.353553385 : f32
    %65 = vector.broadcast %cst_24 : f32 to vector<16x8xf32>
    %66 = arith.mulf %64, %65 : vector<16x8xf32>
    %67 = vector.extract_strided_slice %38 {offsets = [0, 40], sizes = [16, 8], strides = [1, 1]} : vector<16x96xf32> to vector<16x8xf32>
    %68 = vector.extract_strided_slice %38 {offsets = [0, 72], sizes = [16, 8], strides = [1, 1]} : vector<16x96xf32> to vector<16x8xf32>
    %69 = tpu.transpose %67, [1, 0] : vector<16x8xf32> -> vector<8x16xf32>
    %cst_25 = arith.constant dense<0.000000e+00> : vector<16x16xf32>
    %70 = tpu.matmul %66, %69, %cst_25 {dimension_numbers = #tpu.dot_dimension_numbers<[1], [0], [0], [1], [0, 0, 1, 1], [], []>} : vector<16x8xf32>, vector<8x16xf32>, vector<16x16xf32> -> vector<16x16xf32>
    %71 = arith.addf %70, %1 : vector<16x16xf32>
    %cst_26 = arith.constant dense<0xFF800000> : vector<16xf32>
    %72 = vector.multi_reduction <maximumf>, %71, %cst_26 [1] : vector<16x16xf32> to vector<16xf32>
    %73 = vector.shape_cast %72 : vector<16xf32> to vector<16x1xf32>
    %74 = vector.broadcast %73 : vector<16x1xf32> to vector<16x16xf32>
    %75 = arith.subf %71, %74 : vector<16x16xf32>
    %76 = math.exp %75 : vector<16x16xf32>
    %cst_27 = arith.constant dense<0.000000e+00> : vector<16xf32>
    %77 = vector.multi_reduction <add>, %76, %cst_27 [1] : vector<16x16xf32> to vector<16xf32>
    %78 = vector.shape_cast %77 : vector<16xf32> to vector<16x1xf32>
    %79 = tpu.reciprocal %78 {approx = true} : vector<16x1xf32> -> vector<16x1xf32>
    %80 = vector.broadcast %79 : vector<16x1xf32> to vector<16x16xf32>
    %81 = arith.mulf %76, %80 : vector<16x16xf32>
    %cst_28 = arith.constant dense<0.000000e+00> : vector<16x8xf32>
    %82 = tpu.matmul %81, %68, %cst_28 {dimension_numbers = #tpu.dot_dimension_numbers<[1], [0], [0], [1], [0, 0, 1, 1], [], []>} : vector<16x16xf32>, vector<16x8xf32>, vector<16x8xf32> -> vector<16x8xf32>
    %83 = vector.extract_strided_slice %40 {offsets = [8, 0], sizes = [8, 32], strides = [1, 1]} : vector<32x32xf32> to vector<8x32xf32>
    %cst_29 = arith.constant dense<0.000000e+00> : vector<16x32xf32>
    %84 = tpu.matmul %82, %83, %cst_29 {dimension_numbers = #tpu.dot_dimension_numbers<[1], [0], [0], [1], [0, 0, 1, 1], [], []>} : vector<16x8xf32>, vector<8x32xf32>, vector<16x32xf32> -> vector<16x32xf32>
    %85 = arith.addf %63, %84 : vector<16x32xf32>
    %86 = vector.extract_strided_slice %38 {offsets = [0, 16], sizes = [16, 8], strides = [1, 1]} : vector<16x96xf32> to vector<16x8xf32>
    %cst_30 = arith.constant 0.353553385 : f32
    %87 = vector.broadcast %cst_30 : f32 to vector<16x8xf32>
    %88 = arith.mulf %86, %87 : vector<16x8xf32>
    %89 = vector.extract_strided_slice %38 {offsets = [0, 48], sizes = [16, 8], strides = [1, 1]} : vector<16x96xf32> to vector<16x8xf32>
    %90 = vector.extract_strided_slice %38 {offsets = [0, 80], sizes = [16, 8], strides = [1, 1]} : vector<16x96xf32> to vector<16x8xf32>
    %91 = tpu.transpose %89, [1, 0] : vector<16x8xf32> -> vector<8x16xf32>
    %cst_31 = arith.constant dense<0.000000e+00> : vector<16x16xf32>
    %92 = tpu.matmul %88, %91, %cst_31 {dimension_numbers = #tpu.dot_dimension_numbers<[1], [0], [0], [1], [0, 0, 1, 1], [], []>} : vector<16x8xf32>, vector<8x16xf32>, vector<16x16xf32> -> vector<16x16xf32>
    %93 = arith.addf %92, %1 : vector<16x16xf32>
    %cst_32 = arith.constant dense<0xFF800000> : vector<16xf32>
    %94 = vector.multi_reduction <maximumf>, %93, %cst_32 [1] : vector<16x16xf32> to vector<16xf32>
    %95 = vector.shape_cast %94 : vector<16xf32> to vector<16x1xf32>
    %96 = vector.broadcast %95 : vector<16x1xf32> to vector<16x16xf32>
    %97 = arith.subf %93, %96 : vector<16x16xf32>
    %98 = math.exp %97 : vector<16x16xf32>
    %cst_33 = arith.constant dense<0.000000e+00> : vector<16xf32>
    %99 = vector.multi_reduction <add>, %98, %cst_33 [1] : vector<16x16xf32> to vector<16xf32>
    %100 = vector.shape_cast %99 : vector<16xf32> to vector<16x1xf32>
    %101 = tpu.reciprocal %100 {approx = true} : vector<16x1xf32> -> vector<16x1xf32>
    %102 = vector.broadcast %101 : vector<16x1xf32> to vector<16x16xf32>
    %103 = arith.mulf %98, %102 : vector<16x16xf32>
    %cst_34 = arith.constant dense<0.000000e+00> : vector<16x8xf32>
    %104 = tpu.matmul %103, %90, %cst_34 {dimension_numbers = #tpu.dot_dimension_numbers<[1], [0], [0], [1], [0, 0, 1, 1], [], []>} : vector<16x16xf32>, vector<16x8xf32>, vector<16x8xf32> -> vector<16x8xf32>
    %105 = vector.extract_strided_slice %40 {offsets = [16, 0], sizes = [8, 32], strides = [1, 1]} : vector<32x32xf32> to vector<8x32xf32>
    %cst_35 = arith.constant dense<0.000000e+00> : vector<16x32xf32>
    %106 = tpu.matmul %104, %105, %cst_35 {dimension_numbers = #tpu.dot_dimension_numbers<[1], [0], [0], [1], [0, 0, 1, 1], [], []>} : vector<16x8xf32>, vector<8x32xf32>, vector<16x32xf32> -> vector<16x32xf32>
    %107 = arith.addf %85, %106 : vector<16x32xf32>
    %108 = vector.extract_strided_slice %38 {offsets = [0, 24], sizes = [16, 8], strides = [1, 1]} : vector<16x96xf32> to vector<16x8xf32>
    %cst_36 = arith.constant 0.353553385 : f32
    %109 = vector.broadcast %cst_36 : f32 to vector<16x8xf32>
    %110 = arith.mulf %108, %109 : vector<16x8xf32>
    %111 = vector.extract_strided_slice %38 {offsets = [0, 56], sizes = [16, 8], strides = [1, 1]} : vector<16x96xf32> to vector<16x8xf32>
    %112 = vector.extract_strided_slice %38 {offsets = [0, 88], sizes = [16, 8], strides = [1, 1]} : vector<16x96xf32> to vector<16x8xf32>
    %113 = tpu.transpose %111, [1, 0] : vector<16x8xf32> -> vector<8x16xf32>
    %cst_37 = arith.constant dense<0.000000e+00> : vector<16x16xf32>
    %114 = tpu.matmul %110, %113, %cst_37 {dimension_numbers = #tpu.dot_dimension_numbers<[1], [0], [0], [1], [0, 0, 1, 1], [], []>} : vector<16x8xf32>, vector<8x16xf32>, vector<16x16xf32> -> vector<16x16xf32>
    %115 = arith.addf %114, %1 : vector<16x16xf32>
    %cst_38 = arith.constant dense<0xFF800000> : vector<16xf32>
    %116 = vector.multi_reduction <maximumf>, %115, %cst_38 [1] : vector<16x16xf32> to vector<16xf32>
    %117 = vector.shape_cast %116 : vector<16xf32> to vector<16x1xf32>
    %118 = vector.broadcast %117 : vector<16x1xf32> to vector<16x16xf32>
    %119 = arith.subf %115, %118 : vector<16x16xf32>
    %120 = math.exp %119 : vector<16x16xf32>
    %cst_39 = arith.constant dense<0.000000e+00> : vector<16xf32>
    %121 = vector.multi_reduction <add>, %120, %cst_39 [1] : vector<16x16xf32> to vector<16xf32>
    %122 = vector.shape_cast %121 : vector<16xf32> to vector<16x1xf32>
    %123 = tpu.reciprocal %122 {approx = true} : vector<16x1xf32> -> vector<16x1xf32>
    %124 = vector.broadcast %123 : vector<16x1xf32> to vector<16x16xf32>
    %125 = arith.mulf %120, %124 : vector<16x16xf32>
    %cst_40 = arith.constant dense<0.000000e+00> : vector<16x8xf32>
    %126 = tpu.matmul %125, %112, %cst_40 {dimension_numbers = #tpu.dot_dimension_numbers<[1], [0], [0], [1], [0, 0, 1, 1], [], []>} : vector<16x16xf32>, vector<16x8xf32>, vector<16x8xf32> -> vector<16x8xf32>
    %127 = vector.extract_strided_slice %40 {offsets = [24, 0], sizes = [8, 32], strides = [1, 1]} : vector<32x32xf32> to vector<8x32xf32>
    %cst_41 = arith.constant dense<0.000000e+00> : vector<16x32xf32>
    %128 = tpu.matmul %126, %127, %cst_41 {dimension_numbers = #tpu.dot_dimension_numbers<[1], [0], [0], [1], [0, 0, 1, 1], [], []>} : vector<16x8xf32>, vector<8x32xf32>, vector<16x32xf32> -> vector<16x32xf32>
    %129 = arith.addf %107, %128 : vector<16x32xf32>
    %130 = vector.broadcast %8 : vector<1x32xf32> to vector<16x32xf32>
    %131 = arith.addf %129, %130 : vector<16x32xf32>
    %132 = arith.addf %0, %131 : vector<16x32xf32>
    %cst_42 = arith.constant dense<0.000000e+00> : vector<16xf32>
    %133 = vector.multi_reduction <add>, %132, %cst_42 [1] : vector<16x32xf32> to vector<16xf32>
    %134 = vector.shape_cast %133 : vector<16xf32> to vector<16x1xf32>
    %cst_43 = arith.constant 3.200000e+01 : f32
    %135 = vector.broadcast %cst_43 : f32 to vector<16x1xf32>
    %136 = arith.divf %134, %135 : vector<16x1xf32>
    %137 = vector.broadcast %136 : vector<16x1xf32> to vector<16x32xf32>
    %138 = arith.subf %132, %137 : vector<16x32xf32>
    %139 = arith.mulf %138, %138 : vector<16x32xf32>
    %cst_44 = arith.constant dense<0.000000e+00> : vector<16xf32>
    %140 = vector.multi_reduction <add>, %139, %cst_44 [1] : vector<16x32xf32> to vector<16xf32>
    %141 = vector.shape_cast %140 : vector<16xf32> to vector<16x1xf32>
    %cst_45 = arith.constant 3.200000e+01 : f32
    %142 = vector.broadcast %cst_45 : f32 to vector<16x1xf32>
    %143 = arith.divf %141, %142 : vector<16x1xf32>
    %144 = vector.broadcast %136 : vector<16x1xf32> to vector<16x32xf32>
    %145 = arith.subf %132, %144 : vector<16x32xf32>
    %cst_46 = arith.constant 9.99999974E-6 : f32
    %146 = vector.broadcast %cst_46 : f32 to vector<16x1xf32>
    %147 = arith.addf %143, %146 : vector<16x1xf32>
    %148 = math.rsqrt %147 : vector<16x1xf32>
    %149 = vector.broadcast %148 : vector<16x1xf32> to vector<16x32xf32>
    %150 = arith.mulf %145, %149 : vector<16x32xf32>
    %151 = vector.broadcast %9 : vector<1x32xf32> to vector<16x32xf32>
    %152 = arith.mulf %150, %151 : vector<16x32xf32>
    %153 = vector.broadcast %10 : vector<1x32xf32> to vector<16x32xf32>
    %154 = arith.addf %152, %153 : vector<16x32xf32>
    %c0_47 = arith.constant 0 : index
    %c0_48 = arith.constant 0 : index
    %c0_49 = arith.constant 0 : index
    %155 = vector.load %arg4[%c0_47, %c0_48, %c0_49] : memref<2x32x64xf32, #tpu.memory_space<vmem>>, vector<1x32x64xf32>
    %156 = vector.shape_cast %155 : vector<1x32x64xf32> to vector<32x64xf32>
    %cst_50 = arith.constant dense<0.000000e+00> : vector<16x64xf32>
    %157 = tpu.matmul %154, %156, %cst_50 {dimension_numbers = #tpu.dot_dimension_numbers<[1], [0], [0], [1], [0, 0, 1, 1], [], []>} : vector<16x32xf32>, vector<32x64xf32>, vector<16x64xf32> -> vector<16x64xf32>
    %158 = vector.broadcast %5 : vector<1x64xf32> to vector<16x64xf32>
    %159 = arith.addf %157, %158 : vector<16x64xf32>
    %cst_51 = arith.constant 1.702000e+00 : f32
    %160 = vector.broadcast %cst_51 : f32 to vector<16x64xf32>
    %161 = arith.mulf %160, %159 : vector<16x64xf32>
    %162 = arith.negf %161 : vector<16x64xf32>
    %163 = math.exp %162 : vector<16x64xf32>
    %cst_52 = arith.constant 1.000000e+00 : f32
    %164 = vector.broadcast %cst_52 : f32 to vector<16x64xf32>
    %165 = arith.addf %164, %163 : vector<16x64xf32>
    %166 = arith.divf %164, %165 : vector<16x64xf32>
    %167 = arith.mulf %159, %166 : vector<16x64xf32>
    %c0_53 = arith.constant 0 : index
    %c0_54 = arith.constant 0 : index
    %c0_55 = arith.constant 0 : index
    %168 = vector.load %arg5[%c0_53, %c0_54, %c0_55] : memref<2x64x32xf32, #tpu.memory_space<vmem>>, vector<1x64x32xf32>
    %169 = vector.shape_cast %168 : vector<1x64x32xf32> to vector<64x32xf32>
    %cst_56 = arith.constant dense<0.000000e+00> : vector<16x32xf32>
    %170 = tpu.matmul %167, %169, %cst_56 {dimension_numbers = #tpu.dot_dimension_numbers<[1], [0], [0], [1], [0, 0, 1, 1], [], []>} : vector<16x64xf32>, vector<64x32xf32>, vector<16x32xf32> -> vector<16x32xf32>
    %171 = arith.addf %132, %170 : vector<16x32xf32>
    %172 = vector.broadcast %11 : vector<1x32xf32> to vector<16x32xf32>
    %173 = arith.addf %171, %172 : vector<16x32xf32>
    %c1 = arith.constant 1 : index
    %c0_57 = arith.constant 0 : index
    %c0_58 = arith.constant 0 : index
    %174 = vector.load %arg6[%c1, %c0_57, %c0_58] : memref<2x8x96xf32, #tpu.memory_space<vmem>>, vector<1x8x96xf32>
    %175 = vector.shape_cast %174 : vector<1x8x96xf32> to vector<8x96xf32>
    %176 = vector.extract_strided_slice %175 {offsets = [0, 0], sizes = [1, 96], strides = [1, 1]} : vector<8x96xf32> to vector<1x96xf32>
    %177 = vector.extract_strided_slice %175 {offsets = [1, 0], sizes = [1, 64], strides = [1, 1]} : vector<8x96xf32> to vector<1x64xf32>
    %178 = vector.extract_strided_slice %175 {offsets = [2, 0], sizes = [1, 32], strides = [1, 1]} : vector<8x96xf32> to vector<1x32xf32>
    %179 = vector.extract_strided_slice %175 {offsets = [3, 0], sizes = [1, 32], strides = [1, 1]} : vector<8x96xf32> to vector<1x32xf32>
    %180 = vector.extract_strided_slice %175 {offsets = [4, 0], sizes = [1, 32], strides = [1, 1]} : vector<8x96xf32> to vector<1x32xf32>
    %181 = vector.extract_strided_slice %175 {offsets = [5, 0], sizes = [1, 32], strides = [1, 1]} : vector<8x96xf32> to vector<1x32xf32>
    %182 = vector.extract_strided_slice %175 {offsets = [6, 0], sizes = [1, 32], strides = [1, 1]} : vector<8x96xf32> to vector<1x32xf32>
    %183 = vector.extract_strided_slice %175 {offsets = [7, 0], sizes = [1, 32], strides = [1, 1]} : vector<8x96xf32> to vector<1x32xf32>
    %cst_59 = arith.constant dense<0.000000e+00> : vector<16xf32>
    %184 = vector.multi_reduction <add>, %173, %cst_59 [1] : vector<16x32xf32> to vector<16xf32>
    %185 = vector.shape_cast %184 : vector<16xf32> to vector<16x1xf32>
    %cst_60 = arith.constant 3.200000e+01 : f32
    %186 = vector.broadcast %cst_60 : f32 to vector<16x1xf32>
    %187 = arith.divf %185, %186 : vector<16x1xf32>
    %188 = vector.broadcast %187 : vector<16x1xf32> to vector<16x32xf32>
    %189 = arith.subf %173, %188 : vector<16x32xf32>
    %190 = arith.mulf %189, %189 : vector<16x32xf32>
    %cst_61 = arith.constant dense<0.000000e+00> : vector<16xf32>
    %191 = vector.multi_reduction <add>, %190, %cst_61 [1] : vector<16x32xf32> to vector<16xf32>
    %192 = vector.shape_cast %191 : vector<16xf32> to vector<16x1xf32>
    %cst_62 = arith.constant 3.200000e+01 : f32
    %193 = vector.broadcast %cst_62 : f32 to vector<16x1xf32>
    %194 = arith.divf %192, %193 : vector<16x1xf32>
    %195 = vector.broadcast %187 : vector<16x1xf32> to vector<16x32xf32>
    %196 = arith.subf %173, %195 : vector<16x32xf32>
    %cst_63 = arith.constant 9.99999974E-6 : f32
    %197 = vector.broadcast %cst_63 : f32 to vector<16x1xf32>
    %198 = arith.addf %194, %197 : vector<16x1xf32>
    %199 = math.rsqrt %198 : vector<16x1xf32>
    %200 = vector.broadcast %199 : vector<16x1xf32> to vector<16x32xf32>
    %201 = arith.mulf %196, %200 : vector<16x32xf32>
    %202 = vector.broadcast %178 : vector<1x32xf32> to vector<16x32xf32>
    %203 = arith.mulf %201, %202 : vector<16x32xf32>
    %204 = vector.broadcast %179 : vector<1x32xf32> to vector<16x32xf32>
    %205 = arith.addf %203, %204 : vector<16x32xf32>
    %c1_64 = arith.constant 1 : index
    %c0_65 = arith.constant 0 : index
    %c0_66 = arith.constant 0 : index
    %206 = vector.load %arg2[%c1_64, %c0_65, %c0_66] : memref<2x32x96xf32, #tpu.memory_space<vmem>>, vector<1x32x96xf32>
    %207 = vector.shape_cast %206 : vector<1x32x96xf32> to vector<32x96xf32>
    %cst_67 = arith.constant dense<0.000000e+00> : vector<16x96xf32>
    %208 = tpu.matmul %205, %207, %cst_67 {dimension_numbers = #tpu.dot_dimension_numbers<[1], [0], [0], [1], [0, 0, 1, 1], [], []>} : vector<16x32xf32>, vector<32x96xf32>, vector<16x96xf32> -> vector<16x96xf32>
    %209 = vector.broadcast %176 : vector<1x96xf32> to vector<16x96xf32>
    %210 = arith.addf %208, %209 : vector<16x96xf32>
    %c1_68 = arith.constant 1 : index
    %c0_69 = arith.constant 0 : index
    %c0_70 = arith.constant 0 : index
    %211 = vector.load %arg3[%c1_68, %c0_69, %c0_70] : memref<2x32x32xf32, #tpu.memory_space<vmem>>, vector<1x32x32xf32>
    %212 = vector.shape_cast %211 : vector<1x32x32xf32> to vector<32x32xf32>
    %cst_71 = arith.constant 0.000000e+00 : f32
    %213 = vector.broadcast %cst_71 : f32 to vector<16x32xf32>
    %214 = vector.extract_strided_slice %210 {offsets = [0, 0], sizes = [16, 8], strides = [1, 1]} : vector<16x96xf32> to vector<16x8xf32>
    %cst_72 = arith.constant 0.353553385 : f32
    %215 = vector.broadcast %cst_72 : f32 to vector<16x8xf32>
    %216 = arith.mulf %214, %215 : vector<16x8xf32>
    %217 = vector.extract_strided_slice %210 {offsets = [0, 32], sizes = [16, 8], strides = [1, 1]} : vector<16x96xf32> to vector<16x8xf32>
    %218 = vector.extract_strided_slice %210 {offsets = [0, 64], sizes = [16, 8], strides = [1, 1]} : vector<16x96xf32> to vector<16x8xf32>
    %219 = tpu.transpose %217, [1, 0] : vector<16x8xf32> -> vector<8x16xf32>
    %cst_73 = arith.constant dense<0.000000e+00> : vector<16x16xf32>
    %220 = tpu.matmul %216, %219, %cst_73 {dimension_numbers = #tpu.dot_dimension_numbers<[1], [0], [0], [1], [0, 0, 1, 1], [], []>} : vector<16x8xf32>, vector<8x16xf32>, vector<16x16xf32> -> vector<16x16xf32>
    %221 = arith.addf %220, %1 : vector<16x16xf32>
    %cst_74 = arith.constant dense<0xFF800000> : vector<16xf32>
    %222 = vector.multi_reduction <maximumf>, %221, %cst_74 [1] : vector<16x16xf32> to vector<16xf32>
    %223 = vector.shape_cast %222 : vector<16xf32> to vector<16x1xf32>
    %224 = vector.broadcast %223 : vector<16x1xf32> to vector<16x16xf32>
    %225 = arith.subf %221, %224 : vector<16x16xf32>
    %226 = math.exp %225 : vector<16x16xf32>
    %cst_75 = arith.constant dense<0.000000e+00> : vector<16xf32>
    %227 = vector.multi_reduction <add>, %226, %cst_75 [1] : vector<16x16xf32> to vector<16xf32>
    %228 = vector.shape_cast %227 : vector<16xf32> to vector<16x1xf32>
    %229 = tpu.reciprocal %228 {approx = true} : vector<16x1xf32> -> vector<16x1xf32>
    %230 = vector.broadcast %229 : vector<16x1xf32> to vector<16x16xf32>
    %231 = arith.mulf %226, %230 : vector<16x16xf32>
    %cst_76 = arith.constant dense<0.000000e+00> : vector<16x8xf32>
    %232 = tpu.matmul %231, %218, %cst_76 {dimension_numbers = #tpu.dot_dimension_numbers<[1], [0], [0], [1], [0, 0, 1, 1], [], []>} : vector<16x16xf32>, vector<16x8xf32>, vector<16x8xf32> -> vector<16x8xf32>
    %233 = vector.extract_strided_slice %212 {offsets = [0, 0], sizes = [8, 32], strides = [1, 1]} : vector<32x32xf32> to vector<8x32xf32>
    %cst_77 = arith.constant dense<0.000000e+00> : vector<16x32xf32>
    %234 = tpu.matmul %232, %233, %cst_77 {dimension_numbers = #tpu.dot_dimension_numbers<[1], [0], [0], [1], [0, 0, 1, 1], [], []>} : vector<16x8xf32>, vector<8x32xf32>, vector<16x32xf32> -> vector<16x32xf32>
    %235 = arith.addf %213, %234 : vector<16x32xf32>
    %236 = vector.extract_strided_slice %210 {offsets = [0, 8], sizes = [16, 8], strides = [1, 1]} : vector<16x96xf32> to vector<16x8xf32>
    %cst_78 = arith.constant 0.353553385 : f32
    %237 = vector.broadcast %cst_78 : f32 to vector<16x8xf32>
    %238 = arith.mulf %236, %237 : vector<16x8xf32>
    %239 = vector.extract_strided_slice %210 {offsets = [0, 40], sizes = [16, 8], strides = [1, 1]} : vector<16x96xf32> to vector<16x8xf32>
    %240 = vector.extract_strided_slice %210 {offsets = [0, 72], sizes = [16, 8], strides = [1, 1]} : vector<16x96xf32> to vector<16x8xf32>
    %241 = tpu.transpose %239, [1, 0] : vector<16x8xf32> -> vector<8x16xf32>
    %cst_79 = arith.constant dense<0.000000e+00> : vector<16x16xf32>
    %242 = tpu.matmul %238, %241, %cst_79 {dimension_numbers = #tpu.dot_dimension_numbers<[1], [0], [0], [1], [0, 0, 1, 1], [], []>} : vector<16x8xf32>, vector<8x16xf32>, vector<16x16xf32> -> vector<16x16xf32>
    %243 = arith.addf %242, %1 : vector<16x16xf32>
    %cst_80 = arith.constant dense<0xFF800000> : vector<16xf32>
    %244 = vector.multi_reduction <maximumf>, %243, %cst_80 [1] : vector<16x16xf32> to vector<16xf32>
    %245 = vector.shape_cast %244 : vector<16xf32> to vector<16x1xf32>
    %246 = vector.broadcast %245 : vector<16x1xf32> to vector<16x16xf32>
    %247 = arith.subf %243, %246 : vector<16x16xf32>
    %248 = math.exp %247 : vector<16x16xf32>
    %cst_81 = arith.constant dense<0.000000e+00> : vector<16xf32>
    %249 = vector.multi_reduction <add>, %248, %cst_81 [1] : vector<16x16xf32> to vector<16xf32>
    %250 = vector.shape_cast %249 : vector<16xf32> to vector<16x1xf32>
    %251 = tpu.reciprocal %250 {approx = true} : vector<16x1xf32> -> vector<16x1xf32>
    %252 = vector.broadcast %251 : vector<16x1xf32> to vector<16x16xf32>
    %253 = arith.mulf %248, %252 : vector<16x16xf32>
    %cst_82 = arith.constant dense<0.000000e+00> : vector<16x8xf32>
    %254 = tpu.matmul %253, %240, %cst_82 {dimension_numbers = #tpu.dot_dimension_numbers<[1], [0], [0], [1], [0, 0, 1, 1], [], []>} : vector<16x16xf32>, vector<16x8xf32>, vector<16x8xf32> -> vector<16x8xf32>
    %255 = vector.extract_strided_slice %212 {offsets = [8, 0], sizes = [8, 32], strides = [1, 1]} : vector<32x32xf32> to vector<8x32xf32>
    %cst_83 = arith.constant dense<0.000000e+00> : vector<16x32xf32>
    %256 = tpu.matmul %254, %255, %cst_83 {dimension_numbers = #tpu.dot_dimension_numbers<[1], [0], [0], [1], [0, 0, 1, 1], [], []>} : vector<16x8xf32>, vector<8x32xf32>, vector<16x32xf32> -> vector<16x32xf32>
    %257 = arith.addf %235, %256 : vector<16x32xf32>
    %258 = vector.extract_strided_slice %210 {offsets = [0, 16], sizes = [16, 8], strides = [1, 1]} : vector<16x96xf32> to vector<16x8xf32>
    %cst_84 = arith.constant 0.353553385 : f32
    %259 = vector.broadcast %cst_84 : f32 to vector<16x8xf32>
    %260 = arith.mulf %258, %259 : vector<16x8xf32>
    %261 = vector.extract_strided_slice %210 {offsets = [0, 48], sizes = [16, 8], strides = [1, 1]} : vector<16x96xf32> to vector<16x8xf32>
    %262 = vector.extract_strided_slice %210 {offsets = [0, 80], sizes = [16, 8], strides = [1, 1]} : vector<16x96xf32> to vector<16x8xf32>
    %263 = tpu.transpose %261, [1, 0] : vector<16x8xf32> -> vector<8x16xf32>
    %cst_85 = arith.constant dense<0.000000e+00> : vector<16x16xf32>
    %264 = tpu.matmul %260, %263, %cst_85 {dimension_numbers = #tpu.dot_dimension_numbers<[1], [0], [0], [1], [0, 0, 1, 1], [], []>} : vector<16x8xf32>, vector<8x16xf32>, vector<16x16xf32> -> vector<16x16xf32>
    %265 = arith.addf %264, %1 : vector<16x16xf32>
    %cst_86 = arith.constant dense<0xFF800000> : vector<16xf32>
    %266 = vector.multi_reduction <maximumf>, %265, %cst_86 [1] : vector<16x16xf32> to vector<16xf32>
    %267 = vector.shape_cast %266 : vector<16xf32> to vector<16x1xf32>
    %268 = vector.broadcast %267 : vector<16x1xf32> to vector<16x16xf32>
    %269 = arith.subf %265, %268 : vector<16x16xf32>
    %270 = math.exp %269 : vector<16x16xf32>
    %cst_87 = arith.constant dense<0.000000e+00> : vector<16xf32>
    %271 = vector.multi_reduction <add>, %270, %cst_87 [1] : vector<16x16xf32> to vector<16xf32>
    %272 = vector.shape_cast %271 : vector<16xf32> to vector<16x1xf32>
    %273 = tpu.reciprocal %272 {approx = true} : vector<16x1xf32> -> vector<16x1xf32>
    %274 = vector.broadcast %273 : vector<16x1xf32> to vector<16x16xf32>
    %275 = arith.mulf %270, %274 : vector<16x16xf32>
    %cst_88 = arith.constant dense<0.000000e+00> : vector<16x8xf32>
    %276 = tpu.matmul %275, %262, %cst_88 {dimension_numbers = #tpu.dot_dimension_numbers<[1], [0], [0], [1], [0, 0, 1, 1], [], []>} : vector<16x16xf32>, vector<16x8xf32>, vector<16x8xf32> -> vector<16x8xf32>
    %277 = vector.extract_strided_slice %212 {offsets = [16, 0], sizes = [8, 32], strides = [1, 1]} : vector<32x32xf32> to vector<8x32xf32>
    %cst_89 = arith.constant dense<0.000000e+00> : vector<16x32xf32>
    %278 = tpu.matmul %276, %277, %cst_89 {dimension_numbers = #tpu.dot_dimension_numbers<[1], [0], [0], [1], [0, 0, 1, 1], [], []>} : vector<16x8xf32>, vector<8x32xf32>, vector<16x32xf32> -> vector<16x32xf32>
    %279 = arith.addf %257, %278 : vector<16x32xf32>
    %280 = vector.extract_strided_slice %210 {offsets = [0, 24], sizes = [16, 8], strides = [1, 1]} : vector<16x96xf32> to vector<16x8xf32>
    %cst_90 = arith.constant 0.353553385 : f32
    %281 = vector.broadcast %cst_90 : f32 to vector<16x8xf32>
    %282 = arith.mulf %280, %281 : vector<16x8xf32>
    %283 = vector.extract_strided_slice %210 {offsets = [0, 56], sizes = [16, 8], strides = [1, 1]} : vector<16x96xf32> to vector<16x8xf32>
    %284 = vector.extract_strided_slice %210 {offsets = [0, 88], sizes = [16, 8], strides = [1, 1]} : vector<16x96xf32> to vector<16x8xf32>
    %285 = tpu.transpose %283, [1, 0] : vector<16x8xf32> -> vector<8x16xf32>
    %cst_91 = arith.constant dense<0.000000e+00> : vector<16x16xf32>
    %286 = tpu.matmul %282, %285, %cst_91 {dimension_numbers = #tpu.dot_dimension_numbers<[1], [0], [0], [1], [0, 0, 1, 1], [], []>} : vector<16x8xf32>, vector<8x16xf32>, vector<16x16xf32> -> vector<16x16xf32>
    %287 = arith.addf %286, %1 : vector<16x16xf32>
    %cst_92 = arith.constant dense<0xFF800000> : vector<16xf32>
    %288 = vector.multi_reduction <maximumf>, %287, %cst_92 [1] : vector<16x16xf32> to vector<16xf32>
    %289 = vector.shape_cast %288 : vector<16xf32> to vector<16x1xf32>
    %290 = vector.broadcast %289 : vector<16x1xf32> to vector<16x16xf32>
    %291 = arith.subf %287, %290 : vector<16x16xf32>
    %292 = math.exp %291 : vector<16x16xf32>
    %cst_93 = arith.constant dense<0.000000e+00> : vector<16xf32>
    %293 = vector.multi_reduction <add>, %292, %cst_93 [1] : vector<16x16xf32> to vector<16xf32>
    %294 = vector.shape_cast %293 : vector<16xf32> to vector<16x1xf32>
    %295 = tpu.reciprocal %294 {approx = true} : vector<16x1xf32> -> vector<16x1xf32>
    %296 = vector.broadcast %295 : vector<16x1xf32> to vector<16x16xf32>
    %297 = arith.mulf %292, %296 : vector<16x16xf32>
    %cst_94 = arith.constant dense<0.000000e+00> : vector<16x8xf32>
    %298 = tpu.matmul %297, %284, %cst_94 {dimension_numbers = #tpu.dot_dimension_numbers<[1], [0], [0], [1], [0, 0, 1, 1], [], []>} : vector<16x16xf32>, vector<16x8xf32>, vector<16x8xf32> -> vector<16x8xf32>
    %299 = vector.extract_strided_slice %212 {offsets = [24, 0], sizes = [8, 32], strides = [1, 1]} : vector<32x32xf32> to vector<8x32xf32>
    %cst_95 = arith.constant dense<0.000000e+00> : vector<16x32xf32>
    %300 = tpu.matmul %298, %299, %cst_95 {dimension_numbers = #tpu.dot_dimension_numbers<[1], [0], [0], [1], [0, 0, 1, 1], [], []>} : vector<16x8xf32>, vector<8x32xf32>, vector<16x32xf32> -> vector<16x32xf32>
    %301 = arith.addf %279, %300 : vector<16x32xf32>
    %302 = vector.broadcast %180 : vector<1x32xf32> to vector<16x32xf32>
    %303 = arith.addf %301, %302 : vector<16x32xf32>
    %304 = arith.addf %173, %303 : vector<16x32xf32>
    %cst_96 = arith.constant dense<0.000000e+00> : vector<16xf32>
    %305 = vector.multi_reduction <add>, %304, %cst_96 [1] : vector<16x32xf32> to vector<16xf32>
    %306 = vector.shape_cast %305 : vector<16xf32> to vector<16x1xf32>
    %cst_97 = arith.constant 3.200000e+01 : f32
    %307 = vector.broadcast %cst_97 : f32 to vector<16x1xf32>
    %308 = arith.divf %306, %307 : vector<16x1xf32>
    %309 = vector.broadcast %308 : vector<16x1xf32> to vector<16x32xf32>
    %310 = arith.subf %304, %309 : vector<16x32xf32>
    %311 = arith.mulf %310, %310 : vector<16x32xf32>
    %cst_98 = arith.constant dense<0.000000e+00> : vector<16xf32>
    %312 = vector.multi_reduction <add>, %311, %cst_98 [1] : vector<16x32xf32> to vector<16xf32>
    %313 = vector.shape_cast %312 : vector<16xf32> to vector<16x1xf32>
    %cst_99 = arith.constant 3.200000e+01 : f32
    %314 = vector.broadcast %cst_99 : f32 to vector<16x1xf32>
    %315 = arith.divf %313, %314 : vector<16x1xf32>
    %316 = vector.broadcast %308 : vector<16x1xf32> to vector<16x32xf32>
    %317 = arith.subf %304, %316 : vector<16x32xf32>
    %cst_100 = arith.constant 9.99999974E-6 : f32
    %318 = vector.broadcast %cst_100 : f32 to vector<16x1xf32>
    %319 = arith.addf %315, %318 : vector<16x1xf32>
    %320 = math.rsqrt %319 : vector<16x1xf32>
    %321 = vector.broadcast %320 : vector<16x1xf32> to vector<16x32xf32>
    %322 = arith.mulf %317, %321 : vector<16x32xf32>
    %323 = vector.broadcast %181 : vector<1x32xf32> to vector<16x32xf32>
    %324 = arith.mulf %322, %323 : vector<16x32xf32>
    %325 = vector.broadcast %182 : vector<1x32xf32> to vector<16x32xf32>
    %326 = arith.addf %324, %325 : vector<16x32xf32>
    %c1_101 = arith.constant 1 : index
    %c0_102 = arith.constant 0 : index
    %c0_103 = arith.constant 0 : index
    %327 = vector.load %arg4[%c1_101, %c0_102, %c0_103] : memref<2x32x64xf32, #tpu.memory_space<vmem>>, vector<1x32x64xf32>
    %328 = vector.shape_cast %327 : vector<1x32x64xf32> to vector<32x64xf32>
    %cst_104 = arith.constant dense<0.000000e+00> : vector<16x64xf32>
    %329 = tpu.matmul %326, %328, %cst_104 {dimension_numbers = #tpu.dot_dimension_numbers<[1], [0], [0], [1], [0, 0, 1, 1], [], []>} : vector<16x32xf32>, vector<32x64xf32>, vector<16x64xf32> -> vector<16x64xf32>
    %330 = vector.broadcast %177 : vector<1x64xf32> to vector<16x64xf32>
    %331 = arith.addf %329, %330 : vector<16x64xf32>
    %cst_105 = arith.constant 1.702000e+00 : f32
    %332 = vector.broadcast %cst_105 : f32 to vector<16x64xf32>
    %333 = arith.mulf %332, %331 : vector<16x64xf32>
    %334 = arith.negf %333 : vector<16x64xf32>
    %335 = math.exp %334 : vector<16x64xf32>
    %cst_106 = arith.constant 1.000000e+00 : f32
    %336 = vector.broadcast %cst_106 : f32 to vector<16x64xf32>
    %337 = arith.addf %336, %335 : vector<16x64xf32>
    %338 = arith.divf %336, %337 : vector<16x64xf32>
    %339 = arith.mulf %331, %338 : vector<16x64xf32>
    %c1_107 = arith.constant 1 : index
    %c0_108 = arith.constant 0 : index
    %c0_109 = arith.constant 0 : index
    %340 = vector.load %arg5[%c1_107, %c0_108, %c0_109] : memref<2x64x32xf32, #tpu.memory_space<vmem>>, vector<1x64x32xf32>
    %341 = vector.shape_cast %340 : vector<1x64x32xf32> to vector<64x32xf32>
    %cst_110 = arith.constant dense<0.000000e+00> : vector<16x32xf32>
    %342 = tpu.matmul %339, %341, %cst_110 {dimension_numbers = #tpu.dot_dimension_numbers<[1], [0], [0], [1], [0, 0, 1, 1], [], []>} : vector<16x64xf32>, vector<64x32xf32>, vector<16x32xf32> -> vector<16x32xf32>
    %343 = arith.addf %304, %342 : vector<16x32xf32>
    %344 = vector.broadcast %183 : vector<1x32xf32> to vector<16x32xf32>
    %345 = arith.addf %343, %344 : vector<16x32xf32>
    %c0_111 = arith.constant 0 : index
    %c0_112 = arith.constant 0 : index
    %346 = vector.load %arg7[%c0_111, %c0_112] : memref<2x32xf32, #tpu.memory_space<vmem>>, vector<1x32xf32>
    %c1_113 = arith.constant 1 : index
    %c0_114 = arith.constant 0 : index
    %347 = vector.load %arg7[%c1_113, %c0_114] : memref<2x32xf32, #tpu.memory_space<vmem>>, vector<1x32xf32>
    %cst_115 = arith.constant dense<0.000000e+00> : vector<16xf32>
    %348 = vector.multi_reduction <add>, %345, %cst_115 [1] : vector<16x32xf32> to vector<16xf32>
    %349 = vector.shape_cast %348 : vector<16xf32> to vector<16x1xf32>
    %cst_116 = arith.constant 3.200000e+01 : f32
    %350 = vector.broadcast %cst_116 : f32 to vector<16x1xf32>
    %351 = arith.divf %349, %350 : vector<16x1xf32>
    %352 = vector.broadcast %351 : vector<16x1xf32> to vector<16x32xf32>
    %353 = arith.subf %345, %352 : vector<16x32xf32>
    %354 = arith.mulf %353, %353 : vector<16x32xf32>
    %cst_117 = arith.constant dense<0.000000e+00> : vector<16xf32>
    %355 = vector.multi_reduction <add>, %354, %cst_117 [1] : vector<16x32xf32> to vector<16xf32>
    %356 = vector.shape_cast %355 : vector<16xf32> to vector<16x1xf32>
    %cst_118 = arith.constant 3.200000e+01 : f32
    %357 = vector.broadcast %cst_118 : f32 to vector<16x1xf32>
    %358 = arith.divf %356, %357 : vector<16x1xf32>
    %359 = vector.broadcast %351 : vector<16x1xf32> to vector<16x32xf32>
    %360 = arith.subf %345, %359 : vector<16x32xf32>
    %cst_119 = arith.constant 9.99999974E-6 : f32
    %361 = vector.broadcast %cst_119 : f32 to vector<16x1xf32>
    %362 = arith.addf %358, %361 : vector<16x1xf32>
    %363 = math.rsqrt %362 : vector<16x1xf32>
    %364 = vector.broadcast %363 : vector<16x1xf32> to vector<16x32xf32>
    %365 = arith.mulf %360, %364 : vector<16x32xf32>
    %366 = vector.broadcast %346 : vector<1x32xf32> to vector<16x32xf32>
    %367 = arith.mulf %365, %366 : vector<16x32xf32>
    %368 = vector.broadcast %347 : vector<1x32xf32> to vector<16x32xf32>
    %369 = arith.addf %367, %368 : vector<16x32xf32>
    %c0_120 = arith.constant 0 : index
    %c0_121 = arith.constant 0 : index
    %370 = vector.load %arg8[%c0_120, %c0_121] : memref<16x32xf32, #tpu.memory_space<vmem>>, vector<16x32xf32>
    tpu.vector_store %arg8[%c0_120, %c0_121], %369 {strides = array<i32>} : memref<16x32xf32, #tpu.memory_space<vmem>>, vector<16x32xf32>,
    %371 = arith.mulf %369, %369 : vector<16x32xf32>
    %cst_122 = arith.constant dense<0.000000e+00> : vector<16xf32>
    %372 = vector.multi_reduction <add>, %371, %cst_122 [1] : vector<16x32xf32> to vector<16xf32>
    %373 = vector.shape_cast %372 : vector<16xf32> to vector<16x1xf32>
    %cst_123 = arith.constant 1.000000e+00 : f32
    %374 = vector.broadcast %cst_123 : f32 to vector<16x1xf32>
    %375 = arith.addf %374, %373 : vector<16x1xf32>
    %376 = math.sqrt %375 : vector<16x1xf32>
    %c0_124 = arith.constant 0 : index
    %c0_125 = arith.constant 0 : index
    %377 = vector.load %arg9[%c0_124, %c0_125] : memref<16x1xf32, #tpu.memory_space<vmem>>, vector<16x1xf32>
    tpu.vector_store %arg9[%c0_124, %c0_125], %376 {strides = array<i32>} : memref<16x1xf32, #tpu.memory_space<vmem>>, vector<16x1xf32>,
    return
  }
}

</mosaic_0001>

<llo_original>
// kernel: hyp_clip_text_transformer.1
$region0: #{hyp_clip_text_transformer.1}
  #allocation0 [shape = 'u32[]', space=smem, size = 0x4, offset = 0x4, fixed_abs, tag = 'smem constant byte address 0x4 - core index']
  #allocation1 [shape = 'u32[144,128]{1,0:T(1,128)}', space=vmem, size = 0x12000, scoped, tag = 'internal scratch']
  %s0 = inlined_call_operand.vmem [shape: f32[16,32], index: 0, kind: input, shape index: {}]
  %s1 = inlined_call_operand.vmem [shape: f32[16,16], index: 1, kind: input, shape index: {}]
  %s2 = inlined_call_operand.vmem [shape: f32[2,32,96], index: 2, kind: input, shape index: {}]
  %s3 = inlined_call_operand.vmem [shape: f32[2,32,32], index: 3, kind: input, shape index: {}]
  %s4 = inlined_call_operand.vmem [shape: f32[2,32,64], index: 4, kind: input, shape index: {}]
  %s5 = inlined_call_operand.vmem [shape: f32[2,64,32], index: 5, kind: input, shape index: {}]
  %s6 = inlined_call_operand.vmem [shape: f32[2,8,96], index: 6, kind: input, shape index: {}]
  %s7 = inlined_call_operand.vmem [shape: f32[2,32], index: 7, kind: input, shape index: {}]
  %s8 = inlined_call_operand.vmem [shape: f32[16,32], index: 8, kind: output, shape index: {0}]
  %s9 = inlined_call_operand.vmem [shape: f32[16,1], index: 9, kind: output, shape index: {1}]
  %10 = xla_tuple %s8, %s9
  %s11 = sld [smem:[#allocation0]]
  $region50: #{hyp_clip_text_transformer.1} parent=0
    _
  %s13 = ssub.s32 1, %s11
  %s14 = scalar_select 0, %s13, %s11
  // Predicated region
  $region2: #{hyp_clip_text_transformer.1} parent=0 // pred_check
    _
  $region3: #{hyp_clip_text_transformer.1} parent=0 // pred_check_branch
    %16 = sbr.rel (0) target = $region5
  $region4: #{hyp_clip_text_transformer.1} parent=0 // pred_region
    _
  $region5: #{hyp_clip_text_transformer.1} parent=0 // pred_fallthru
    _
  // Predicated region
  $region6: #{hyp_clip_text_transformer.1} parent=0 // pred_check
    _
  $region7: #{hyp_clip_text_transformer.1} parent=0 // pred_check_branch
    %18 = sbr.rel (0) target = $region9
  $region8: #{hyp_clip_text_transformer.1} parent=0 // pred_region
    _
  $region9: #{hyp_clip_text_transformer.1} parent=0 // pred_fallthru
    _
  // Predicated region
  $region10: #{hyp_clip_text_transformer.1} parent=0 // pred_check
    _
  $region11: #{hyp_clip_text_transformer.1} parent=0 // pred_check_branch
    %20 = sbr.rel (0) target = $region13
  $region12: #{hyp_clip_text_transformer.1} parent=0 // pred_region
    _
  $region13: #{hyp_clip_text_transformer.1} parent=0 // pred_fallthru
    _
  // Predicated region
  $region14: #{hyp_clip_text_transformer.1} parent=0 // pred_check
    _
  $region15: #{hyp_clip_text_transformer.1} parent=0 // pred_check_branch
    %22 = sbr.rel (0) target = $region17
  $region16: #{hyp_clip_text_transformer.1} parent=0 // pred_region
    _
  $region17: #{hyp_clip_text_transformer.1} parent=0 // pred_fallthru
    _
  // Predicated region
  $region18: #{hyp_clip_text_transformer.1} parent=0 // pred_check
    _
  $region19: #{hyp_clip_text_transformer.1} parent=0 // pred_check_branch
    %24 = sbr.rel (0) target = $region21
  $region20: #{hyp_clip_text_transformer.1} parent=0 // pred_region
    _
  $region21: #{hyp_clip_text_transformer.1} parent=0 // pred_fallthru
    _
  // Predicated region
  $region22: #{hyp_clip_text_transformer.1} parent=0 // pred_check
    _
  $region23: #{hyp_clip_text_transformer.1} parent=0 // pred_check_branch
    %26 = sbr.rel (0) target = $region25
  $region24: #{hyp_clip_text_transformer.1} parent=0 // pred_region
    _
  $region25: #{hyp_clip_text_transformer.1} parent=0 // pred_fallthru
    _
  // Predicated region
  $region26: #{hyp_clip_text_transformer.1} parent=0 // pred_check
    _
  $region27: #{hyp_clip_text_transformer.1} parent=0 // pred_check_branch
    %28 = sbr.rel (0) target = $region29
  $region28: #{hyp_clip_text_transformer.1} parent=0 // pred_region
    _
  $region29: #{hyp_clip_text_transformer.1} parent=0 // pred_fallthru
    _
  // Predicated region
  $region30: #{hyp_clip_text_transformer.1} parent=0 // pred_check
    _
  $region31: #{hyp_clip_text_transformer.1} parent=0 // pred_check_branch
    %30 = sbr.rel (0) target = $region33
  $region32: #{hyp_clip_text_transformer.1} parent=0 // pred_region
    _
  $region33: #{hyp_clip_text_transformer.1} parent=0 // pred_fallthru
    _
  %v31 = vld [vmem:[%s0] sm:$0xff]
  %v32 = vld [vmem:[%s0 + $0x8] sm:$0xff]
  %v33 = vld [vmem:[%s1] sm:$0xff]
  %v34 = vld [vmem:[%s1 + $0x8] sm:$0xff]
  %v35 = vld [vmem:[%s6] sm:$0xff]
  %vm36 = vcmask 261120
  %v37 = vsel %vm36, %v31, 0.0
  %38 = vadd.xlane.f32.xlu0 %v37
  %v39 = vpop.xlane.xlu0 %38
  %v40 = vsel %vm36, %v32, 0.0
  %41 = vadd.xlane.f32.xlu0 %v40
  %v42 = vpop.xlane.xlu0 %41
  %v43 = vrcp.pop 32.0
  %v44 = vmul.f32 %v39, %v43
  %v45 = vmul.f32 %v42, %v43
  %v46 = vsub.f32 %v31, %v44
  %v47 = vsub.f32 %v32, %v45
  %v48 = vmul.f32 %v46, %v46
  %v49 = vmul.f32 %v47, %v47
  %v50 = vsel %vm36, %v48, 0.0
  %51 = vadd.xlane.f32.xlu0 %v50
  %v52 = vpop.xlane.xlu0 %51
  %v53 = vsel %vm36, %v49, 0.0
  %54 = vadd.xlane.f32.xlu0 %v53
  %v55 = vpop.xlane.xlu0 %54
  %v56 = vmul.f32 %v52, %v43
  %v57 = vmul.f32 %v55, %v43
  %v58 = vadd.f32 %v56, 1e-05
  %v59 = vadd.f32 %v57, 1e-05
  %v60 = vrsqrt.pop %v58
  %v61 = vrsqrt.pop %v59
  %v62 = vmul.f32 %v46, %v60
  %v63 = vmul.f32 %v47, %v61
  %v64 = vlaneseq
  %v65 = vshrl.u32 %v64, 7
  %v66 = vsub.s32 2, %v65
  %v67 = vrot.slane %v35, %v66
  %v68 = vmul.f32 %v62, %v67
  %v69 = vmul.f32 %v63, %v67
  %v70 = vlaneseq
  %v71 = vshrl.u32 %v70, 7
  %v72 = vsub.s32 3, %v71
  %v73 = vrot.slane %v35, %v72
  %v74 = vadd.f32 %v68, %v73
  %v75 = vadd.f32 %v69, %v73
  %v76 = vld [vmem:[%s2] sm:$0xff]
  %v77 = vld [vmem:[%s2 + $0x8] sm:$0xff]
  %v78 = vld [vmem:[%s2 + $0x10] sm:$0xff]
  %v79 = vld [vmem:[%s2 + $0x18] sm:$0xff]
  %v80 = vlaneseq
  %v81 = vshrl.u32 %v80, 7
  %v82 = vsub.s32 0, %v81
  %v83 = vrot.slane %v35, %v82
  %v85 = vsel %vm36, %v74, 0
  %v88 = vsel %vm36, %v75, 0
  %90 = vmatprep.subr.mxu0 0.0
  %91 = vmatpush1.msra.mxu0 0.0
  %92 = vmatprep.subr.mxu0 0.0
  %93 = vmatpush1.msra.mxu0 0.0
  %94 = vmatprep.subr.mxu0 0.0
  %95 = vmatpush1.msra.mxu0 0.0
  %96 = vmatprep.subr.mxu0 0.0
  %97 = vmatpush1.msra.mxu0 0.0
  %98 = vmatprep.subr.mxu0 0.0
  %99 = vmatpush1.msra.mxu0 0.0
  %100 = vmatprep.subr.mxu0 0.0
  %101 = vmatpush1.msra.mxu0 0.0
  %102 = vmatprep.subr.mxu0 0.0
  %103 = vmatpush1.msra.mxu0 0.0
  %104 = vmatprep.subr.mxu0 0.0
  %105 = vmatpush1.msra.mxu0 0.0
  %106 = vmatprep.subr.mxu0 0.0
  %107 = vmatpush1.msra.mxu0 0.0
  %108 = vmatprep.subr.mxu0 0.0
  %109 = vmatpush1.msra.mxu0 0.0
  %110 = vmatprep.subr.mxu0 0.0
  %111 = vmatpush1.msra.mxu0 0.0
  %112 = vmatprep.subr.mxu0 0.0
  %113 = vmatpush1.msra.mxu0 0.0
  %114 = vmatprep.subr.mxu0 0.0
  %115 = vmatpush1.msra.mxu0 %v79
  %116 = vmatprep.subr.mxu0 0.0
  %117 = vmatpush1.msra.mxu0 %v78
  %118 = vmatprep.subr.mxu0 0.0
  %119 = vmatpush1.msra.mxu0 %v77
  %120 = vmatprep.subr.mxu0 0.0
  %121 = vmatpush1.msra.mxu0 %v76
  %122 = vmatprep.subr.mxu0 0.0
  %123 = vmatpush2.msra.mxu0 0.0
  %124 = vmatprep.subr.mxu0 0.0
  %125 = vmatpush2.msra.mxu0 0.0
  %126 = vmatprep.subr.mxu0 0.0
  %127 = vmatpush2.msra.mxu0 0.0
  %128 = vmatprep.subr.mxu0 0.0
  %129 = vmatpush2.msra.mxu0 0.0
  %130 = vmatprep.subr.mxu0 0.0
  %131 = vmatpush2.msra.mxu0 0.0
  %132 = vmatprep.subr.mxu0 0.0
  %133 = vmatpush2.msra.mxu0 0.0
  %134 = vmatprep.subr.mxu0 0.0
  %135 = vmatpush2.msra.mxu0 0.0
  %136 = vmatprep.subr.mxu0 0.0
  %137 = vmatpush2.msra.mxu0 0.0
  %138 = vmatprep.subr.mxu0 0.0
  %139 = vmatpush2.msra.mxu0 0.0
  %140 = vmatprep.subr.mxu0 0.0
  %141 = vmatpush2.msra.mxu0 0.0
  %142 = vmatprep.subr.mxu0 0.0
  %143 = vmatpush2.msra.mxu0 0.0
  %144 = vmatprep.subr.mxu0 0.0
  %145 = vmatpush2.msra.mxu0 0.0
  %146 = vmatprep.subr.mxu0 0.0
  %147 = vmatpush2.msra.mxu0 0.0
  %148 = vmatprep.subr.mxu0 0.0
  %149 = vmatpush2.msra.mxu0 0.0
  %150 = vmatprep.subr.mxu0 0.0
  %151 = vmatpush2.msra.mxu0 0.0
  %152 = vmatprep.subr.mxu0 0.0
  %153 = vmatpush2.msra.mxu0 0.0
  %154 = vmatprep.mubr.f32.mxu0 0.0
  %155 = vmatmul.mubr.f32.gmra.mxu0 %v85
  %v156 = vpop.f32.mrf.mxu0
  %v157 = vadd.f32 %v83, %v156
  %v158 = vpop.f32.mrf.mxu0
  %159 = vmatprep.mubr.f32.mxu0 0.0
  %160 = vmatmul.mubr.f32.gmra.mxu0 %v88
  %v161 = vpop.f32.mrf.mxu0
  %v162 = vadd.f32 %v83, %v161
  %v163 = vpop.f32.mrf.mxu0
  %164 = vdwg.mxu0
  %v165 = vld [vmem:[%s3] sm:$0xff]
  %v166 = vld [vmem:[%s3 + $0x8] sm:$0xff]
  %v167 = vld [vmem:[%s3 + $0x10] sm:$0xff]
  %v168 = vld [vmem:[%s3 + $0x18] sm:$0xff]
  %v169 = vmul.f32 %v157, 0.35355338
  %v170 = vmul.f32 %v162, 0.35355338
  %173 = vrot.lane.b32.xlu0 %v157, 96
  %v174 = vpop.permute.xlu0 %173
  %175 = vrot.lane.b32.xlu0 %v162, 96
  %v176 = vpop.permute.xlu0 %175
  %vm177 = vcmask 64512
  %v179 = vsel %vm177, %v169, 0
  %v182 = vsel %vm177, %v170, 0
  %v184 = vsel %vm177, %v174, 0
  %v186 = vsel %vm177, %v176, 0
  %188 = vmatprep.subr.mxu0 0.0
  %189 = vmatpush1.xpose.msra.mxu0 0.0
  %190 = vmatprep.subr.mxu0 0.0
  %191 = vmatpush1.xpose.msra.mxu0 0.0
  %192 = vmatprep.subr.mxu0 0.0
  %193 = vmatpush1.xpose.msra.mxu0 0.0
  %194 = vmatprep.subr.mxu0 0.0
  %195 = vmatpush1.xpose.msra.mxu0 0.0
  %196 = vmatprep.subr.mxu0 0.0
  %197 = vmatpush1.xpose.msra.mxu0 0.0
  %198 = vmatprep.subr.mxu0 0.0
  %199 = vmatpush1.xpose.msra.mxu0 0.0
  %200 = vmatprep.subr.mxu0 0.0
  %201 = vmatpush1.xpose.msra.mxu0 0.0
  %202 = vmatprep.subr.mxu0 0.0
  %203 = vmatpush1.xpose.msra.mxu0 0.0
  %204 = vmatprep.subr.mxu0 0.0
  %205 = vmatpush1.xpose.msra.mxu0 0.0
  %206 = vmatprep.subr.mxu0 0.0
  %207 = vmatpush1.xpose.msra.mxu0 0.0
  %208 = vmatprep.subr.mxu0 0.0
  %209 = vmatpush1.xpose.msra.mxu0 0.0
  %210 = vmatprep.subr.mxu0 0.0
  %211 = vmatpush1.xpose.msra.mxu0 0.0
  %212 = vmatprep.subr.mxu0 0.0
  %213 = vmatpush1.xpose.msra.mxu0 0.0
  %214 = vmatprep.subr.mxu0 0.0
  %215 = vmatpush1.xpose.msra.mxu0 0.0
  %216 = vmatprep.subr.mxu0 0.0
  %217 = vmatpush1.xpose.msra.mxu0 %v186
  %218 = vmatprep.subr.mxu0 0.0
  %219 = vmatpush1.xpose.msra.mxu0 %v184
  %220 = vmatprep.subr.mxu0 0.0
  %221 = vmatpush2.xpose.msra.mxu0 0.0
  %222 = vmatprep.subr.mxu0 0.0
  %223 = vmatpush2.xpose.msra.mxu0 0.0
  %224 = vmatprep.subr.mxu0 0.0
  %225 = vmatpush2.xpose.msra.mxu0 0.0
  %226 = vmatprep.subr.mxu0 0.0
  %227 = vmatpush2.xpose.msra.mxu0 0.0
  %228 = vmatprep.subr.mxu0 0.0
  %229 = vmatpush2.xpose.msra.mxu0 0.0
  %230 = vmatprep.subr.mxu0 0.0
  %231 = vmatpush2.xpose.msra.mxu0 0.0
  %232 = vmatprep.subr.mxu0 0.0
  %233 = vmatpush2.xpose.msra.mxu0 0.0
  %234 = vmatprep.subr.mxu0 0.0
  %235 = vmatpush2.xpose.msra.mxu0 0.0
  %236 = vmatprep.subr.mxu0 0.0
  %237 = vmatpush2.xpose.msra.mxu0 0.0
  %238 = vmatprep.subr.mxu0 0.0
  %239 = vmatpush2.xpose.msra.mxu0 0.0
  %240 = vmatprep.subr.mxu0 0.0
  %241 = vmatpush2.xpose.msra.mxu0 0.0
  %242 = vmatprep.subr.mxu0 0.0
  %243 = vmatpush2.xpose.msra.mxu0 0.0
  %244 = vmatprep.subr.mxu0 0.0
  %245 = vmatpush2.xpose.msra.mxu0 0.0
  %246 = vmatprep.subr.mxu0 0.0
  %247 = vmatpush2.xpose.msra.mxu0 0.0
  %248 = vmatprep.subr.mxu0 0.0
  %249 = vmatpush2.xpose.msra.mxu0 0.0
  %250 = vmatprep.subr.mxu0 0.0
  %251 = vmatpush2.xpose.msra.mxu0 0.0
  %252 = vmatprep.mubr.f32.mxu0 0.0
  %253 = vmatmul.mubr.f32.gmra.mxu0 %v179
  %v254 = vpop.f32.mrf.mxu0
  %v255 = vadd.f32 %v33, %v254
  %v256 = vpop.f32.mrf.mxu0
  %257 = vmatprep.mubr.f32.mxu0 0.0
  %258 = vmatmul.mubr.f32.gmra.mxu0 %v182
  %v259 = vpop.f32.mrf.mxu0
  %v260 = vadd.f32 %v34, %v259
  %v261 = vpop.f32.mrf.mxu0
  %262 = vdwg.mxu0
  %vm263 = vcmask 130048
  %v264 = vsel %vm263, %v255, -inf
  %265 = vmax.xlane.f32.xlu0 %v264
  %v266 = vpop.xlane.xlu0 %265
  %v267 = vsel %vm263, %v260, -inf
  %268 = vmax.xlane.f32.xlu0 %v267
  %v269 = vpop.xlane.xlu0 %268
  %v270 = vsub.f32 %v255, %v266
  %v271 = vsub.f32 %v260, %v269
  %v272 = vmul.f32 %v270, 1.442695
  %v273 = vpow.pop %v272
  %v274 = vmul.f32 %v271, 1.442695
  %v275 = vpow.pop %v274
  %v276 = vsel %vm263, %v273, 0.0
  %277 = vadd.xlane.f32.xlu0 %v276
  %v278 = vpop.xlane.xlu0 %277
  %v279 = vsel %vm263, %v275, 0.0
  %280 = vadd.xlane.f32.xlu0 %v279
  %v281 = vpop.xlane.xlu0 %280
  %v282 = vrcp.pop %v278
  %v283 = vrcp.pop %v281
  %v284 = vmul.f32 %v273, %v282
  %v285 = vmul.f32 %v275, %v283
  %286 = vrot.lane.b32.xlu0 %v157, 64
  %v287 = vpop.permute.xlu0 %286
  %288 = vrot.lane.b32.xlu0 %v162, 64
  %v289 = vpop.permute.xlu0 %288
  %v293 = vsel %vm263, %v284, 0
  %v296 = vsel %vm263, %v285, 0
  %298 = vmatprep.subr.mxu0 0.0
  %299 = vmatpush1.msra.mxu0 0.0
  %300 = vmatprep.subr.mxu0 0.0
  %301 = vmatpush1.msra.mxu0 0.0
  %302 = vmatprep.subr.mxu0 0.0
  %303 = vmatpush1.msra.mxu0 0.0
  %304 = vmatprep.subr.mxu0 0.0
  %305 = vmatpush1.msra.mxu0 0.0
  %306 = vmatprep.subr.mxu0 0.0
  %307 = vmatpush1.msra.mxu0 0.0
  %308 = vmatprep.subr.mxu0 0.0
  %309 = vmatpush1.msra.mxu0 0.0
  %310 = vmatprep.subr.mxu0 0.0
  %311 = vmatpush1.msra.mxu0 0.0
  %312 = vmatprep.subr.mxu0 0.0
  %313 = vmatpush1.msra.mxu0 0.0
  %314 = vmatprep.subr.mxu0 0.0
  %315 = vmatpush1.msra.mxu0 0.0
  %316 = vmatprep.subr.mxu0 0.0
  %317 = vmatpush1.msra.mxu0 0.0
  %318 = vmatprep.subr.mxu0 0.0
  %319 = vmatpush1.msra.mxu0 0.0
  %320 = vmatprep.subr.mxu0 0.0
  %321 = vmatpush1.msra.mxu0 0.0
  %322 = vmatprep.subr.mxu0 0.0
  %323 = vmatpush1.msra.mxu0 0.0
  %324 = vmatprep.subr.mxu0 0.0
  %325 = vmatpush1.msra.mxu0 0.0
  %326 = vmatprep.subr.mxu0 0.0
  %327 = vmatpush1.msra.mxu0 %v289
  %328 = vmatprep.subr.mxu0 0.0
  %329 = vmatpush1.msra.mxu0 %v287
  %330 = vmatprep.subr.mxu0 0.0
  %331 = vmatpush2.msra.mxu0 0.0
  %332 = vmatprep.subr.mxu0 0.0
  %333 = vmatpush2.msra.mxu0 0.0
  %334 = vmatprep.subr.mxu0 0.0
  %335 = vmatpush2.msra.mxu0 0.0
  %336 = vmatprep.subr.mxu0 0.0
  %337 = vmatpush2.msra.mxu0 0.0
  %338 = vmatprep.subr.mxu0 0.0
  %339 = vmatpush2.msra.mxu0 0.0
  %340 = vmatprep.subr.mxu0 0.0
  %341 = vmatpush2.msra.mxu0 0.0
  %342 = vmatprep.subr.mxu0 0.0
  %343 = vmatpush2.msra.mxu0 0.0
  %344 = vmatprep.subr.mxu0 0.0
  %345 = vmatpush2.msra.mxu0 0.0
  %346 = vmatprep.subr.mxu0 0.0
  %347 = vmatpush2.msra.mxu0 0.0
  %348 = vmatprep.subr.mxu0 0.0
  %349 = vmatpush2.msra.mxu0 0.0
  %350 = vmatprep.subr.mxu0 0.0
  %351 = vmatpush2.msra.mxu0 0.0
  %352 = vmatprep.subr.mxu0 0.0
  %353 = vmatpush2.msra.mxu0 0.0
  %354 = vmatprep.subr.mxu0 0.0
  %355 = vmatpush2.msra.mxu0 0.0
  %356 = vmatprep.subr.mxu0 0.0
  %357 = vmatpush2.msra.mxu0 0.0
  %358 = vmatprep.subr.mxu0 0.0
  %359 = vmatpush2.msra.mxu0 0.0
  %360 = vmatprep.subr.mxu0 0.0
  %361 = vmatpush2.msra.mxu0 0.0
  %362 = vmatprep.mubr.f32.mxu0 0.0
  %363 = vmatmul.mubr.f32.gmra.mxu0 %v293
  %v364 = vpop.f32.mrf.mxu0
  %v365 = vadd.f32 0.0, %v364
  %v366 = vpop.f32.mrf.mxu0
  %367 = vmatprep.mubr.f32.mxu0 0.0
  %368 = vmatmul.mubr.f32.gmra.mxu0 %v296
  %v369 = vpop.f32.mrf.mxu0
  %v370 = vadd.f32 0.0, %v369
  %v371 = vpop.f32.mrf.mxu0
  %372 = vdwg.mxu0
  %373 = vrot.lane.b32.xlu0 %v169, 120
  %v374 = vpop.permute.xlu0 %373
  %375 = vrot.lane.b32.xlu0 %v170, 120
  %v376 = vpop.permute.xlu0 %375
  %377 = vrot.lane.b32.xlu0 %v157, 88
  %v378 = vpop.permute.xlu0 %377
  %379 = vrot.lane.b32.xlu0 %v162, 88
  %v380 = vpop.permute.xlu0 %379
  %v381 = vsel %vm177, %v374, 0
  %v383 = vsel %vm177, %v376, 0
  %v385 = vsel %vm177, %v378, 0
  %v387 = vsel %vm177, %v380, 0
  %389 = vmatprep.subr.mxu0 0.0
  %390 = vmatpush1.xpose.msra.mxu0 0.0
  %391 = vmatprep.subr.mxu0 0.0
  %392 = vmatpush1.xpose.msra.mxu0 0.0
  %393 = vmatprep.subr.mxu0 0.0
  %394 = vmatpush1.xpose.msra.mxu0 0.0
  %395 = vmatprep.subr.mxu0 0.0
  %396 = vmatpush1.xpose.msra.mxu0 0.0
  %397 = vmatprep.subr.mxu0 0.0
  %398 = vmatpush1.xpose.msra.mxu0 0.0
  %399 = vmatprep.subr.mxu0 0.0
  %400 = vmatpush1.xpose.msra.mxu0 0.0
  %401 = vmatprep.subr.mxu0 0.0
  %402 = vmatpush1.xpose.msra.mxu0 0.0
  %403 = vmatprep.subr.mxu0 0.0
  %404 = vmatpush1.xpose.msra.mxu0 0.0
  %405 = vmatprep.subr.mxu0 0.0
  %406 = vmatpush1.xpose.msra.mxu0 0.0
  %407 = vmatprep.subr.mxu0 0.0
  %408 = vmatpush1.xpose.msra.mxu0 0.0
  %409 = vmatprep.subr.mxu0 0.0
  %410 = vmatpush1.xpose.msra.mxu0 0.0
  %411 = vmatprep.subr.mxu0 0.0
  %412 = vmatpush1.xpose.msra.mxu0 0.0
  %413 = vmatprep.subr.mxu0 0.0
  %414 = vmatpush1.xpose.msra.mxu0 0.0
  %415 = vmatprep.subr.mxu0 0.0
  %416 = vmatpush1.xpose.msra.mxu0 0.0
  %417 = vmatprep.subr.mxu0 0.0
  %418 = vmatpush1.xpose.msra.mxu0 %v387
  %419 = vmatprep.subr.mxu0 0.0
  %420 = vmatpush1.xpose.msra.mxu0 %v385
  %421 = vmatprep.subr.mxu0 0.0
  %422 = vmatpush2.xpose.msra.mxu0 0.0
  %423 = vmatprep.subr.mxu0 0.0
  %424 = vmatpush2.xpose.msra.mxu0 0.0
  %425 = vmatprep.subr.mxu0 0.0
  %426 = vmatpush2.xpose.msra.mxu0 0.0
  %427 = vmatprep.subr.mxu0 0.0
  %428 = vmatpush2.xpose.msra.mxu0 0.0
  %429 = vmatprep.subr.mxu0 0.0
  %430 = vmatpush2.xpose.msra.mxu0 0.0
  %431 = vmatprep.subr.mxu0 0.0
  %432 = vmatpush2.xpose.msra.mxu0 0.0
  %433 = vmatprep.subr.mxu0 0.0
  %434 = vmatpush2.xpose.msra.mxu0 0.0
  %435 = vmatprep.subr.mxu0 0.0
  %436 = vmatpush2.xpose.msra.mxu0 0.0
  %437 = vmatprep.subr.mxu0 0.0
  %438 = vmatpush2.xpose.msra.mxu0 0.0
  %439 = vmatprep.subr.mxu0 0.0
  %440 = vmatpush2.xpose.msra.mxu0 0.0
  %441 = vmatprep.subr.mxu0 0.0
  %442 = vmatpush2.xpose.msra.mxu0 0.0
  %443 = vmatprep.subr.mxu0 0.0
  %444 = vmatpush2.xpose.msra.mxu0 0.0
  %445 = vmatprep.subr.mxu0 0.0
  %446 = vmatpush2.xpose.msra.mxu0 0.0
  %447 = vmatprep.subr.mxu0 0.0
  %448 = vmatpush2.xpose.msra.mxu0 0.0
  %449 = vmatprep.subr.mxu0 0.0
  %450 = vmatpush2.xpose.msra.mxu0 0.0
  %451 = vmatprep.subr.mxu0 0.0
  %452 = vmatpush2.xpose.msra.mxu0 0.0
  %453 = vmatprep.mubr.f32.mxu0 0.0
  %454 = vmatmul.mubr.f32.gmra.mxu0 %v381
  %v455 = vpop.f32.mrf.mxu0
  %v456 = vadd.f32 %v33, %v455
  %v457 = vpop.f32.mrf.mxu0
  %458 = vmatprep.mubr.f32.mxu0 0.0
  %459 = vmatmul.mubr.f32.gmra.mxu0 %v383
  %v460 = vpop.f32.mrf.mxu0
  %v461 = vadd.f32 %v34, %v460
  %v462 = vpop.f32.mrf.mxu0
  %463 = vdwg.mxu0
  %v464 = vsel %vm263, %v456, -inf
  %465 = vmax.xlane.f32.xlu0 %v464
  %v466 = vpop.xlane.xlu0 %465
  %v467 = vsel %vm263, %v461, -inf
  %468 = vmax.xlane.f32.xlu0 %v467
  %v469 = vpop.xlane.xlu0 %468
  %v470 = vsub.f32 %v456, %v466
  %v471 = vsub.f32 %v461, %v469
  %v472 = vmul.f32 %v470, 1.442695
  %v473 = vpow.pop %v472
  %v474 = vmul.f32 %v471, 1.442695
  %v475 = vpow.pop %v474
  %v476 = vsel %vm263, %v473, 0.0
  %477 = vadd.xlane.f32.xlu0 %v476
  %v478 = vpop.xlane.xlu0 %477
  %v479 = vsel %vm263, %v475, 0.0
  %480 = vadd.xlane.f32.xlu0 %v479
  %v481 = vpop.xlane.xlu0 %480
  %v482 = vrcp.pop %v478
  %v483 = vrcp.pop %v481
  %v484 = vmul.f32 %v473, %v482
  %v485 = vmul.f32 %v475, %v483
  %486 = vrot.lane.b32.xlu0 %v157, 56
  %v487 = vpop.permute.xlu0 %486
  %488 = vrot.lane.b32.xlu0 %v162, 56
  %v489 = vpop.permute.xlu0 %488
  %v493 = vsel %vm263, %v484, 0
  %v496 = vsel %vm263, %v485, 0
  %498 = vmatprep.subr.mxu0 0.0
  %499 = vmatpush1.msra.mxu0 0.0
  %500 = vmatprep.subr.mxu0 0.0
  %501 = vmatpush1.msra.mxu0 0.0
  %502 = vmatprep.subr.mxu0 0.0
  %503 = vmatpush1.msra.mxu0 0.0
  %504 = vmatprep.subr.mxu0 0.0
  %505 = vmatpush1.msra.mxu0 0.0
  %506 = vmatprep.subr.mxu0 0.0
  %507 = vmatpush1.msra.mxu0 0.0
  %508 = vmatprep.subr.mxu0 0.0
  %509 = vmatpush1.msra.mxu0 0.0
  %510 = vmatprep.subr.mxu0 0.0
  %511 = vmatpush1.msra.mxu0 0.0
  %512 = vmatprep.subr.mxu0 0.0
  %513 = vmatpush1.msra.mxu0 0.0
  %514 = vmatprep.subr.mxu0 0.0
  %515 = vmatpush1.msra.mxu0 0.0
  %516 = vmatprep.subr.mxu0 0.0
  %517 = vmatpush1.msra.mxu0 0.0
  %518 = vmatprep.subr.mxu0 0.0
  %519 = vmatpush1.msra.mxu0 0.0
  %520 = vmatprep.subr.mxu0 0.0
  %521 = vmatpush1.msra.mxu0 0.0
  %522 = vmatprep.subr.mxu0 0.0
  %523 = vmatpush1.msra.mxu0 0.0
  %524 = vmatprep.subr.mxu0 0.0
  %525 = vmatpush1.msra.mxu0 0.0
  %526 = vmatprep.subr.mxu0 0.0
  %527 = vmatpush1.msra.mxu0 %v489
  %528 = vmatprep.subr.mxu0 0.0
  %529 = vmatpush1.msra.mxu0 %v487
  %530 = vmatprep.subr.mxu0 0.0
  %531 = vmatpush2.msra.mxu0 0.0
  %532 = vmatprep.subr.mxu0 0.0
  %533 = vmatpush2.msra.mxu0 0.0
  %534 = vmatprep.subr.mxu0 0.0
  %535 = vmatpush2.msra.mxu0 0.0
  %536 = vmatprep.subr.mxu0 0.0
  %537 = vmatpush2.msra.mxu0 0.0
  %538 = vmatprep.subr.mxu0 0.0
  %539 = vmatpush2.msra.mxu0 0.0
  %540 = vmatprep.subr.mxu0 0.0
  %541 = vmatpush2.msra.mxu0 0.0
  %542 = vmatprep.subr.mxu0 0.0
  %543 = vmatpush2.msra.mxu0 0.0
  %544 = vmatprep.subr.mxu0 0.0
  %545 = vmatpush2.msra.mxu0 0.0
  %546 = vmatprep.subr.mxu0 0.0
  %547 = vmatpush2.msra.mxu0 0.0
  %548 = vmatprep.subr.mxu0 0.0
  %549 = vmatpush2.msra.mxu0 0.0
  %550 = vmatprep.subr.mxu0 0.0
  %551 = vmatpush2.msra.mxu0 0.0
  %552 = vmatprep.subr.mxu0 0.0
  %553 = vmatpush2.msra.mxu0 0.0
  %554 = vmatprep.subr.mxu0 0.0
  %555 = vmatpush2.msra.mxu0 0.0
  %556 = vmatprep.subr.mxu0 0.0
  %557 = vmatpush2.msra.mxu0 0.0
  %558 = vmatprep.subr.mxu0 0.0
  %559 = vmatpush2.msra.mxu0 0.0
  %560 = vmatprep.subr.mxu0 0.0
  %561 = vmatpush2.msra.mxu0 0.0
  %562 = vmatprep.mubr.f32.mxu0 0.0
  %563 = vmatmul.mubr.f32.gmra.mxu0 %v493
  %v564 = vpop.f32.mrf.mxu0
  %v565 = vadd.f32 0.0, %v564
  %v566 = vpop.f32.mrf.mxu0
  %567 = vmatprep.mubr.f32.mxu0 0.0
  %568 = vmatmul.mubr.f32.gmra.mxu0 %v496
  %v569 = vpop.f32.mrf.mxu0
  %v570 = vadd.f32 0.0, %v569
  %v571 = vpop.f32.mrf.mxu0
  %572 = vdwg.mxu0
  %v574 = vsel %vm177, %v565, 0
  %v577 = vsel %vm177, %v570, 0
  %579 = vmatprep.subr.mxu0 0.0
  %580 = vmatpush1.msra.mxu0 0.0
  %581 = vmatprep.subr.mxu0 0.0
  %582 = vmatpush1.msra.mxu0 0.0
  %583 = vmatprep.subr.mxu0 0.0
  %584 = vmatpush1.msra.mxu0 0.0
  %585 = vmatprep.subr.mxu0 0.0
  %586 = vmatpush1.msra.mxu0 0.0
  %587 = vmatprep.subr.mxu0 0.0
  %588 = vmatpush1.msra.mxu0 0.0
  %589 = vmatprep.subr.mxu0 0.0
  %590 = vmatpush1.msra.mxu0 0.0
  %591 = vmatprep.subr.mxu0 0.0
  %592 = vmatpush1.msra.mxu0 0.0
  %593 = vmatprep.subr.mxu0 0.0
  %594 = vmatpush1.msra.mxu0 0.0
  %595 = vmatprep.subr.mxu0 0.0
  %596 = vmatpush1.msra.mxu0 0.0
  %597 = vmatprep.subr.mxu0 0.0
  %598 = vmatpush1.msra.mxu0 0.0
  %599 = vmatprep.subr.mxu0 0.0
  %600 = vmatpush1.msra.mxu0 0.0
  %601 = vmatprep.subr.mxu0 0.0
  %602 = vmatpush1.msra.mxu0 0.0
  %603 = vmatprep.subr.mxu0 0.0
  %604 = vmatpush1.msra.mxu0 0.0
  %605 = vmatprep.subr.mxu0 0.0
  %606 = vmatpush1.msra.mxu0 0.0
  %607 = vmatprep.subr.mxu0 0.0
  %608 = vmatpush1.msra.mxu0 0.0
  %609 = vmatprep.subr.mxu0 0.0
  %610 = vmatpush1.msra.mxu0 %v166
  %611 = vmatprep.subr.mxu0 0.0
  %612 = vmatpush2.msra.mxu0 0.0
  %613 = vmatprep.subr.mxu0 0.0
  %614 = vmatpush2.msra.mxu0 0.0
  %615 = vmatprep.subr.mxu0 0.0
  %616 = vmatpush2.msra.mxu0 0.0
  %617 = vmatprep.subr.mxu0 0.0
  %618 = vmatpush2.msra.mxu0 0.0
  %619 = vmatprep.subr.mxu0 0.0
  %620 = vmatpush2.msra.mxu0 0.0
  %621 = vmatprep.subr.mxu0 0.0
  %622 = vmatpush2.msra.mxu0 0.0
  %623 = vmatprep.subr.mxu0 0.0
  %624 = vmatpush2.msra.mxu0 0.0
  %625 = vmatprep.subr.mxu0 0.0
  %626 = vmatpush2.msra.mxu0 0.0
  %627 = vmatprep.subr.mxu0 0.0
  %628 = vmatpush2.msra.mxu0 0.0
  %629 = vmatprep.subr.mxu0 0.0
  %630 = vmatpush2.msra.mxu0 0.0
  %631 = vmatprep.subr.mxu0 0.0
  %632 = vmatpush2.msra.mxu0 0.0
  %633 = vmatprep.subr.mxu0 0.0
  %634 = vmatpush2.msra.mxu0 0.0
  %635 = vmatprep.subr.mxu0 0.0
  %636 = vmatpush2.msra.mxu0 0.0
  %637 = vmatprep.subr.mxu0 0.0
  %638 = vmatpush2.msra.mxu0 0.0
  %639 = vmatprep.subr.mxu0 0.0
  %640 = vmatpush2.msra.mxu0 0.0
  %641 = vmatprep.subr.mxu0 0.0
  %642 = vmatpush2.msra.mxu0 0.0
  %643 = vmatprep.mubr.f32.mxu0 0.0
  %644 = vmatmul.mubr.f32.gmra.mxu0 %v574
  %v645 = vpop.f32.mrf.mxu0
  %v646 = vadd.f32 0.0, %v645
  %v647 = vpop.f32.mrf.mxu0
  %648 = vmatprep.mubr.f32.mxu0 0.0
  %649 = vmatmul.mubr.f32.gmra.mxu0 %v577
  %v650 = vpop.f32.mrf.mxu0
  %v651 = vadd.f32 0.0, %v650
  %v652 = vpop.f32.mrf.mxu0
  %653 = vdwg.mxu0
  %v655 = vsel %vm177, %v365, 0
  %v658 = vsel %vm177, %v370, 0
  %660 = vmatprep.subr.mxu0 0.0
  %661 = vmatpush1.msra.mxu0 0.0
  %662 = vmatprep.subr.mxu0 0.0
  %663 = vmatpush1.msra.mxu0 0.0
  %664 = vmatprep.subr.mxu0 0.0
  %665 = vmatpush1.msra.mxu0 0.0
  %666 = vmatprep.subr.mxu0 0.0
  %667 = vmatpush1.msra.mxu0 0.0
  %668 = vmatprep.subr.mxu0 0.0
  %669 = vmatpush1.msra.mxu0 0.0
  %670 = vmatprep.subr.mxu0 0.0
  %671 = vmatpush1.msra.mxu0 0.0
  %672 = vmatprep.subr.mxu0 0.0
  %673 = vmatpush1.msra.mxu0 0.0
  %674 = vmatprep.subr.mxu0 0.0
  %675 = vmatpush1.msra.mxu0 0.0
  %676 = vmatprep.subr.mxu0 0.0
  %677 = vmatpush1.msra.mxu0 0.0
  %678 = vmatprep.subr.mxu0 0.0
  %679 = vmatpush1.msra.mxu0 0.0
  %680 = vmatprep.subr.mxu0 0.0
  %681 = vmatpush1.msra.mxu0 0.0
  %682 = vmatprep.subr.mxu0 0.0
  %683 = vmatpush1.msra.mxu0 0.0
  %684 = vmatprep.subr.mxu0 0.0
  %685 = vmatpush1.msra.mxu0 0.0
  %686 = vmatprep.subr.mxu0 0.0
  %687 = vmatpush1.msra.mxu0 0.0
  %688 = vmatprep.subr.mxu0 0.0
  %689 = vmatpush1.msra.mxu0 0.0
  %690 = vmatprep.subr.mxu0 0.0
  %691 = vmatpush1.msra.mxu0 %v165
  %692 = vmatprep.subr.mxu0 0.0
  %693 = vmatpush2.msra.mxu0 0.0
  %694 = vmatprep.subr.mxu0 0.0
  %695 = vmatpush2.msra.mxu0 0.0
  %696 = vmatprep.subr.mxu0 0.0
  %697 = vmatpush2.msra.mxu0 0.0
  %698 = vmatprep.subr.mxu0 0.0
  %699 = vmatpush2.msra.mxu0 0.0
  %700 = vmatprep.subr.mxu0 0.0
  %701 = vmatpush2.msra.mxu0 0.0
  %702 = vmatprep.subr.mxu0 0.0
  %703 = vmatpush2.msra.mxu0 0.0
  %704 = vmatprep.subr.mxu0 0.0
  %705 = vmatpush2.msra.mxu0 0.0
  %706 = vmatprep.subr.mxu0 0.0
  %707 = vmatpush2.msra.mxu0 0.0
  %708 = vmatprep.subr.mxu0 0.0
  %709 = vmatpush2.msra.mxu0 0.0
  %710 = vmatprep.subr.mxu0 0.0
  %711 = vmatpush2.msra.mxu0 0.0
  %712 = vmatprep.subr.mxu0 0.0
  %713 = vmatpush2.msra.mxu0 0.0
  %714 = vmatprep.subr.mxu0 0.0
  %715 = vmatpush2.msra.mxu0 0.0
  %716 = vmatprep.subr.mxu0 0.0
  %717 = vmatpush2.msra.mxu0 0.0
  %718 = vmatprep.subr.mxu0 0.0
  %719 = vmatpush2.msra.mxu0 0.0
  %720 = vmatprep.subr.mxu0 0.0
  %721 = vmatpush2.msra.mxu0 0.0
  %722 = vmatprep.subr.mxu0 0.0
  %723 = vmatpush2.msra.mxu0 0.0
  %724 = vmatprep.mubr.f32.mxu0 0.0
  %725 = vmatmul.mubr.f32.gmra.mxu0 %v655
  %v726 = vpop.f32.mrf.mxu0
  %v727 = vadd.f32 %v646, %v726
  %v728 = vpop.f32.mrf.mxu0
  %729 = vmatprep.mubr.f32.mxu0 0.0
  %730 = vmatmul.mubr.f32.gmra.mxu0 %v658
  %v731 = vpop.f32.mrf.mxu0
  %v732 = vadd.f32 %v651, %v731
  %v733 = vpop.f32.mrf.mxu0
  %734 = vdwg.mxu0
  %735 = vrot.lane.b32.xlu0 %v169, 112
  %v736 = vpop.permute.xlu0 %735
  %737 = vrot.lane.b32.xlu0 %v170, 112
  %v738 = vpop.permute.xlu0 %737
  %739 = vrot.lane.b32.xlu0 %v157, 80
  %v740 = vpop.permute.xlu0 %739
  %741 = vrot.lane.b32.xlu0 %v162, 80
  %v742 = vpop.permute.xlu0 %741
  %v743 = vsel %vm177, %v736, 0
  %v745 = vsel %vm177, %v738, 0
  %v747 = vsel %vm177, %v740, 0
  %v749 = vsel %vm177, %v742, 0
  %751 = vmatprep.subr.mxu0 0.0
  %752 = vmatpush1.xpose.msra.mxu0 0.0
  %753 = vmatprep.subr.mxu0 0.0
  %754 = vmatpush1.xpose.msra.mxu0 0.0
  %755 = vmatprep.subr.mxu0 0.0
  %756 = vmatpush1.xpose.msra.mxu0 0.0
  %757 = vmatprep.subr.mxu0 0.0
  %758 = vmatpush1.xpose.msra.mxu0 0.0
  %759 = vmatprep.subr.mxu0 0.0
  %760 = vmatpush1.xpose.msra.mxu0 0.0
  %761 = vmatprep.subr.mxu0 0.0
  %762 = vmatpush1.xpose.msra.mxu0 0.0
  %763 = vmatprep.subr.mxu0 0.0
  %764 = vmatpush1.xpose.msra.mxu0 0.0
  %765 = vmatprep.subr.mxu0 0.0
  %766 = vmatpush1.xpose.msra.mxu0 0.0
  %767 = vmatprep.subr.mxu0 0.0
  %768 = vmatpush1.xpose.msra.mxu0 0.0
  %769 = vmatprep.subr.mxu0 0.0
  %770 = vmatpush1.xpose.msra.mxu0 0.0
  %771 = vmatprep.subr.mxu0 0.0
  %772 = vmatpush1.xpose.msra.mxu0 0.0
  %773 = vmatprep.subr.mxu0 0.0
  %774 = vmatpush1.xpose.msra.mxu0 0.0
  %775 = vmatprep.subr.mxu0 0.0
  %776 = vmatpush1.xpose.msra.mxu0 0.0
  %777 = vmatprep.subr.mxu0 0.0
  %778 = vmatpush1.xpose.msra.mxu0 0.0
  %779 = vmatprep.subr.mxu0 0.0
  %780 = vmatpush1.xpose.msra.mxu0 %v749
  %781 = vmatprep.subr.mxu0 0.0
  %782 = vmatpush1.xpose.msra.mxu0 %v747
  %783 = vmatprep.subr.mxu0 0.0
  %784 = vmatpush2.xpose.msra.mxu0 0.0
  %785 = vmatprep.subr.mxu0 0.0
  %786 = vmatpush2.xpose.msra.mxu0 0.0
  %787 = vmatprep.subr.mxu0 0.0
  %788 = vmatpush2.xpose.msra.mxu0 0.0
  %789 = vmatprep.subr.mxu0 0.0
  %790 = vmatpush2.xpose.msra.mxu0 0.0
  %791 = vmatprep.subr.mxu0 0.0
  %792 = vmatpush2.xpose.msra.mxu0 0.0
  %793 = vmatprep.subr.mxu0 0.0
  %794 = vmatpush2.xpose.msra.mxu0 0.0
  %795 = vmatprep.subr.mxu0 0.0
  %796 = vmatpush2.xpose.msra.mxu0 0.0
  %797 = vmatprep.subr.mxu0 0.0
  %798 = vmatpush2.xpose.msra.mxu0 0.0
  %799 = vmatprep.subr.mxu0 0.0
  %800 = vmatpush2.xpose.msra.mxu0 0.0
  %801 = vmatprep.subr.mxu0 0.0
  %802 = vmatpush2.xpose.msra.mxu0 0.0
  %803 = vmatprep.subr.mxu0 0.0
  %804 = vmatpush2.xpose.msra.mxu0 0.0
  %805 = vmatprep.subr.mxu0 0.0
  %806 = vmatpush2.xpose.msra.mxu0 0.0
  %807 = vmatprep.subr.mxu0 0.0
  %808 = vmatpush2.xpose.msra.mxu0 0.0
  %809 = vmatprep.subr.mxu0 0.0
  %810 = vmatpush2.xpose.msra.mxu0 0.0
  %811 = vmatprep.subr.mxu0 0.0
  %812 = vmatpush2.xpose.msra.mxu0 0.0
  %813 = vmatprep.subr.mxu0 0.0
  %814 = vmatpush2.xpose.msra.mxu0 0.0
  %815 = vmatprep.mubr.f32.mxu0 0.0
  %816 = vmatmul.mubr.f32.gmra.mxu0 %v743
  %v817 = vpop.f32.mrf.mxu0
  %v818 = vadd.f32 %v33, %v817
  %v819 = vpop.f32.mrf.mxu0
  %820 = vmatprep.mubr.f32.mxu0 0.0
  %821 = vmatmul.mubr.f32.gmra.mxu0 %v745
  %v822 = vpop.f32.mrf.mxu0
  %v823 = vadd.f32 %v34, %v822
  %v824 = vpop.f32.mrf.mxu0
  %825 = vdwg.mxu0
  %v826 = vsel %vm263, %v818, -inf
  %827 = vmax.xlane.f32.xlu0 %v826
  %v828 = vpop.xlane.xlu0 %827
  %v829 = vsel %vm263, %v823, -inf
  %830 = vmax.xlane.f32.xlu0 %v829
  %v831 = vpop.xlane.xlu0 %830
  %v832 = vsub.f32 %v818, %v828
  %v833 = vsub.f32 %v823, %v831
  %v834 = vmul.f32 %v832, 1.442695
  %v835 = vpow.pop %v834
  %v836 = vmul.f32 %v833, 1.442695
  %v837 = vpow.pop %v836
  %v838 = vsel %vm263, %v835, 0.0
  %839 = vadd.xlane.f32.xlu0 %v838
  %v840 = vpop.xlane.xlu0 %839
  %v841 = vsel %vm263, %v837, 0.0
  %842 = vadd.xlane.f32.xlu0 %v841
  %v843 = vpop.xlane.xlu0 %842
  %v844 = vrcp.pop %v840
  %v845 = vrcp.pop %v843
  %v846 = vmul.f32 %v835, %v844
  %v847 = vmul.f32 %v837, %v845
  %848 = vrot.lane.b32.xlu0 %v157, 48
  %v849 = vpop.permute.xlu0 %848
  %850 = vrot.lane.b32.xlu0 %v162, 48
  %v851 = vpop.permute.xlu0 %850
  %v855 = vsel %vm263, %v846, 0
  %v858 = vsel %vm263, %v847, 0
  %860 = vmatprep.subr.mxu0 0.0
  %861 = vmatpush1.msra.mxu0 0.0
  %862 = vmatprep.subr.mxu0 0.0
  %863 = vmatpush1.msra.mxu0 0.0
  %864 = vmatprep.subr.mxu0 0.0
  %865 = vmatpush1.msra.mxu0 0.0
  %866 = vmatprep.subr.mxu0 0.0
  %867 = vmatpush1.msra.mxu0 0.0
  %868 = vmatprep.subr.mxu0 0.0
  %869 = vmatpush1.msra.mxu0 0.0
  %870 = vmatprep.subr.mxu0 0.0
  %871 = vmatpush1.msra.mxu0 0.0
  %872 = vmatprep.subr.mxu0 0.0
  %873 = vmatpush1.msra.mxu0 0.0
  %874 = vmatprep.subr.mxu0 0.0
  %875 = vmatpush1.msra.mxu0 0.0
  %876 = vmatprep.subr.mxu0 0.0
  %877 = vmatpush1.msra.mxu0 0.0
  %878 = vmatprep.subr.mxu0 0.0
  %879 = vmatpush1.msra.mxu0 0.0
  %880 = vmatprep.subr.mxu0 0.0
  %881 = vmatpush1.msra.mxu0 0.0
  %882 = vmatprep.subr.mxu0 0.0
  %883 = vmatpush1.msra.mxu0 0.0
  %884 = vmatprep.subr.mxu0 0.0
  %885 = vmatpush1.msra.mxu0 0.0
  %886 = vmatprep.subr.mxu0 0.0
  %887 = vmatpush1.msra.mxu0 0.0
  %888 = vmatprep.subr.mxu0 0.0
  %889 = vmatpush1.msra.mxu0 %v851
  %890 = vmatprep.subr.mxu0 0.0
  %891 = vmatpush1.msra.mxu0 %v849
  %892 = vmatprep.subr.mxu0 0.0
  %893 = vmatpush2.msra.mxu0 0.0
  %894 = vmatprep.subr.mxu0 0.0
  %895 = vmatpush2.msra.mxu0 0.0
  %896 = vmatprep.subr.mxu0 0.0
  %897 = vmatpush2.msra.mxu0 0.0
  %898 = vmatprep.subr.mxu0 0.0
  %899 = vmatpush2.msra.mxu0 0.0
  %900 = vmatprep.subr.mxu0 0.0
  %901 = vmatpush2.msra.mxu0 0.0
  %902 = vmatprep.subr.mxu0 0.0
  %903 = vmatpush2.msra.mxu0 0.0
  %904 = vmatprep.subr.mxu0 0.0
  %905 = vmatpush2.msra.mxu0 0.0
  %906 = vmatprep.subr.mxu0 0.0
  %907 = vmatpush2.msra.mxu0 0.0
  %908 = vmatprep.subr.mxu0 0.0
  %909 = vmatpush2.msra.mxu0 0.0
  %910 = vmatprep.subr.mxu0 0.0
  %911 = vmatpush2.msra.mxu0 0.0
  %912 = vmatprep.subr.mxu0 0.0
  %913 = vmatpush2.msra.mxu0 0.0
  %914 = vmatprep.subr.mxu0 0.0
  %915 = vmatpush2.msra.mxu0 0.0
  %916 = vmatprep.subr.mxu0 0.0
  %917 = vmatpush2.msra.mxu0 0.0
  %918 = vmatprep.subr.mxu0 0.0
  %919 = vmatpush2.msra.mxu0 0.0
  %920 = vmatprep.subr.mxu0 0.0
  %921 = vmatpush2.msra.mxu0 0.0
  %922 = vmatprep.subr.mxu0 0.0
  %923 = vmatpush2.msra.mxu0 0.0
  %924 = vmatprep.mubr.f32.mxu0 0.0
  %925 = vmatmul.mubr.f32.gmra.mxu0 %v855
  %v926 = vpop.f32.mrf.mxu0
  %v927 = vadd.f32 0.0, %v926
  %v928 = vpop.f32.mrf.mxu0
  %929 = vmatprep.mubr.f32.mxu0 0.0
  %930 = vmatmul.mubr.f32.gmra.mxu0 %v858
  %v931 = vpop.f32.mrf.mxu0
  %v932 = vadd.f32 0.0, %v931
  %v933 = vpop.f32.mrf.mxu0
  %934 = vdwg.mxu0
  %v936 = vsel %vm177, %v927, 0
  %v939 = vsel %vm177, %v932, 0
  %941 = vmatprep.subr.mxu0 0.0
  %942 = vmatpush1.msra.mxu0 0.0
  %943 = vmatprep.subr.mxu0 0.0
  %944 = vmatpush1.msra.mxu0 0.0
  %945 = vmatprep.subr.mxu0 0.0
  %946 = vmatpush1.msra.mxu0 0.0
  %947 = vmatprep.subr.mxu0 0.0
  %948 = vmatpush1.msra.mxu0 0.0
  %949 = vmatprep.subr.mxu0 0.0
  %950 = vmatpush1.msra.mxu0 0.0
  %951 = vmatprep.subr.mxu0 0.0
  %952 = vmatpush1.msra.mxu0 0.0
  %953 = vmatprep.subr.mxu0 0.0
  %954 = vmatpush1.msra.mxu0 0.0
  %955 = vmatprep.subr.mxu0 0.0
  %956 = vmatpush1.msra.mxu0 0.0
  %957 = vmatprep.subr.mxu0 0.0
  %958 = vmatpush1.msra.mxu0 0.0
  %959 = vmatprep.subr.mxu0 0.0
  %960 = vmatpush1.msra.mxu0 0.0
  %961 = vmatprep.subr.mxu0 0.0
  %962 = vmatpush1.msra.mxu0 0.0
  %963 = vmatprep.subr.mxu0 0.0
  %964 = vmatpush1.msra.mxu0 0.0
  %965 = vmatprep.subr.mxu0 0.0
  %966 = vmatpush1.msra.mxu0 0.0
  %967 = vmatprep.subr.mxu0 0.0
  %968 = vmatpush1.msra.mxu0 0.0
  %969 = vmatprep.subr.mxu0 0.0
  %970 = vmatpush1.msra.mxu0 0.0
  %971 = vmatprep.subr.mxu0 0.0
  %972 = vmatpush1.msra.mxu0 %v167
  %973 = vmatprep.subr.mxu0 0.0
  %974 = vmatpush2.msra.mxu0 0.0
  %975 = vmatprep.subr.mxu0 0.0
  %976 = vmatpush2.msra.mxu0 0.0
  %977 = vmatprep.subr.mxu0 0.0
  %978 = vmatpush2.msra.mxu0 0.0
  %979 = vmatprep.subr.mxu0 0.0
  %980 = vmatpush2.msra.mxu0 0.0
  %981 = vmatprep.subr.mxu0 0.0
  %982 = vmatpush2.msra.mxu0 0.0
  %983 = vmatprep.subr.mxu0 0.0
  %984 = vmatpush2.msra.mxu0 0.0
  %985 = vmatprep.subr.mxu0 0.0
  %986 = vmatpush2.msra.mxu0 0.0
  %987 = vmatprep.subr.mxu0 0.0
  %988 = vmatpush2.msra.mxu0 0.0
  %989 = vmatprep.subr.mxu0 0.0
  %990 = vmatpush2.msra.mxu0 0.0
  %991 = vmatprep.subr.mxu0 0.0
  %992 = vmatpush2.msra.mxu0 0.0
  %993 = vmatprep.subr.mxu0 0.0
  %994 = vmatpush2.msra.mxu0 0.0
  %995 = vmatprep.subr.mxu0 0.0
  %996 = vmatpush2.msra.mxu0 0.0
  %997 = vmatprep.subr.mxu0 0.0
  %998 = vmatpush2.msra.mxu0 0.0
  %999 = vmatprep.subr.mxu0 0.0
  %1000 = vmatpush2.msra.mxu0 0.0
  %1001 = vmatprep.subr.mxu0 0.0
  %1002 = vmatpush2.msra.mxu0 0.0
  %1003 = vmatprep.subr.mxu0 0.0
  %1004 = vmatpush2.msra.mxu0 0.0
  %1005 = vmatprep.mubr.f32.mxu0 0.0
  %1006 = vmatmul.mubr.f32.gmra.mxu0 %v936
  %v1007 = vpop.f32.mrf.mxu0
  %v1008 = vadd.f32 0.0, %v1007
  %v1009 = vpop.f32.mrf.mxu0
  %1010 = vmatprep.mubr.f32.mxu0 0.0
  %1011 = vmatmul.mubr.f32.gmra.mxu0 %v939
  %v1012 = vpop.f32.mrf.mxu0
  %v1013 = vadd.f32 0.0, %v1012
  %v1014 = vpop.f32.mrf.mxu0
  %1015 = vdwg.mxu0
  %v1016 = vadd.f32 %v727, %v1008
  %v1017 = vadd.f32 %v732, %v1013
  %1018 = vrot.lane.b32.xlu0 %v169, 104
  %v1019 = vpop.permute.xlu0 %1018
  %1020 = vrot.lane.b32.xlu0 %v170, 104
  %v1021 = vpop.permute.xlu0 %1020
  %1022 = vrot.lane.b32.xlu0 %v157, 72
  %v1023 = vpop.permute.xlu0 %1022
  %1024 = vrot.lane.b32.xlu0 %v162, 72
  %v1025 = vpop.permute.xlu0 %1024
  %v1026 = vsel %vm177, %v1019, 0
  %v1028 = vsel %vm177, %v1021, 0
  %v1030 = vsel %vm177, %v1023, 0
  %v1032 = vsel %vm177, %v1025, 0
  %1034 = vmatprep.subr.mxu0 0.0
  %1035 = vmatpush1.xpose.msra.mxu0 0.0
  %1036 = vmatprep.subr.mxu0 0.0
  %1037 = vmatpush1.xpose.msra.mxu0 0.0
  %1038 = vmatprep.subr.mxu0 0.0
  %1039 = vmatpush1.xpose.msra.mxu0 0.0
  %1040 = vmatprep.subr.mxu0 0.0
  %1041 = vmatpush1.xpose.msra.mxu0 0.0
  %1042 = vmatprep.subr.mxu0 0.0
  %1043 = vmatpush1.xpose.msra.mxu0 0.0
  %1044 = vmatprep.subr.mxu0 0.0
  %1045 = vmatpush1.xpose.msra.mxu0 0.0
  %1046 = vmatprep.subr.mxu0 0.0
  %1047 = vmatpush1.xpose.msra.mxu0 0.0
  %1048 = vmatprep.subr.mxu0 0.0
  %1049 = vmatpush1.xpose.msra.mxu0 0.0
  %1050 = vmatprep.subr.mxu0 0.0
  %1051 = vmatpush1.xpose.msra.mxu0 0.0
  %1052 = vmatprep.subr.mxu0 0.0
  %1053 = vmatpush1.xpose.msra.mxu0 0.0
  %1054 = vmatprep.subr.mxu0 0.0
  %1055 = vmatpush1.xpose.msra.mxu0 0.0
  %1056 = vmatprep.subr.mxu0 0.0
  %1057 = vmatpush1.xpose.msra.mxu0 0.0
  %1058 = vmatprep.subr.mxu0 0.0
  %1059 = vmatpush1.xpose.msra.mxu0 0.0
  %1060 = vmatprep.subr.mxu0 0.0
  %1061 = vmatpush1.xpose.msra.mxu0 0.0
  %1062 = vmatprep.subr.mxu0 0.0
  %1063 = vmatpush1.xpose.msra.mxu0 %v1032
  %1064 = vmatprep.subr.mxu0 0.0
  %1065 = vmatpush1.xpose.msra.mxu0 %v1030
  %1066 = vmatprep.subr.mxu0 0.0
  %1067 = vmatpush2.xpose.msra.mxu0 0.0
  %1068 = vmatprep.subr.mxu0 0.0
  %1069 = vmatpush2.xpose.msra.mxu0 0.0
  %1070 = vmatprep.subr.mxu0 0.0
  %1071 = vmatpush2.xpose.msra.mxu0 0.0
  %1072 = vmatprep.subr.mxu0 0.0
  %1073 = vmatpush2.xpose.msra.mxu0 0.0
  %1074 = vmatprep.subr.mxu0 0.0
  %1075 = vmatpush2.xpose.msra.mxu0 0.0
  %1076 = vmatprep.subr.mxu0 0.0
  %1077 = vmatpush2.xpose.msra.mxu0 0.0
  %1078 = vmatprep.subr.mxu0 0.0
  %1079 = vmatpush2.xpose.msra.mxu0 0.0
  %1080 = vmatprep.subr.mxu0 0.0
  %1081 = vmatpush2.xpose.msra.mxu0 0.0
  %1082 = vmatprep.subr.mxu0 0.0
  %1083 = vmatpush2.xpose.msra.mxu0 0.0
  %1084 = vmatprep.subr.mxu0 0.0
  %1085 = vmatpush2.xpose.msra.mxu0 0.0
  %1086 = vmatprep.subr.mxu0 0.0
  %1087 = vmatpush2.xpose.msra.mxu0 0.0
  %1088 = vmatprep.subr.mxu0 0.0
  %1089 = vmatpush2.xpose.msra.mxu0 0.0
  %1090 = vmatprep.subr.mxu0 0.0
  %1091 = vmatpush2.xpose.msra.mxu0 0.0
  %1092 = vmatprep.subr.mxu0 0.0
  %1093 = vmatpush2.xpose.msra.mxu0 0.0
  %1094 = vmatprep.subr.mxu0 0.0
  %1095 = vmatpush2.xpose.msra.mxu0 0.0
  %1096 = vmatprep.subr.mxu0 0.0
  %1097 = vmatpush2.xpose.msra.mxu0 0.0
  %1098 = vmatprep.mubr.f32.mxu0 0.0
  %1099 = vmatmul.mubr.f32.gmra.mxu0 %v1026
  %v1100 = vpop.f32.mrf.mxu0
  %v1101 = vadd.f32 %v33, %v1100
  %v1102 = vpop.f32.mrf.mxu0
  %1103 = vmatprep.mubr.f32.mxu0 0.0
  %1104 = vmatmul.mubr.f32.gmra.mxu0 %v1028
  %v1105 = vpop.f32.mrf.mxu0
  %v1106 = vadd.f32 %v34, %v1105
  %v1107 = vpop.f32.mrf.mxu0
  %1108 = vdwg.mxu0
  %v1109 = vsel %vm263, %v1101, -inf
  %1110 = vmax.xlane.f32.xlu0 %v1109
  %v1111 = vpop.xlane.xlu0 %1110
  %v1112 = vsel %vm263, %v1106, -inf
  %1113 = vmax.xlane.f32.xlu0 %v1112
  %v1114 = vpop.xlane.xlu0 %1113
  %v1115 = vsub.f32 %v1101, %v1111
  %v1116 = vsub.f32 %v1106, %v1114
  %v1117 = vmul.f32 %v1115, 1.442695
  %v1118 = vpow.pop %v1117
  %v1119 = vmul.f32 %v1116, 1.442695
  %v1120 = vpow.pop %v1119
  %v1121 = vsel %vm263, %v1118, 0.0
  %1122 = vadd.xlane.f32.xlu0 %v1121
  %v1123 = vpop.xlane.xlu0 %1122
  %v1124 = vsel %vm263, %v1120, 0.0
  %1125 = vadd.xlane.f32.xlu0 %v1124
  %v1126 = vpop.xlane.xlu0 %1125
  %v1127 = vrcp.pop %v1123
  %v1128 = vrcp.pop %v1126
  %v1129 = vmul.f32 %v1118, %v1127
  %v1130 = vmul.f32 %v1120, %v1128
  %1131 = vrot.lane.b32.xlu0 %v157, 40
  %v1132 = vpop.permute.xlu0 %1131
  %1133 = vrot.lane.b32.xlu0 %v162, 40
  %v1134 = vpop.permute.xlu0 %1133
  %v1138 = vsel %vm263, %v1129, 0
  %v1141 = vsel %vm263, %v1130, 0
  %1143 = vmatprep.subr.mxu0 0.0
  %1144 = vmatpush1.msra.mxu0 0.0
  %1145 = vmatprep.subr.mxu0 0.0
  %1146 = vmatpush1.msra.mxu0 0.0
  %1147 = vmatprep.subr.mxu0 0.0
  %1148 = vmatpush1.msra.mxu0 0.0
  %1149 = vmatprep.subr.mxu0 0.0
  %1150 = vmatpush1.msra.mxu0 0.0
  %1151 = vmatprep.subr.mxu0 0.0
  %1152 = vmatpush1.msra.mxu0 0.0
  %1153 = vmatprep.subr.mxu0 0.0
  %1154 = vmatpush1.msra.mxu0 0.0
  %1155 = vmatprep.subr.mxu0 0.0
  %1156 = vmatpush1.msra.mxu0 0.0
  %1157 = vmatprep.subr.mxu0 0.0
  %1158 = vmatpush1.msra.mxu0 0.0
  %1159 = vmatprep.subr.mxu0 0.0
  %1160 = vmatpush1.msra.mxu0 0.0
  %1161 = vmatprep.subr.mxu0 0.0
  %1162 = vmatpush1.msra.mxu0 0.0
  %1163 = vmatprep.subr.mxu0 0.0
  %1164 = vmatpush1.msra.mxu0 0.0
  %1165 = vmatprep.subr.mxu0 0.0
  %1166 = vmatpush1.msra.mxu0 0.0
  %1167 = vmatprep.subr.mxu0 0.0
  %1168 = vmatpush1.msra.mxu0 0.0
  %1169 = vmatprep.subr.mxu0 0.0
  %1170 = vmatpush1.msra.mxu0 0.0
  %1171 = vmatprep.subr.mxu0 0.0
  %1172 = vmatpush1.msra.mxu0 %v1134
  %1173 = vmatprep.subr.mxu0 0.0
  %1174 = vmatpush1.msra.mxu0 %v1132
  %1175 = vmatprep.subr.mxu0 0.0
  %1176 = vmatpush2.msra.mxu0 0.0
  %1177 = vmatprep.subr.mxu0 0.0
  %1178 = vmatpush2.msra.mxu0 0.0
  %1179 = vmatprep.subr.mxu0 0.0
  %1180 = vmatpush2.msra.mxu0 0.0
  %1181 = vmatprep.subr.mxu0 0.0
  %1182 = vmatpush2.msra.mxu0 0.0
  %1183 = vmatprep.subr.mxu0 0.0
  %1184 = vmatpush2.msra.mxu0 0.0
  %1185 = vmatprep.subr.mxu0 0.0
  %1186 = vmatpush2.msra.mxu0 0.0
  %1187 = vmatprep.subr.mxu0 0.0
  %1188 = vmatpush2.msra.mxu0 0.0
  %1189 = vmatprep.subr.mxu0 0.0
  %1190 = vmatpush2.msra.mxu0 0.0
  %1191 = vmatprep.subr.mxu0 0.0
  %1192 = vmatpush2.msra.mxu0 0.0
  %1193 = vmatprep.subr.mxu0 0.0
  %1194 = vmatpush2.msra.mxu0 0.0
  %1195 = vmatprep.subr.mxu0 0.0
  %1196 = vmatpush2.msra.mxu0 0.0
  %1197 = vmatprep.subr.mxu0 0.0
  %1198 = vmatpush2.msra.mxu0 0.0
  %1199 = vmatprep.subr.mxu0 0.0
  %1200 = vmatpush2.msra.mxu0 0.0
  %1201 = vmatprep.subr.mxu0 0.0
  %1202 = vmatpush2.msra.mxu0 0.0
  %1203 = vmatprep.subr.mxu0 0.0
  %1204 = vmatpush2.msra.mxu0 0.0
  %1205 = vmatprep.subr.mxu0 0.0
  %1206 = vmatpush2.msra.mxu0 0.0
  %1207 = vmatprep.mubr.f32.mxu0 0.0
  %1208 = vmatmul.mubr.f32.gmra.mxu0 %v1138
  %v1209 = vpop.f32.mrf.mxu0
  %v1210 = vadd.f32 0.0, %v1209
  %v1211 = vpop.f32.mrf.mxu0
  %1212 = vmatprep.mubr.f32.mxu0 0.0
  %1213 = vmatmul.mubr.f32.gmra.mxu0 %v1141
  %v1214 = vpop.f32.mrf.mxu0
  %v1215 = vadd.f32 0.0, %v1214
  %v1216 = vpop.f32.mrf.mxu0
  %1217 = vdwg.mxu0
  %v1219 = vsel %vm177, %v1210, 0
  %v1222 = vsel %vm177, %v1215, 0
  %1224 = vmatprep.subr.mxu0 0.0
  %1225 = vmatpush1.msra.mxu0 0.0
  %1226 = vmatprep.subr.mxu0 0.0
  %1227 = vmatpush1.msra.mxu0 0.0
  %1228 = vmatprep.subr.mxu0 0.0
  %1229 = vmatpush1.msra.mxu0 0.0
  %1230 = vmatprep.subr.mxu0 0.0
  %1231 = vmatpush1.msra.mxu0 0.0
  %1232 = vmatprep.subr.mxu0 0.0
  %1233 = vmatpush1.msra.mxu0 0.0
  %1234 = vmatprep.subr.mxu0 0.0
  %1235 = vmatpush1.msra.mxu0 0.0
  %1236 = vmatprep.subr.mxu0 0.0
  %1237 = vmatpush1.msra.mxu0 0.0
  %1238 = vmatprep.subr.mxu0 0.0
  %1239 = vmatpush1.msra.mxu0 0.0
  %1240 = vmatprep.subr.mxu0 0.0
  %1241 = vmatpush1.msra.mxu0 0.0
  %1242 = vmatprep.subr.mxu0 0.0
  %1243 = vmatpush1.msra.mxu0 0.0
  %1244 = vmatprep.subr.mxu0 0.0
  %1245 = vmatpush1.msra.mxu0 0.0
  %1246 = vmatprep.subr.mxu0 0.0
  %1247 = vmatpush1.msra.mxu0 0.0
  %1248 = vmatprep.subr.mxu0 0.0
  %1249 = vmatpush1.msra.mxu0 0.0
  %1250 = vmatprep.subr.mxu0 0.0
  %1251 = vmatpush1.msra.mxu0 0.0
  %1252 = vmatprep.subr.mxu0 0.0
  %1253 = vmatpush1.msra.mxu0 0.0
  %1254 = vmatprep.subr.mxu0 0.0
  %1255 = vmatpush1.msra.mxu0 %v168
  %1256 = vmatprep.subr.mxu0 0.0
  %1257 = vmatpush2.msra.mxu0 0.0
  %1258 = vmatprep.subr.mxu0 0.0
  %1259 = vmatpush2.msra.mxu0 0.0
  %1260 = vmatprep.subr.mxu0 0.0
  %1261 = vmatpush2.msra.mxu0 0.0
  %1262 = vmatprep.subr.mxu0 0.0
  %1263 = vmatpush2.msra.mxu0 0.0
  %1264 = vmatprep.subr.mxu0 0.0
  %1265 = vmatpush2.msra.mxu0 0.0
  %1266 = vmatprep.subr.mxu0 0.0
  %1267 = vmatpush2.msra.mxu0 0.0
  %1268 = vmatprep.subr.mxu0 0.0
  %1269 = vmatpush2.msra.mxu0 0.0
  %1270 = vmatprep.subr.mxu0 0.0
  %1271 = vmatpush2.msra.mxu0 0.0
  %1272 = vmatprep.subr.mxu0 0.0
  %1273 = vmatpush2.msra.mxu0 0.0
  %1274 = vmatprep.subr.mxu0 0.0
  %1275 = vmatpush2.msra.mxu0 0.0
  %1276 = vmatprep.subr.mxu0 0.0
  %1277 = vmatpush2.msra.mxu0 0.0
  %1278 = vmatprep.subr.mxu0 0.0
  %1279 = vmatpush2.msra.mxu0 0.0
  %1280 = vmatprep.subr.mxu0 0.0
  %1281 = vmatpush2.msra.mxu0 0.0
  %1282 = vmatprep.subr.mxu0 0.0
  %1283 = vmatpush2.msra.mxu0 0.0
  %1284 = vmatprep.subr.mxu0 0.0
  %1285 = vmatpush2.msra.mxu0 0.0
  %1286 = vmatprep.subr.mxu0 0.0
  %1287 = vmatpush2.msra.mxu0 0.0
  %1288 = vmatprep.mubr.f32.mxu0 0.0
  %1289 = vmatmul.mubr.f32.gmra.mxu0 %v1219
  %v1290 = vpop.f32.mrf.mxu0
  %v1291 = vadd.f32 0.0, %v1290
  %v1292 = vpop.f32.mrf.mxu0
  %1293 = vmatprep.mubr.f32.mxu0 0.0
  %1294 = vmatmul.mubr.f32.gmra.mxu0 %v1222
  %v1295 = vpop.f32.mrf.mxu0
  %v1296 = vadd.f32 0.0, %v1295
  %v1297 = vpop.f32.mrf.mxu0
  %1298 = vdwg.mxu0
  %v1299 = vadd.f32 %v1016, %v1291
  %v1300 = vadd.f32 %v1017, %v1296
  %v1301 = vlaneseq
  %v1302 = vshrl.u32 %v1301, 7
  %v1303 = vsub.s32 4, %v1302
  %v1304 = vrot.slane %v35, %v1303
  %v1305 = vadd.f32 %v1299, %v1304
  %v1306 = vadd.f32 %v1300, %v1304
  %v1307 = vadd.f32 %v31, %v1305
  %v1308 = vadd.f32 %v32, %v1306
  %v1309 = vsel %vm36, %v1307, 0.0
  %1310 = vadd.xlane.f32.xlu0 %v1309
  %v1311 = vpop.xlane.xlu0 %1310
  %v1312 = vsel %vm36, %v1308, 0.0
  %1313 = vadd.xlane.f32.xlu0 %v1312
  %v1314 = vpop.xlane.xlu0 %1313
  %v1315 = vmul.f32 %v1311, %v43
  %v1316 = vmul.f32 %v1314, %v43
  %v1317 = vsub.f32 %v1307, %v1315
  %v1318 = vsub.f32 %v1308, %v1316
  %v1319 = vmul.f32 %v1317, %v1317
  %v1320 = vmul.f32 %v1318, %v1318
  %v1321 = vsel %vm36, %v1319, 0.0
  %1322 = vadd.xlane.f32.xlu0 %v1321
  %v1323 = vpop.xlane.xlu0 %1322
  %v1324 = vsel %vm36, %v1320, 0.0
  %1325 = vadd.xlane.f32.xlu0 %v1324
  %v1326 = vpop.xlane.xlu0 %1325
  %v1327 = vmul.f32 %v1323, %v43
  %v1328 = vmul.f32 %v1326, %v43
  %v1329 = vadd.f32 %v1327, 1e-05
  %v1330 = vadd.f32 %v1328, 1e-05
  %v1331 = vrsqrt.pop %v1329
  %v1332 = vrsqrt.pop %v1330
  %v1333 = vmul.f32 %v1317, %v1331
  %v1334 = vmul.f32 %v1318, %v1332
  %v1335 = vlaneseq
  %v1336 = vshrl.u32 %v1335, 7
  %v1337 = vsub.s32 5, %v1336
  %v1338 = vrot.slane %v35, %v1337
  %v1339 = vmul.f32 %v1333, %v1338
  %v1340 = vmul.f32 %v1334, %v1338
  %v1341 = vlaneseq
  %v1342 = vshrl.u32 %v1341, 7
  %v1343 = vsub.s32 6, %v1342
  %v1344 = vrot.slane %v35, %v1343
  %v1345 = vadd.f32 %v1339, %v1344
  %v1346 = vadd.f32 %v1340, %v1344
  %v1347 = vld [vmem:[%s4] sm:$0xff]
  %v1348 = vld [vmem:[%s4 + $0x8] sm:$0xff]
  %v1349 = vld [vmem:[%s4 + $0x10] sm:$0xff]
  %v1350 = vld [vmem:[%s4 + $0x18] sm:$0xff]
  %v1351 = vlaneseq
  %v1352 = vshrl.u32 %v1351, 7
  %v1353 = vsub.s32 1, %v1352
  %v1354 = vrot.slane %v35, %v1353
  %v1356 = vsel %vm36, %v1345, 0
  %v1359 = vsel %vm36, %v1346, 0
  %1361 = vmatprep.subr.mxu0 0.0
  %1362 = vmatpush1.msra.mxu0 0.0
  %1363 = vmatprep.subr.mxu0 0.0
  %1364 = vmatpush1.msra.mxu0 0.0
  %1365 = vmatprep.subr.mxu0 0.0
  %1366 = vmatpush1.msra.mxu0 0.0
  %1367 = vmatprep.subr.mxu0 0.0
  %1368 = vmatpush1.msra.mxu0 0.0
  %1369 = vmatprep.subr.mxu0 0.0
  %1370 = vmatpush1.msra.mxu0 0.0
  %1371 = vmatprep.subr.mxu0 0.0
  %1372 = vmatpush1.msra.mxu0 0.0
  %1373 = vmatprep.subr.mxu0 0.0
  %1374 = vmatpush1.msra.mxu0 0.0
  %1375 = vmatprep.subr.mxu0 0.0
  %1376 = vmatpush1.msra.mxu0 0.0
  %1377 = vmatprep.subr.mxu0 0.0
  %1378 = vmatpush1.msra.mxu0 0.0
  %1379 = vmatprep.subr.mxu0 0.0
  %1380 = vmatpush1.msra.mxu0 0.0
  %1381 = vmatprep.subr.mxu0 0.0
  %1382 = vmatpush1.msra.mxu0 0.0
  %1383 = vmatprep.subr.mxu0 0.0
  %1384 = vmatpush1.msra.mxu0 0.0
  %1385 = vmatprep.subr.mxu0 0.0
  %1386 = vmatpush1.msra.mxu0 %v1350
  %1387 = vmatprep.subr.mxu0 0.0
  %1388 = vmatpush1.msra.mxu0 %v1349
  %1389 = vmatprep.subr.mxu0 0.0
  %1390 = vmatpush1.msra.mxu0 %v1348
  %1391 = vmatprep.subr.mxu0 0.0
  %1392 = vmatpush1.msra.mxu0 %v1347
  %1393 = vmatprep.subr.mxu0 0.0
  %1394 = vmatpush2.msra.mxu0 0.0
  %1395 = vmatprep.subr.mxu0 0.0
  %1396 = vmatpush2.msra.mxu0 0.0
  %1397 = vmatprep.subr.mxu0 0.0
  %1398 = vmatpush2.msra.mxu0 0.0
  %1399 = vmatprep.subr.mxu0 0.0
  %1400 = vmatpush2.msra.mxu0 0.0
  %1401 = vmatprep.subr.mxu0 0.0
  %1402 = vmatpush2.msra.mxu0 0.0
  %1403 = vmatprep.subr.mxu0 0.0
  %1404 = vmatpush2.msra.mxu0 0.0
  %1405 = vmatprep.subr.mxu0 0.0
  %1406 = vmatpush2.msra.mxu0 0.0
  %1407 = vmatprep.subr.mxu0 0.0
  %1408 = vmatpush2.msra.mxu0 0.0
  %1409 = vmatprep.subr.mxu0 0.0
  %1410 = vmatpush2.msra.mxu0 0.0
  %1411 = vmatprep.subr.mxu0 0.0
  %1412 = vmatpush2.msra.mxu0 0.0
  %1413 = vmatprep.subr.mxu0 0.0
  %1414 = vmatpush2.msra.mxu0 0.0
  %1415 = vmatprep.subr.mxu0 0.0
  %1416 = vmatpush2.msra.mxu0 0.0
  %1417 = vmatprep.subr.mxu0 0.0
  %1418 = vmatpush2.msra.mxu0 0.0
  %1419 = vmatprep.subr.mxu0 0.0
  %1420 = vmatpush2.msra.mxu0 0.0
  %1421 = vmatprep.subr.mxu0 0.0
  %1422 = vmatpush2.msra.mxu0 0.0
  %1423 = vmatprep.subr.mxu0 0.0
  %1424 = vmatpush2.msra.mxu0 0.0
  %1425 = vmatprep.mubr.f32.mxu0 0.0
  %1426 = vmatmul.mubr.f32.gmra.mxu0 %v1356
  %v1427 = vpop.f32.mrf.mxu0
  %v1428 = vadd.f32 %v1354, %v1427
  %v1429 = vpop.f32.mrf.mxu0
  %1430 = vmatprep.mubr.f32.mxu0 0.0
  %1431 = vmatmul.mubr.f32.gmra.mxu0 %v1359
  %v1432 = vpop.f32.mrf.mxu0
  %v1433 = vadd.f32 %v1354, %v1432
  %v1434 = vpop.f32.mrf.mxu0
  %1435 = vdwg.mxu0
  %v1436 = vmul.f32 %v1428, 1.702
  %v1437 = vmul.f32 %v1433, 1.702
  %v1438 = vxor.u32 %v1436, 2147483648
  %v1439 = vxor.u32 %v1437, 2147483648
  %v1440 = vmul.f32 %v1438, 1.442695
  %v1441 = vpow.pop %v1440
  %v1442 = vmul.f32 %v1439, 1.442695
  %v1443 = vpow.pop %v1442
  %v1444 = vadd.f32 %v1441, 1.0
  %v1445 = vadd.f32 %v1443, 1.0
  %v1446 = vrcp.pop %v1444
  %v1447 = vmul.f32 1.0, %v1446
  %v1448 = vrcp.pop %v1445
  %v1449 = vmul.f32 1.0, %v1448
  %v1450 = vmul.f32 %v1428, %v1447
  %v1451 = vmul.f32 %v1433, %v1449
  %v1452 = vld [vmem:[%s5] sm:$0xff]
  %v1453 = vld [vmem:[%s5 + $0x8] sm:$0xff]
  %v1454 = vld [vmem:[%s5 + $0x10] sm:$0xff]
  %v1455 = vld [vmem:[%s5 + $0x18] sm:$0xff]
  %v1456 = vld [vmem:[%s5 + $0x20] sm:$0xff]
  %v1457 = vld [vmem:[%s5 + $0x28] sm:$0xff]
  %v1458 = vld [vmem:[%s5 + $0x30] sm:$0xff]
  %v1459 = vld [vmem:[%s5 + $0x38] sm:$0xff]
  %vm1460 = vcmask 523264
  %v1462 = vsel %vm1460, %v1450, 0
  %v1465 = vsel %vm1460, %v1451, 0
  %1467 = vmatprep.subr.mxu0 0.0
  %1468 = vmatpush1.msra.mxu0 0.0
  %1469 = vmatprep.subr.mxu0 0.0
  %1470 = vmatpush1.msra.mxu0 0.0
  %1471 = vmatprep.subr.mxu0 0.0
  %1472 = vmatpush1.msra.mxu0 0.0
  %1473 = vmatprep.subr.mxu0 0.0
  %1474 = vmatpush1.msra.mxu0 0.0
  %1475 = vmatprep.subr.mxu0 0.0
  %1476 = vmatpush1.msra.mxu0 0.0
  %1477 = vmatprep.subr.mxu0 0.0
  %1478 = vmatpush1.msra.mxu0 0.0
  %1479 = vmatprep.subr.mxu0 0.0
  %1480 = vmatpush1.msra.mxu0 0.0
  %1481 = vmatprep.subr.mxu0 0.0
  %1482 = vmatpush1.msra.mxu0 0.0
  %1483 = vmatprep.subr.mxu0 0.0
  %1484 = vmatpush1.msra.mxu0 %v1459
  %1485 = vmatprep.subr.mxu0 0.0
  %1486 = vmatpush1.msra.mxu0 %v1458
  %1487 = vmatprep.subr.mxu0 0.0
  %1488 = vmatpush1.msra.mxu0 %v1457
  %1489 = vmatprep.subr.mxu0 0.0
  %1490 = vmatpush1.msra.mxu0 %v1456
  %1491 = vmatprep.subr.mxu0 0.0
  %1492 = vmatpush1.msra.mxu0 %v1455
  %1493 = vmatprep.subr.mxu0 0.0
  %1494 = vmatpush1.msra.mxu0 %v1454
  %1495 = vmatprep.subr.mxu0 0.0
  %1496 = vmatpush1.msra.mxu0 %v1453
  %1497 = vmatprep.subr.mxu0 0.0
  %1498 = vmatpush1.msra.mxu0 %v1452
  %1499 = vmatprep.subr.mxu0 0.0
  %1500 = vmatpush2.msra.mxu0 0.0
  %1501 = vmatprep.subr.mxu0 0.0
  %1502 = vmatpush2.msra.mxu0 0.0
  %1503 = vmatprep.subr.mxu0 0.0
  %1504 = vmatpush2.msra.mxu0 0.0
  %1505 = vmatprep.subr.mxu0 0.0
  %1506 = vmatpush2.msra.mxu0 0.0
  %1507 = vmatprep.subr.mxu0 0.0
  %1508 = vmatpush2.msra.mxu0 0.0
  %1509 = vmatprep.subr.mxu0 0.0
  %1510 = vmatpush2.msra.mxu0 0.0
  %1511 = vmatprep.subr.mxu0 0.0
  %1512 = vmatpush2.msra.mxu0 0.0
  %1513 = vmatprep.subr.mxu0 0.0
  %1514 = vmatpush2.msra.mxu0 0.0
  %1515 = vmatprep.subr.mxu0 0.0
  %1516 = vmatpush2.msra.mxu0 0.0
  %1517 = vmatprep.subr.mxu0 0.0
  %1518 = vmatpush2.msra.mxu0 0.0
  %1519 = vmatprep.subr.mxu0 0.0
  %1520 = vmatpush2.msra.mxu0 0.0
  %1521 = vmatprep.subr.mxu0 0.0
  %1522 = vmatpush2.msra.mxu0 0.0
  %1523 = vmatprep.subr.mxu0 0.0
  %1524 = vmatpush2.msra.mxu0 0.0
  %1525 = vmatprep.subr.mxu0 0.0
  %1526 = vmatpush2.msra.mxu0 0.0
  %1527 = vmatprep.subr.mxu0 0.0
  %1528 = vmatpush2.msra.mxu0 0.0
  %1529 = vmatprep.subr.mxu0 0.0
  %1530 = vmatpush2.msra.mxu0 0.0
  %1531 = vmatprep.mubr.f32.mxu0 0.0
  %1532 = vmatmul.mubr.f32.gmra.mxu0 %v1462
  %v1533 = vpop.f32.mrf.mxu0
  %v1534 = vadd.f32 0.0, %v1533
  %v1535 = vpop.f32.mrf.mxu0
  %1536 = vmatprep.mubr.f32.mxu0 0.0
  %1537 = vmatmul.mubr.f32.gmra.mxu0 %v1465
  %v1538 = vpop.f32.mrf.mxu0
  %v1539 = vadd.f32 0.0, %v1538
  %v1540 = vpop.f32.mrf.mxu0
  %1541 = vdwg.mxu0
  %v1542 = vadd.f32 %v1307, %v1534
  %v1543 = vadd.f32 %v1308, %v1539
  %v1544 = vlaneseq
  %v1545 = vshrl.u32 %v1544, 7
  %v1546 = vsub.s32 7, %v1545
  %v1547 = vrot.slane %v35, %v1546
  %v1548 = vadd.f32 %v1542, %v1547
  %v1549 = vadd.f32 %v1543, %v1547
  %s1550 = scalar_lea.vmem %s6, 8
  %v1551 = vld [vmem:[%s1550] sm:$0xff]
  %v1552 = vsel %vm36, %v1548, 0.0
  %1553 = vadd.xlane.f32.xlu0 %v1552
  %v1554 = vpop.xlane.xlu0 %1553
  %v1555 = vsel %vm36, %v1549, 0.0
  %1556 = vadd.xlane.f32.xlu0 %v1555
  %v1557 = vpop.xlane.xlu0 %1556
  %v1558 = vmul.f32 %v1554, %v43
  %v1559 = vmul.f32 %v1557, %v43
  %v1560 = vsub.f32 %v1548, %v1558
  %v1561 = vsub.f32 %v1549, %v1559
  %v1562 = vmul.f32 %v1560, %v1560
  %v1563 = vmul.f32 %v1561, %v1561
  %v1564 = vsel %vm36, %v1562, 0.0
  %1565 = vadd.xlane.f32.xlu0 %v1564
  %v1566 = vpop.xlane.xlu0 %1565
  %v1567 = vsel %vm36, %v1563, 0.0
  %1568 = vadd.xlane.f32.xlu0 %v1567
  %v1569 = vpop.xlane.xlu0 %1568
  %v1570 = vmul.f32 %v1566, %v43
  %v1571 = vmul.f32 %v1569, %v43
  %v1572 = vadd.f32 %v1570, 1e-05
  %v1573 = vadd.f32 %v1571, 1e-05
  %v1574 = vrsqrt.pop %v1572
  %v1575 = vrsqrt.pop %v1573
  %v1576 = vmul.f32 %v1560, %v1574
  %v1577 = vmul.f32 %v1561, %v1575
  %v1578 = vlaneseq
  %v1579 = vshrl.u32 %v1578, 7
  %v1580 = vsub.s32 2, %v1579
  %v1581 = vrot.slane %v1551, %v1580
  %v1582 = vmul.f32 %v1576, %v1581
  %v1583 = vmul.f32 %v1577, %v1581
  %v1584 = vlaneseq
  %v1585 = vshrl.u32 %v1584, 7
  %v1586 = vsub.s32 3, %v1585
  %v1587 = vrot.slane %v1551, %v1586
  %v1588 = vadd.f32 %v1582, %v1587
  %v1589 = vadd.f32 %v1583, %v1587
  %s1590 = scalar_lea.vmem %s2, 32
  %v1591 = vld [vmem:[%s1590] sm:$0xff]
  %v1592 = vld [vmem:[%s1590 + $0x8] sm:$0xff]
  %v1593 = vld [vmem:[%s1590 + $0x10] sm:$0xff]
  %v1594 = vld [vmem:[%s1590 + $0x18] sm:$0xff]
  %v1595 = vlaneseq
  %v1596 = vshrl.u32 %v1595, 7
  %v1597 = vsub.s32 0, %v1596
  %v1598 = vrot.slane %v1551, %v1597
  %v1600 = vsel %vm36, %v1588, 0
  %v1603 = vsel %vm36, %v1589, 0
  %1605 = vmatprep.subr.mxu0 0.0
  %1606 = vmatpush1.msra.mxu0 0.0
  %1607 = vmatprep.subr.mxu0 0.0
  %1608 = vmatpush1.msra.mxu0 0.0
  %1609 = vmatprep.subr.mxu0 0.0
  %1610 = vmatpush1.msra.mxu0 0.0
  %1611 = vmatprep.subr.mxu0 0.0
  %1612 = vmatpush1.msra.mxu0 0.0
  %1613 = vmatprep.subr.mxu0 0.0
  %1614 = vmatpush1.msra.mxu0 0.0
  %1615 = vmatprep.subr.mxu0 0.0
  %1616 = vmatpush1.msra.mxu0 0.0
  %1617 = vmatprep.subr.mxu0 0.0
  %1618 = vmatpush1.msra.mxu0 0.0
  %1619 = vmatprep.subr.mxu0 0.0
  %1620 = vmatpush1.msra.mxu0 0.0
  %1621 = vmatprep.subr.mxu0 0.0
  %1622 = vmatpush1.msra.mxu0 0.0
  %1623 = vmatprep.subr.mxu0 0.0
  %1624 = vmatpush1.msra.mxu0 0.0
  %1625 = vmatprep.subr.mxu0 0.0
  %1626 = vmatpush1.msra.mxu0 0.0
  %1627 = vmatprep.subr.mxu0 0.0
  %1628 = vmatpush1.msra.mxu0 0.0
  %1629 = vmatprep.subr.mxu0 0.0
  %1630 = vmatpush1.msra.mxu0 %v1594
  %1631 = vmatprep.subr.mxu0 0.0
  %1632 = vmatpush1.msra.mxu0 %v1593
  %1633 = vmatprep.subr.mxu0 0.0
  %1634 = vmatpush1.msra.mxu0 %v1592
  %1635 = vmatprep.subr.mxu0 0.0
  %1636 = vmatpush1.msra.mxu0 %v1591
  %1637 = vmatprep.subr.mxu0 0.0
  %1638 = vmatpush2.msra.mxu0 0.0
  %1639 = vmatprep.subr.mxu0 0.0
  %1640 = vmatpush2.msra.mxu0 0.0
  %1641 = vmatprep.subr.mxu0 0.0
  %1642 = vmatpush2.msra.mxu0 0.0
  %1643 = vmatprep.subr.mxu0 0.0
  %1644 = vmatpush2.msra.mxu0 0.0
  %1645 = vmatprep.subr.mxu0 0.0
  %1646 = vmatpush2.msra.mxu0 0.0
  %1647 = vmatprep.subr.mxu0 0.0
  %1648 = vmatpush2.msra.mxu0 0.0
  %1649 = vmatprep.subr.mxu0 0.0
  %1650 = vmatpush2.msra.mxu0 0.0
  %1651 = vmatprep.subr.mxu0 0.0
  %1652 = vmatpush2.msra.mxu0 0.0
  %1653 = vmatprep.subr.mxu0 0.0
  %1654 = vmatpush2.msra.mxu0 0.0
  %1655 = vmatprep.subr.mxu0 0.0
  %1656 = vmatpush2.msra.mxu0 0.0
  %1657 = vmatprep.subr.mxu0 0.0
  %1658 = vmatpush2.msra.mxu0 0.0
  %1659 = vmatprep.subr.mxu0 0.0
  %1660 = vmatpush2.msra.mxu0 0.0
  %1661 = vmatprep.subr.mxu0 0.0
  %1662 = vmatpush2.msra.mxu0 0.0
  %1663 = vmatprep.subr.mxu0 0.0
  %1664 = vmatpush2.msra.mxu0 0.0
  %1665 = vmatprep.subr.mxu0 0.0
  %1666 = vmatpush2.msra.mxu0 0.0
  %1667 = vmatprep.subr.mxu0 0.0
  %1668 = vmatpush2.msra.mxu0 0.0
  %1669 = vmatprep.mubr.f32.mxu0 0.0
  %1670 = vmatmul.mubr.f32.gmra.mxu0 %v1600
  %v1671 = vpop.f32.mrf.mxu0
  %v1672 = vadd.f32 %v1598, %v1671
  %v1673 = vpop.f32.mrf.mxu0
  %1674 = vmatprep.mubr.f32.mxu0 0.0
  %1675 = vmatmul.mubr.f32.gmra.mxu0 %v1603
  %v1676 = vpop.f32.mrf.mxu0
  %v1677 = vadd.f32 %v1598, %v1676
  %v1678 = vpop.f32.mrf.mxu0
  %1679 = vdwg.mxu0
  %s1680 = scalar_lea.vmem %s3, 32
  %v1681 = vld [vmem:[%s1680] sm:$0xff]
  %v1682 = vld [vmem:[%s1680 + $0x8] sm:$0xff]
  %v1683 = vld [vmem:[%s1680 + $0x10] sm:$0xff]
  %v1684 = vld [vmem:[%s1680 + $0x18] sm:$0xff]
  %v1685 = vmul.f32 %v1672, 0.35355338
  %v1686 = vmul.f32 %v1677, 0.35355338
  %1689 = vrot.lane.b32.xlu0 %v1672, 96
  %v1690 = vpop.permute.xlu0 %1689
  %1691 = vrot.lane.b32.xlu0 %v1677, 96
  %v1692 = vpop.permute.xlu0 %1691
  %v1694 = vsel %vm177, %v1685, 0
  %v1697 = vsel %vm177, %v1686, 0
  %v1699 = vsel %vm177, %v1690, 0
  %v1701 = vsel %vm177, %v1692, 0
  %1703 = vmatprep.subr.mxu0 0.0
  %1704 = vmatpush1.xpose.msra.mxu0 0.0
  %1705 = vmatprep.subr.mxu0 0.0
  %1706 = vmatpush1.xpose.msra.mxu0 0.0
  %1707 = vmatprep.subr.mxu0 0.0
  %1708 = vmatpush1.xpose.msra.mxu0 0.0
  %1709 = vmatprep.subr.mxu0 0.0
  %1710 = vmatpush1.xpose.msra.mxu0 0.0
  %1711 = vmatprep.subr.mxu0 0.0
  %1712 = vmatpush1.xpose.msra.mxu0 0.0
  %1713 = vmatprep.subr.mxu0 0.0
  %1714 = vmatpush1.xpose.msra.mxu0 0.0
  %1715 = vmatprep.subr.mxu0 0.0
  %1716 = vmatpush1.xpose.msra.mxu0 0.0
  %1717 = vmatprep.subr.mxu0 0.0
  %1718 = vmatpush1.xpose.msra.mxu0 0.0
  %1719 = vmatprep.subr.mxu0 0.0
  %1720 = vmatpush1.xpose.msra.mxu0 0.0
  %1721 = vmatprep.subr.mxu0 0.0
  %1722 = vmatpush1.xpose.msra.mxu0 0.0
  %1723 = vmatprep.subr.mxu0 0.0
  %1724 = vmatpush1.xpose.msra.mxu0 0.0
  %1725 = vmatprep.subr.mxu0 0.0
  %1726 = vmatpush1.xpose.msra.mxu0 0.0
  %1727 = vmatprep.subr.mxu0 0.0
  %1728 = vmatpush1.xpose.msra.mxu0 0.0
  %1729 = vmatprep.subr.mxu0 0.0
  %1730 = vmatpush1.xpose.msra.mxu0 0.0
  %1731 = vmatprep.subr.mxu0 0.0
  %1732 = vmatpush1.xpose.msra.mxu0 %v1701
  %1733 = vmatprep.subr.mxu0 0.0
  %1734 = vmatpush1.xpose.msra.mxu0 %v1699
  %1735 = vmatprep.subr.mxu0 0.0
  %1736 = vmatpush2.xpose.msra.mxu0 0.0
  %1737 = vmatprep.subr.mxu0 0.0
  %1738 = vmatpush2.xpose.msra.mxu0 0.0
  %1739 = vmatprep.subr.mxu0 0.0
  %1740 = vmatpush2.xpose.msra.mxu0 0.0
  %1741 = vmatprep.subr.mxu0 0.0
  %1742 = vmatpush2.xpose.msra.mxu0 0.0
  %1743 = vmatprep.subr.mxu0 0.0
  %1744 = vmatpush2.xpose.msra.mxu0 0.0
  %1745 = vmatprep.subr.mxu0 0.0
  %1746 = vmatpush2.xpose.msra.mxu0 0.0
  %1747 = vmatprep.subr.mxu0 0.0
  %1748 = vmatpush2.xpose.msra.mxu0 0.0
  %1749 = vmatprep.subr.mxu0 0.0
  %1750 = vmatpush2.xpose.msra.mxu0 0.0
  %1751 = vmatprep.subr.mxu0 0.0
  %1752 = vmatpush2.xpose.msra.mxu0 0.0
  %1753 = vmatprep.subr.mxu0 0.0
  %1754 = vmatpush2.xpose.msra.mxu0 0.0
  %1755 = vmatprep.subr.mxu0 0.0
  %1756 = vmatpush2.xpose.msra.mxu0 0.0
  %1757 = vmatprep.subr.mxu0 0.0
  %1758 = vmatpush2.xpose.msra.mxu0 0.0
  %1759 = vmatprep.subr.mxu0 0.0
  %1760 = vmatpush2.xpose.msra.mxu0 0.0
  %1761 = vmatprep.subr.mxu0 0.0
  %1762 = vmatpush2.xpose.msra.mxu0 0.0
  %1763 = vmatprep.subr.mxu0 0.0
  %1764 = vmatpush2.xpose.msra.mxu0 0.0
  %1765 = vmatprep.subr.mxu0 0.0
  %1766 = vmatpush2.xpose.msra.mxu0 0.0
  %1767 = vmatprep.mubr.f32.mxu0 0.0
  %1768 = vmatmul.mubr.f32.gmra.mxu0 %v1694
  %v1769 = vpop.f32.mrf.mxu0
  %v1770 = vadd.f32 %v33, %v1769
  %v1771 = vpop.f32.mrf.mxu0
  %1772 = vmatprep.mubr.f32.mxu0 0.0
  %1773 = vmatmul.mubr.f32.gmra.mxu0 %v1697
  %v1774 = vpop.f32.mrf.mxu0
  %v1775 = vadd.f32 %v34, %v1774
  %v1776 = vpop.f32.mrf.mxu0
  %1777 = vdwg.mxu0
  %v1778 = vsel %vm263, %v1770, -inf
  %1779 = vmax.xlane.f32.xlu0 %v1778
  %v1780 = vpop.xlane.xlu0 %1779
  %v1781 = vsel %vm263, %v1775, -inf
  %1782 = vmax.xlane.f32.xlu0 %v1781
  %v1783 = vpop.xlane.xlu0 %1782
  %v1784 = vsub.f32 %v1770, %v1780
  %v1785 = vsub.f32 %v1775, %v1783
  %v1786 = vmul.f32 %v1784, 1.442695
  %v1787 = vpow.pop %v1786
  %v1788 = vmul.f32 %v1785, 1.442695
  %v1789 = vpow.pop %v1788
  %v1790 = vsel %vm263, %v1787, 0.0
  %1791 = vadd.xlane.f32.xlu0 %v1790
  %v1792 = vpop.xlane.xlu0 %1791
  %v1793 = vsel %vm263, %v1789, 0.0
  %1794 = vadd.xlane.f32.xlu0 %v1793
  %v1795 = vpop.xlane.xlu0 %1794
  %v1796 = vrcp.pop %v1792
  %v1797 = vrcp.pop %v1795
  %v1798 = vmul.f32 %v1787, %v1796
  %v1799 = vmul.f32 %v1789, %v1797
  %1800 = vrot.lane.b32.xlu0 %v1672, 64
  %v1801 = vpop.permute.xlu0 %1800
  %1802 = vrot.lane.b32.xlu0 %v1677, 64
  %v1803 = vpop.permute.xlu0 %1802
  %v1807 = vsel %vm263, %v1798, 0
  %v1810 = vsel %vm263, %v1799, 0
  %1812 = vmatprep.subr.mxu0 0.0
  %1813 = vmatpush1.msra.mxu0 0.0
  %1814 = vmatprep.subr.mxu0 0.0
  %1815 = vmatpush1.msra.mxu0 0.0
  %1816 = vmatprep.subr.mxu0 0.0
  %1817 = vmatpush1.msra.mxu0 0.0
  %1818 = vmatprep.subr.mxu0 0.0
  %1819 = vmatpush1.msra.mxu0 0.0
  %1820 = vmatprep.subr.mxu0 0.0
  %1821 = vmatpush1.msra.mxu0 0.0
  %1822 = vmatprep.subr.mxu0 0.0
  %1823 = vmatpush1.msra.mxu0 0.0
  %1824 = vmatprep.subr.mxu0 0.0
  %1825 = vmatpush1.msra.mxu0 0.0
  %1826 = vmatprep.subr.mxu0 0.0
  %1827 = vmatpush1.msra.mxu0 0.0
  %1828 = vmatprep.subr.mxu0 0.0
  %1829 = vmatpush1.msra.mxu0 0.0
  %1830 = vmatprep.subr.mxu0 0.0
  %1831 = vmatpush1.msra.mxu0 0.0
  %1832 = vmatprep.subr.mxu0 0.0
  %1833 = vmatpush1.msra.mxu0 0.0
  %1834 = vmatprep.subr.mxu0 0.0
  %1835 = vmatpush1.msra.mxu0 0.0
  %1836 = vmatprep.subr.mxu0 0.0
  %1837 = vmatpush1.msra.mxu0 0.0
  %1838 = vmatprep.subr.mxu0 0.0
  %1839 = vmatpush1.msra.mxu0 0.0
  %1840 = vmatprep.subr.mxu0 0.0
  %1841 = vmatpush1.msra.mxu0 %v1803
  %1842 = vmatprep.subr.mxu0 0.0
  %1843 = vmatpush1.msra.mxu0 %v1801
  %1844 = vmatprep.subr.mxu0 0.0
  %1845 = vmatpush2.msra.mxu0 0.0
  %1846 = vmatprep.subr.mxu0 0.0
  %1847 = vmatpush2.msra.mxu0 0.0
  %1848 = vmatprep.subr.mxu0 0.0
  %1849 = vmatpush2.msra.mxu0 0.0
  %1850 = vmatprep.subr.mxu0 0.0
  %1851 = vmatpush2.msra.mxu0 0.0
  %1852 = vmatprep.subr.mxu0 0.0
  %1853 = vmatpush2.msra.mxu0 0.0
  %1854 = vmatprep.subr.mxu0 0.0
  %1855 = vmatpush2.msra.mxu0 0.0
  %1856 = vmatprep.subr.mxu0 0.0
  %1857 = vmatpush2.msra.mxu0 0.0
  %1858 = vmatprep.subr.mxu0 0.0
  %1859 = vmatpush2.msra.mxu0 0.0
  %1860 = vmatprep.subr.mxu0 0.0
  %1861 = vmatpush2.msra.mxu0 0.0
  %1862 = vmatprep.subr.mxu0 0.0
  %1863 = vmatpush2.msra.mxu0 0.0
  %1864 = vmatprep.subr.mxu0 0.0
  %1865 = vmatpush2.msra.mxu0 0.0
  %1866 = vmatprep.subr.mxu0 0.0
  %1867 = vmatpush2.msra.mxu0 0.0
  %1868 = vmatprep.subr.mxu0 0.0
  %1869 = vmatpush2.msra.mxu0 0.0
  %1870 = vmatprep.subr.mxu0 0.0
  %1871 = vmatpush2.msra.mxu0 0.0
  %1872 = vmatprep.subr.mxu0 0.0
  %1873 = vmatpush2.msra.mxu0 0.0
  %1874 = vmatprep.subr.mxu0 0.0
  %1875 = vmatpush2.msra.mxu0 0.0
  %1876 = vmatprep.mubr.f32.mxu0 0.0
  %1877 = vmatmul.mubr.f32.gmra.mxu0 %v1807
  %v1878 = vpop.f32.mrf.mxu0
  %v1879 = vadd.f32 0.0, %v1878
  %v1880 = vpop.f32.mrf.mxu0
  %1881 = vmatprep.mubr.f32.mxu0 0.0
  %1882 = vmatmul.mubr.f32.gmra.mxu0 %v1810
  %v1883 = vpop.f32.mrf.mxu0
  %v1884 = vadd.f32 0.0, %v1883
  %v1885 = vpop.f32.mrf.mxu0
  %1886 = vdwg.mxu0
  %1887 = vrot.lane.b32.xlu0 %v1685, 120
  %v1888 = vpop.permute.xlu0 %1887
  %1889 = vrot.lane.b32.xlu0 %v1686, 120
  %v1890 = vpop.permute.xlu0 %1889
  %1891 = vrot.lane.b32.xlu0 %v1672, 88
  %v1892 = vpop.permute.xlu0 %1891
  %1893 = vrot.lane.b32.xlu0 %v1677, 88
  %v1894 = vpop.permute.xlu0 %1893
  %v1895 = vsel %vm177, %v1888, 0
  %v1897 = vsel %vm177, %v1890, 0
  %v1899 = vsel %vm177, %v1892, 0
  %v1901 = vsel %vm177, %v1894, 0
  %1903 = vmatprep.subr.mxu0 0.0
  %1904 = vmatpush1.xpose.msra.mxu0 0.0
  %1905 = vmatprep.subr.mxu0 0.0
  %1906 = vmatpush1.xpose.msra.mxu0 0.0
  %1907 = vmatprep.subr.mxu0 0.0
  %1908 = vmatpush1.xpose.msra.mxu0 0.0
  %1909 = vmatprep.subr.mxu0 0.0
  %1910 = vmatpush1.xpose.msra.mxu0 0.0
  %1911 = vmatprep.subr.mxu0 0.0
  %1912 = vmatpush1.xpose.msra.mxu0 0.0
  %1913 = vmatprep.subr.mxu0 0.0
  %1914 = vmatpush1.xpose.msra.mxu0 0.0
  %1915 = vmatprep.subr.mxu0 0.0
  %1916 = vmatpush1.xpose.msra.mxu0 0.0
  %1917 = vmatprep.subr.mxu0 0.0
  %1918 = vmatpush1.xpose.msra.mxu0 0.0
  %1919 = vmatprep.subr.mxu0 0.0
  %1920 = vmatpush1.xpose.msra.mxu0 0.0
  %1921 = vmatprep.subr.mxu0 0.0
  %1922 = vmatpush1.xpose.msra.mxu0 0.0
  %1923 = vmatprep.subr.mxu0 0.0
  %1924 = vmatpush1.xpose.msra.mxu0 0.0
  %1925 = vmatprep.subr.mxu0 0.0
  %1926 = vmatpush1.xpose.msra.mxu0 0.0
  %1927 = vmatprep.subr.mxu0 0.0
  %1928 = vmatpush1.xpose.msra.mxu0 0.0
  %1929 = vmatprep.subr.mxu0 0.0
  %1930 = vmatpush1.xpose.msra.mxu0 0.0
  %1931 = vmatprep.subr.mxu0 0.0
  %1932 = vmatpush1.xpose.msra.mxu0 %v1901
  %1933 = vmatprep.subr.mxu0 0.0
  %1934 = vmatpush1.xpose.msra.mxu0 %v1899
  %1935 = vmatprep.subr.mxu0 0.0
  %1936 = vmatpush2.xpose.msra.mxu0 0.0
  %1937 = vmatprep.subr.mxu0 0.0
  %1938 = vmatpush2.xpose.msra.mxu0 0.0
  %1939 = vmatprep.subr.mxu0 0.0
  %1940 = vmatpush2.xpose.msra.mxu0 0.0
  %1941 = vmatprep.subr.mxu0 0.0
  %1942 = vmatpush2.xpose.msra.mxu0 0.0
  %1943 = vmatprep.subr.mxu0 0.0
  %1944 = vmatpush2.xpose.msra.mxu0 0.0
  %1945 = vmatprep.subr.mxu0 0.0
  %1946 = vmatpush2.xpose.msra.mxu0 0.0
  %1947 = vmatprep.subr.mxu0 0.0
  %1948 = vmatpush2.xpose.msra.mxu0 0.0
  %1949 = vmatprep.subr.mxu0 0.0
  %1950 = vmatpush2.xpose.msra.mxu0 0.0
  %1951 = vmatprep.subr.mxu0 0.0
  %1952 = vmatpush2.xpose.msra.mxu0 0.0
  %1953 = vmatprep.subr.mxu0 0.0
  %1954 = vmatpush2.xpose.msra.mxu0 0.0
  %1955 = vmatprep.subr.mxu0 0.0
  %1956 = vmatpush2.xpose.msra.mxu0 0.0
  %1957 = vmatprep.subr.mxu0 0.0
  %1958 = vmatpush2.xpose.msra.mxu0 0.0
  %1959 = vmatprep.subr.mxu0 0.0
  %1960 = vmatpush2.xpose.msra.mxu0 0.0
  %1961 = vmatprep.subr.mxu0 0.0
  %1962 = vmatpush2.xpose.msra.mxu0 0.0
  %1963 = vmatprep.subr.mxu0 0.0
  %1964 = vmatpush2.xpose.msra.mxu0 0.0
  %1965 = vmatprep.subr.mxu0 0.0
  %1966 = vmatpush2.xpose.msra.mxu0 0.0
  %1967 = vmatprep.mubr.f32.mxu0 0.0
  %1968 = vmatmul.mubr.f32.gmra.mxu0 %v1895
  %v1969 = vpop.f32.mrf.mxu0
  %v1970 = vadd.f32 %v33, %v1969
  %v1971 = vpop.f32.mrf.mxu0
  %1972 = vmatprep.mubr.f32.mxu0 0.0
  %1973 = vmatmul.mubr.f32.gmra.mxu0 %v1897
  %v1974 = vpop.f32.mrf.mxu0
  %v1975 = vadd.f32 %v34, %v1974
  %v1976 = vpop.f32.mrf.mxu0
  %1977 = vdwg.mxu0
  %v1978 = vsel %vm263, %v1970, -inf
  %1979 = vmax.xlane.f32.xlu0 %v1978
  %v1980 = vpop.xlane.xlu0 %1979
  %v1981 = vsel %vm263, %v1975, -inf
  %1982 = vmax.xlane.f32.xlu0 %v1981
  %v1983 = vpop.xlane.xlu0 %1982
  %v1984 = vsub.f32 %v1970, %v1980
  %v1985 = vsub.f32 %v1975, %v1983
  %v1986 = vmul.f32 %v1984, 1.442695
  %v1987 = vpow.pop %v1986
  %v1988 = vmul.f32 %v1985, 1.442695
  %v1989 = vpow.pop %v1988
  %v1990 = vsel %vm263, %v1987, 0.0
  %1991 = vadd.xlane.f32.xlu0 %v1990
  %v1992 = vpop.xlane.xlu0 %1991
  %v1993 = vsel %vm263, %v1989, 0.0
  %1994 = vadd.xlane.f32.xlu0 %v1993
  %v1995 = vpop.xlane.xlu0 %1994
  %v1996 = vrcp.pop %v1992
  %v1997 = vrcp.pop %v1995
  %v1998 = vmul.f32 %v1987, %v1996
  %v1999 = vmul.f32 %v1989, %v1997
  %2000 = vrot.lane.b32.xlu0 %v1672, 56
  %v2001 = vpop.permute.xlu0 %2000
  %2002 = vrot.lane.b32.xlu0 %v1677, 56
  %v2003 = vpop.permute.xlu0 %2002
  %v2007 = vsel %vm263, %v1998, 0
  %v2010 = vsel %vm263, %v1999, 0
  %2012 = vmatprep.subr.mxu0 0.0
  %2013 = vmatpush1.msra.mxu0 0.0
  %2014 = vmatprep.subr.mxu0 0.0
  %2015 = vmatpush1.msra.mxu0 0.0
  %2016 = vmatprep.subr.mxu0 0.0
  %2017 = vmatpush1.msra.mxu0 0.0
  %2018 = vmatprep.subr.mxu0 0.0
  %2019 = vmatpush1.msra.mxu0 0.0
  %2020 = vmatprep.subr.mxu0 0.0
  %2021 = vmatpush1.msra.mxu0 0.0
  %2022 = vmatprep.subr.mxu0 0.0
  %2023 = vmatpush1.msra.mxu0 0.0
  %2024 = vmatprep.subr.mxu0 0.0
  %2025 = vmatpush1.msra.mxu0 0.0
  %2026 = vmatprep.subr.mxu0 0.0
  %2027 = vmatpush1.msra.mxu0 0.0
  %2028 = vmatprep.subr.mxu0 0.0
  %2029 = vmatpush1.msra.mxu0 0.0
  %2030 = vmatprep.subr.mxu0 0.0
  %2031 = vmatpush1.msra.mxu0 0.0
  %2032 = vmatprep.subr.mxu0 0.0
  %2033 = vmatpush1.msra.mxu0 0.0
  %2034 = vmatprep.subr.mxu0 0.0
  %2035 = vmatpush1.msra.mxu0 0.0
  %2036 = vmatprep.subr.mxu0 0.0
  %2037 = vmatpush1.msra.mxu0 0.0
  %2038 = vmatprep.subr.mxu0 0.0
  %2039 = vmatpush1.msra.mxu0 0.0
  %2040 = vmatprep.subr.mxu0 0.0
  %2041 = vmatpush1.msra.mxu0 %v2003
  %2042 = vmatprep.subr.mxu0 0.0
  %2043 = vmatpush1.msra.mxu0 %v2001
  %2044 = vmatprep.subr.mxu0 0.0
  %2045 = vmatpush2.msra.mxu0 0.0
  %2046 = vmatprep.subr.mxu0 0.0
  %2047 = vmatpush2.msra.mxu0 0.0
  %2048 = vmatprep.subr.mxu0 0.0
  %2049 = vmatpush2.msra.mxu0 0.0
  %2050 = vmatprep.subr.mxu0 0.0
  %2051 = vmatpush2.msra.mxu0 0.0
  %2052 = vmatprep.subr.mxu0 0.0
  %2053 = vmatpush2.msra.mxu0 0.0
  %2054 = vmatprep.subr.mxu0 0.0
  %2055 = vmatpush2.msra.mxu0 0.0
  %2056 = vmatprep.subr.mxu0 0.0
  %2057 = vmatpush2.msra.mxu0 0.0
  %2058 = vmatprep.subr.mxu0 0.0
  %2059 = vmatpush2.msra.mxu0 0.0
  %2060 = vmatprep.subr.mxu0 0.0
  %2061 = vmatpush2.msra.mxu0 0.0
  %2062 = vmatprep.subr.mxu0 0.0
  %2063 = vmatpush2.msra.mxu0 0.0
  %2064 = vmatprep.subr.mxu0 0.0
  %2065 = vmatpush2.msra.mxu0 0.0
  %2066 = vmatprep.subr.mxu0 0.0
  %2067 = vmatpush2.msra.mxu0 0.0
  %2068 = vmatprep.subr.mxu0 0.0
  %2069 = vmatpush2.msra.mxu0 0.0
  %2070 = vmatprep.subr.mxu0 0.0
  %2071 = vmatpush2.msra.mxu0 0.0
  %2072 = vmatprep.subr.mxu0 0.0
  %2073 = vmatpush2.msra.mxu0 0.0
  %2074 = vmatprep.subr.mxu0 0.0
  %2075 = vmatpush2.msra.mxu0 0.0
  %2076 = vmatprep.mubr.f32.mxu0 0.0
  %2077 = vmatmul.mubr.f32.gmra.mxu0 %v2007
  %v2078 = vpop.f32.mrf.mxu0
  %v2079 = vadd.f32 0.0, %v2078
  %v2080 = vpop.f32.mrf.mxu0
  %2081 = vmatprep.mubr.f32.mxu0 0.0
  %2082 = vmatmul.mubr.f32.gmra.mxu0 %v2010
  %v2083 = vpop.f32.mrf.mxu0
  %v2084 = vadd.f32 0.0, %v2083
  %v2085 = vpop.f32.mrf.mxu0
  %2086 = vdwg.mxu0
  %v2088 = vsel %vm177, %v2079, 0
  %v2091 = vsel %vm177, %v2084, 0
  %2093 = vmatprep.subr.mxu0 0.0
  %2094 = vmatpush1.msra.mxu0 0.0
  %2095 = vmatprep.subr.mxu0 0.0
  %2096 = vmatpush1.msra.mxu0 0.0
  %2097 = vmatprep.subr.mxu0 0.0
  %2098 = vmatpush1.msra.mxu0 0.0
  %2099 = vmatprep.subr.mxu0 0.0
  %2100 = vmatpush1.msra.mxu0 0.0
  %2101 = vmatprep.subr.mxu0 0.0
  %2102 = vmatpush1.msra.mxu0 0.0
  %2103 = vmatprep.subr.mxu0 0.0
  %2104 = vmatpush1.msra.mxu0 0.0
  %2105 = vmatprep.subr.mxu0 0.0
  %2106 = vmatpush1.msra.mxu0 0.0
  %2107 = vmatprep.subr.mxu0 0.0
  %2108 = vmatpush1.msra.mxu0 0.0
  %2109 = vmatprep.subr.mxu0 0.0
  %2110 = vmatpush1.msra.mxu0 0.0
  %2111 = vmatprep.subr.mxu0 0.0
  %2112 = vmatpush1.msra.mxu0 0.0
  %2113 = vmatprep.subr.mxu0 0.0
  %2114 = vmatpush1.msra.mxu0 0.0
  %2115 = vmatprep.subr.mxu0 0.0
  %2116 = vmatpush1.msra.mxu0 0.0
  %2117 = vmatprep.subr.mxu0 0.0
  %2118 = vmatpush1.msra.mxu0 0.0
  %2119 = vmatprep.subr.mxu0 0.0
  %2120 = vmatpush1.msra.mxu0 0.0
  %2121 = vmatprep.subr.mxu0 0.0
  %2122 = vmatpush1.msra.mxu0 0.0
  %2123 = vmatprep.subr.mxu0 0.0
  %2124 = vmatpush1.msra.mxu0 %v1682
  %2125 = vmatprep.subr.mxu0 0.0
  %2126 = vmatpush2.msra.mxu0 0.0
  %2127 = vmatprep.subr.mxu0 0.0
  %2128 = vmatpush2.msra.mxu0 0.0
  %2129 = vmatprep.subr.mxu0 0.0
  %2130 = vmatpush2.msra.mxu0 0.0
  %2131 = vmatprep.subr.mxu0 0.0
  %2132 = vmatpush2.msra.mxu0 0.0
  %2133 = vmatprep.subr.mxu0 0.0
  %2134 = vmatpush2.msra.mxu0 0.0
  %2135 = vmatprep.subr.mxu0 0.0
  %2136 = vmatpush2.msra.mxu0 0.0
  %2137 = vmatprep.subr.mxu0 0.0
  %2138 = vmatpush2.msra.mxu0 0.0
  %2139 = vmatprep.subr.mxu0 0.0
  %2140 = vmatpush2.msra.mxu0 0.0
  %2141 = vmatprep.subr.mxu0 0.0
  %2142 = vmatpush2.msra.mxu0 0.0
  %2143 = vmatprep.subr.mxu0 0.0
  %2144 = vmatpush2.msra.mxu0 0.0
  %2145 = vmatprep.subr.mxu0 0.0
  %2146 = vmatpush2.msra.mxu0 0.0
  %2147 = vmatprep.subr.mxu0 0.0
  %2148 = vmatpush2.msra.mxu0 0.0
  %2149 = vmatprep.subr.mxu0 0.0
  %2150 = vmatpush2.msra.mxu0 0.0
  %2151 = vmatprep.subr.mxu0 0.0
  %2152 = vmatpush2.msra.mxu0 0.0
  %2153 = vmatprep.subr.mxu0 0.0
  %2154 = vmatpush2.msra.mxu0 0.0
  %2155 = vmatprep.subr.mxu0 0.0
  %2156 = vmatpush2.msra.mxu0 0.0
  %2157 = vmatprep.mubr.f32.mxu0 0.0
  %2158 = vmatmul.mubr.f32.gmra.mxu0 %v2088
  %v2159 = vpop.f32.mrf.mxu0
  %v2160 = vadd.f32 0.0, %v2159
  %v2161 = vpop.f32.mrf.mxu0
  %2162 = vmatprep.mubr.f32.mxu0 0.0
  %2163 = vmatmul.mubr.f32.gmra.mxu0 %v2091
  %v2164 = vpop.f32.mrf.mxu0
  %v2165 = vadd.f32 0.0, %v2164
  %v2166 = vpop.f32.mrf.mxu0
  %2167 = vdwg.mxu0
  %v2169 = vsel %vm177, %v1879, 0
  %v2172 = vsel %vm177, %v1884, 0
  %2174 = vmatprep.subr.mxu0 0.0
  %2175 = vmatpush1.msra.mxu0 0.0
  %2176 = vmatprep.subr.mxu0 0.0
  %2177 = vmatpush1.msra.mxu0 0.0
  %2178 = vmatprep.subr.mxu0 0.0
  %2179 = vmatpush1.msra.mxu0 0.0
  %2180 = vmatprep.subr.mxu0 0.0
  %2181 = vmatpush1.msra.mxu0 0.0
  %2182 = vmatprep.subr.mxu0 0.0
  %2183 = vmatpush1.msra.mxu0 0.0
  %2184 = vmatprep.subr.mxu0 0.0
  %2185 = vmatpush1.msra.mxu0 0.0
  %2186 = vmatprep.subr.mxu0 0.0
  %2187 = vmatpush1.msra.mxu0 0.0
  %2188 = vmatprep.subr.mxu0 0.0
  %2189 = vmatpush1.msra.mxu0 0.0
  %2190 = vmatprep.subr.mxu0 0.0
  %2191 = vmatpush1.msra.mxu0 0.0
  %2192 = vmatprep.subr.mxu0 0.0
  %2193 = vmatpush1.msra.mxu0 0.0
  %2194 = vmatprep.subr.mxu0 0.0
  %2195 = vmatpush1.msra.mxu0 0.0
  %2196 = vmatprep.subr.mxu0 0.0
  %2197 = vmatpush1.msra.mxu0 0.0
  %2198 = vmatprep.subr.mxu0 0.0
  %2199 = vmatpush1.msra.mxu0 0.0
  %2200 = vmatprep.subr.mxu0 0.0
  %2201 = vmatpush1.msra.mxu0 0.0
  %2202 = vmatprep.subr.mxu0 0.0
  %2203 = vmatpush1.msra.mxu0 0.0
  %2204 = vmatprep.subr.mxu0 0.0
  %2205 = vmatpush1.msra.mxu0 %v1681
  %2206 = vmatprep.subr.mxu0 0.0
  %2207 = vmatpush2.msra.mxu0 0.0
  %2208 = vmatprep.subr.mxu0 0.0
  %2209 = vmatpush2.msra.mxu0 0.0
  %2210 = vmatprep.subr.mxu0 0.0
  %2211 = vmatpush2.msra.mxu0 0.0
  %2212 = vmatprep.subr.mxu0 0.0
  %2213 = vmatpush2.msra.mxu0 0.0
  %2214 = vmatprep.subr.mxu0 0.0
  %2215 = vmatpush2.msra.mxu0 0.0
  %2216 = vmatprep.subr.mxu0 0.0
  %2217 = vmatpush2.msra.mxu0 0.0
  %2218 = vmatprep.subr.mxu0 0.0
  %2219 = vmatpush2.msra.mxu0 0.0
  %2220 = vmatprep.subr.mxu0 0.0
  %2221 = vmatpush2.msra.mxu0 0.0
  %2222 = vmatprep.subr.mxu0 0.0
  %2223 = vmatpush2.msra.mxu0 0.0
  %2224 = vmatprep.subr.mxu0 0.0
  %2225 = vmatpush2.msra.mxu0 0.0
  %2226 = vmatprep.subr.mxu0 0.0
  %2227 = vmatpush2.msra.mxu0 0.0
  %2228 = vmatprep.subr.mxu0 0.0
  %2229 = vmatpush2.msra.mxu0 0.0
  %2230 = vmatprep.subr.mxu0 0.0
  %2231 = vmatpush2.msra.mxu0 0.0
  %2232 = vmatprep.subr.mxu0 0.0
  %2233 = vmatpush2.msra.mxu0 0.0
  %2234 = vmatprep.subr.mxu0 0.0
  %2235 = vmatpush2.msra.mxu0 0.0
  %2236 = vmatprep.subr.mxu0 0.0
  %2237 = vmatpush2.msra.mxu0 0.0
  %2238 = vmatprep.mubr.f32.mxu0 0.0
  %2239 = vmatmul.mubr.f32.gmra.mxu0 %v2169
  %v2240 = vpop.f32.mrf.mxu0
  %v2241 = vadd.f32 %v2160, %v2240
  %v2242 = vpop.f32.mrf.mxu0
  %2243 = vmatprep.mubr.f32.mxu0 0.0
  %2244 = vmatmul.mubr.f32.gmra.mxu0 %v2172
  %v2245 = vpop.f32.mrf.mxu0
  %v2246 = vadd.f32 %v2165, %v2245
  %v2247 = vpop.f32.mrf.mxu0
  %2248 = vdwg.mxu0
  %2249 = vrot.lane.b32.xlu0 %v1685, 112
  %v2250 = vpop.permute.xlu0 %2249
  %2251 = vrot.lane.b32.xlu0 %v1686, 112
  %v2252 = vpop.permute.xlu0 %2251
  %2253 = vrot.lane.b32.xlu0 %v1672, 80
  %v2254 = vpop.permute.xlu0 %2253
  %2255 = vrot.lane.b32.xlu0 %v1677, 80
  %v2256 = vpop.permute.xlu0 %2255
  %v2257 = vsel %vm177, %v2250, 0
  %v2259 = vsel %vm177, %v2252, 0
  %v2261 = vsel %vm177, %v2254, 0
  %v2263 = vsel %vm177, %v2256, 0
  %2265 = vmatprep.subr.mxu0 0.0
  %2266 = vmatpush1.xpose.msra.mxu0 0.0
  %2267 = vmatprep.subr.mxu0 0.0
  %2268 = vmatpush1.xpose.msra.mxu0 0.0
  %2269 = vmatprep.subr.mxu0 0.0
  %2270 = vmatpush1.xpose.msra.mxu0 0.0
  %2271 = vmatprep.subr.mxu0 0.0
  %2272 = vmatpush1.xpose.msra.mxu0 0.0
  %2273 = vmatprep.subr.mxu0 0.0
  %2274 = vmatpush1.xpose.msra.mxu0 0.0
  %2275 = vmatprep.subr.mxu0 0.0
  %2276 = vmatpush1.xpose.msra.mxu0 0.0
  %2277 = vmatprep.subr.mxu0 0.0
  %2278 = vmatpush1.xpose.msra.mxu0 0.0
  %2279 = vmatprep.subr.mxu0 0.0
  %2280 = vmatpush1.xpose.msra.mxu0 0.0
  %2281 = vmatprep.subr.mxu0 0.0
  %2282 = vmatpush1.xpose.msra.mxu0 0.0
  %2283 = vmatprep.subr.mxu0 0.0
  %2284 = vmatpush1.xpose.msra.mxu0 0.0
  %2285 = vmatprep.subr.mxu0 0.0
  %2286 = vmatpush1.xpose.msra.mxu0 0.0
  %2287 = vmatprep.subr.mxu0 0.0
  %2288 = vmatpush1.xpose.msra.mxu0 0.0
  %2289 = vmatprep.subr.mxu0 0.0
  %2290 = vmatpush1.xpose.msra.mxu0 0.0
  %2291 = vmatprep.subr.mxu0 0.0
  %2292 = vmatpush1.xpose.msra.mxu0 0.0
  %2293 = vmatprep.subr.mxu0 0.0
  %2294 = vmatpush1.xpose.msra.mxu0 %v2263
  %2295 = vmatprep.subr.mxu0 0.0
  %2296 = vmatpush1.xpose.msra.mxu0 %v2261
  %2297 = vmatprep.subr.mxu0 0.0
  %2298 = vmatpush2.xpose.msra.mxu0 0.0
  %2299 = vmatprep.subr.mxu0 0.0
  %2300 = vmatpush2.xpose.msra.mxu0 0.0
  %2301 = vmatprep.subr.mxu0 0.0
  %2302 = vmatpush2.xpose.msra.mxu0 0.0
  %2303 = vmatprep.subr.mxu0 0.0
  %2304 = vmatpush2.xpose.msra.mxu0 0.0
  %2305 = vmatprep.subr.mxu0 0.0
  %2306 = vmatpush2.xpose.msra.mxu0 0.0
  %2307 = vmatprep.subr.mxu0 0.0
  %2308 = vmatpush2.xpose.msra.mxu0 0.0
  %2309 = vmatprep.subr.mxu0 0.0
  %2310 = vmatpush2.xpose.msra.mxu0 0.0
  %2311 = vmatprep.subr.mxu0 0.0
  %2312 = vmatpush2.xpose.msra.mxu0 0.0
  %2313 = vmatprep.subr.mxu0 0.0
  %2314 = vmatpush2.xpose.msra.mxu0 0.0
  %2315 = vmatprep.subr.mxu0 0.0
  %2316 = vmatpush2.xpose.msra.mxu0 0.0
  %2317 = vmatprep.subr.mxu0 0.0
  %2318 = vmatpush2.xpose.msra.mxu0 0.0
  %2319 = vmatprep.subr.mxu0 0.0
  %2320 = vmatpush2.xpose.msra.mxu0 0.0
  %2321 = vmatprep.subr.mxu0 0.0
  %2322 = vmatpush2.xpose.msra.mxu0 0.0
  %2323 = vmatprep.subr.mxu0 0.0
  %2324 = vmatpush2.xpose.msra.mxu0 0.0
  %2325 = vmatprep.subr.mxu0 0.0
  %2326 = vmatpush2.xpose.msra.mxu0 0.0
  %2327 = vmatprep.subr.mxu0 0.0
  %2328 = vmatpush2.xpose.msra.mxu0 0.0
  %2329 = vmatprep.mubr.f32.mxu0 0.0
  %2330 = vmatmul.mubr.f32.gmra.mxu0 %v2257
  %v2331 = vpop.f32.mrf.mxu0
  %v2332 = vadd.f32 %v33, %v2331
  %v2333 = vpop.f32.mrf.mxu0
  %2334 = vmatprep.mubr.f32.mxu0 0.0
  %2335 = vmatmul.mubr.f32.gmra.mxu0 %v2259
  %v2336 = vpop.f32.mrf.mxu0
  %v2337 = vadd.f32 %v34, %v2336
  %v2338 = vpop.f32.mrf.mxu0
  %2339 = vdwg.mxu0
  %v2340 = vsel %vm263, %v2332, -inf
  %2341 = vmax.xlane.f32.xlu0 %v2340
  %v2342 = vpop.xlane.xlu0 %2341
  %v2343 = vsel %vm263, %v2337, -inf
  %2344 = vmax.xlane.f32.xlu0 %v2343
  %v2345 = vpop.xlane.xlu0 %2344
  %v2346 = vsub.f32 %v2332, %v2342
  %v2347 = vsub.f32 %v2337, %v2345
  %v2348 = vmul.f32 %v2346, 1.442695
  %v2349 = vpow.pop %v2348
  %v2350 = vmul.f32 %v2347, 1.442695
  %v2351 = vpow.pop %v2350
  %v2352 = vsel %vm263, %v2349, 0.0
  %2353 = vadd.xlane.f32.xlu0 %v2352
  %v2354 = vpop.xlane.xlu0 %2353
  %v2355 = vsel %vm263, %v2351, 0.0
  %2356 = vadd.xlane.f32.xlu0 %v2355
  %v2357 = vpop.xlane.xlu0 %2356
  %v2358 = vrcp.pop %v2354
  %v2359 = vrcp.pop %v2357
  %v2360 = vmul.f32 %v2349, %v2358
  %v2361 = vmul.f32 %v2351, %v2359
  %2362 = vrot.lane.b32.xlu0 %v1672, 48
  %v2363 = vpop.permute.xlu0 %2362
  %2364 = vrot.lane.b32.xlu0 %v1677, 48
  %v2365 = vpop.permute.xlu0 %2364
  %v2369 = vsel %vm263, %v2360, 0
  %v2372 = vsel %vm263, %v2361, 0
  %2374 = vmatprep.subr.mxu0 0.0
  %2375 = vmatpush1.msra.mxu0 0.0
  %2376 = vmatprep.subr.mxu0 0.0
  %2377 = vmatpush1.msra.mxu0 0.0
  %2378 = vmatprep.subr.mxu0 0.0
  %2379 = vmatpush1.msra.mxu0 0.0
  %2380 = vmatprep.subr.mxu0 0.0
  %2381 = vmatpush1.msra.mxu0 0.0
  %2382 = vmatprep.subr.mxu0 0.0
  %2383 = vmatpush1.msra.mxu0 0.0
  %2384 = vmatprep.subr.mxu0 0.0
  %2385 = vmatpush1.msra.mxu0 0.0
  %2386 = vmatprep.subr.mxu0 0.0
  %2387 = vmatpush1.msra.mxu0 0.0
  %2388 = vmatprep.subr.mxu0 0.0
  %2389 = vmatpush1.msra.mxu0 0.0
  %2390 = vmatprep.subr.mxu0 0.0
  %2391 = vmatpush1.msra.mxu0 0.0
  %2392 = vmatprep.subr.mxu0 0.0
  %2393 = vmatpush1.msra.mxu0 0.0
  %2394 = vmatprep.subr.mxu0 0.0
  %2395 = vmatpush1.msra.mxu0 0.0
  %2396 = vmatprep.subr.mxu0 0.0
  %2397 = vmatpush1.msra.mxu0 0.0
  %2398 = vmatprep.subr.mxu0 0.0
  %2399 = vmatpush1.msra.mxu0 0.0
  %2400 = vmatprep.subr.mxu0 0.0
  %2401 = vmatpush1.msra.mxu0 0.0
  %2402 = vmatprep.subr.mxu0 0.0
  %2403 = vmatpush1.msra.mxu0 %v2365
  %2404 = vmatprep.subr.mxu0 0.0
  %2405 = vmatpush1.msra.mxu0 %v2363
  %2406 = vmatprep.subr.mxu0 0.0
  %2407 = vmatpush2.msra.mxu0 0.0
  %2408 = vmatprep.subr.mxu0 0.0
  %2409 = vmatpush2.msra.mxu0 0.0
  %2410 = vmatprep.subr.mxu0 0.0
  %2411 = vmatpush2.msra.mxu0 0.0
  %2412 = vmatprep.subr.mxu0 0.0
  %2413 = vmatpush2.msra.mxu0 0.0
  %2414 = vmatprep.subr.mxu0 0.0
  %2415 = vmatpush2.msra.mxu0 0.0
  %2416 = vmatprep.subr.mxu0 0.0
  %2417 = vmatpush2.msra.mxu0 0.0
  %2418 = vmatprep.subr.mxu0 0.0
  %2419 = vmatpush2.msra.mxu0 0.0
  %2420 = vmatprep.subr.mxu0 0.0
  %2421 = vmatpush2.msra.mxu0 0.0
  %2422 = vmatprep.subr.mxu0 0.0
  %2423 = vmatpush2.msra.mxu0 0.0
  %2424 = vmatprep.subr.mxu0 0.0
  %2425 = vmatpush2.msra.mxu0 0.0
  %2426 = vmatprep.subr.mxu0 0.0
  %2427 = vmatpush2.msra.mxu0 0.0
  %2428 = vmatprep.subr.mxu0 0.0
  %2429 = vmatpush2.msra.mxu0 0.0
  %2430 = vmatprep.subr.mxu0 0.0
  %2431 = vmatpush2.msra.mxu0 0.0
  %2432 = vmatprep.subr.mxu0 0.0
  %2433 = vmatpush2.msra.mxu0 0.0
  %2434 = vmatprep.subr.mxu0 0.0
  %2435 = vmatpush2.msra.mxu0 0.0
  %2436 = vmatprep.subr.mxu0 0.0
  %2437 = vmatpush2.msra.mxu0 0.0
  %2438 = vmatprep.mubr.f32.mxu0 0.0
  %2439 = vmatmul.mubr.f32.gmra.mxu0 %v2369
  %v2440 = vpop.f32.mrf.mxu0
  %v2441 = vadd.f32 0.0, %v2440
  %v2442 = vpop.f32.mrf.mxu0
  %2443 = vmatprep.mubr.f32.mxu0 0.0
  %2444 = vmatmul.mubr.f32.gmra.mxu0 %v2372
  %v2445 = vpop.f32.mrf.mxu0
  %v2446 = vadd.f32 0.0, %v2445
  %v2447 = vpop.f32.mrf.mxu0
  %2448 = vdwg.mxu0
  %v2450 = vsel %vm177, %v2441, 0
  %v2453 = vsel %vm177, %v2446, 0
  %2455 = vmatprep.subr.mxu0 0.0
  %2456 = vmatpush1.msra.mxu0 0.0
  %2457 = vmatprep.subr.mxu0 0.0
  %2458 = vmatpush1.msra.mxu0 0.0
  %2459 = vmatprep.subr.mxu0 0.0
  %2460 = vmatpush1.msra.mxu0 0.0
  %2461 = vmatprep.subr.mxu0 0.0
  %2462 = vmatpush1.msra.mxu0 0.0
  %2463 = vmatprep.subr.mxu0 0.0
  %2464 = vmatpush1.msra.mxu0 0.0
  %2465 = vmatprep.subr.mxu0 0.0
  %2466 = vmatpush1.msra.mxu0 0.0
  %2467 = vmatprep.subr.mxu0 0.0
  %2468 = vmatpush1.msra.mxu0 0.0
  %2469 = vmatprep.subr.mxu0 0.0
  %2470 = vmatpush1.msra.mxu0 0.0
  %2471 = vmatprep.subr.mxu0 0.0
  %2472 = vmatpush1.msra.mxu0 0.0
  %2473 = vmatprep.subr.mxu0 0.0
  %2474 = vmatpush1.msra.mxu0 0.0
  %2475 = vmatprep.subr.mxu0 0.0
  %2476 = vmatpush1.msra.mxu0 0.0
  %2477 = vmatprep.subr.mxu0 0.0
  %2478 = vmatpush1.msra.mxu0 0.0
  %2479 = vmatprep.subr.mxu0 0.0
  %2480 = vmatpush1.msra.mxu0 0.0
  %2481 = vmatprep.subr.mxu0 0.0
  %2482 = vmatpush1.msra.mxu0 0.0
  %2483 = vmatprep.subr.mxu0 0.0
  %2484 = vmatpush1.msra.mxu0 0.0
  %2485 = vmatprep.subr.mxu0 0.0
  %2486 = vmatpush1.msra.mxu0 %v1683
  %2487 = vmatprep.subr.mxu0 0.0
  %2488 = vmatpush2.msra.mxu0 0.0
  %2489 = vmatprep.subr.mxu0 0.0
  %2490 = vmatpush2.msra.mxu0 0.0
  %2491 = vmatprep.subr.mxu0 0.0
  %2492 = vmatpush2.msra.mxu0 0.0
  %2493 = vmatprep.subr.mxu0 0.0
  %2494 = vmatpush2.msra.mxu0 0.0
  %2495 = vmatprep.subr.mxu0 0.0
  %2496 = vmatpush2.msra.mxu0 0.0
  %2497 = vmatprep.subr.mxu0 0.0
  %2498 = vmatpush2.msra.mxu0 0.0
  %2499 = vmatprep.subr.mxu0 0.0
  %2500 = vmatpush2.msra.mxu0 0.0
  %2501 = vmatprep.subr.mxu0 0.0
  %2502 = vmatpush2.msra.mxu0 0.0
  %2503 = vmatprep.subr.mxu0 0.0
  %2504 = vmatpush2.msra.mxu0 0.0
  %2505 = vmatprep.subr.mxu0 0.0
  %2506 = vmatpush2.msra.mxu0 0.0
  %2507 = vmatprep.subr.mxu0 0.0
  %2508 = vmatpush2.msra.mxu0 0.0
  %2509 = vmatprep.subr.mxu0 0.0
  %2510 = vmatpush2.msra.mxu0 0.0
  %2511 = vmatprep.subr.mxu0 0.0
  %2512 = vmatpush2.msra.mxu0 0.0
  %2513 = vmatprep.subr.mxu0 0.0
  %2514 = vmatpush2.msra.mxu0 0.0
  %2515 = vmatprep.subr.mxu0 0.0
  %2516 = vmatpush2.msra.mxu0 0.0
  %2517 = vmatprep.subr.mxu0 0.0
  %2518 = vmatpush2.msra.mxu0 0.0
  %2519 = vmatprep.mubr.f32.mxu0 0.0
  %2520 = vmatmul.mubr.f32.gmra.mxu0 %v2450
  %v2521 = vpop.f32.mrf.mxu0
  %v2522 = vadd.f32 0.0, %v2521
  %v2523 = vpop.f32.mrf.mxu0
  %2524 = vmatprep.mubr.f32.mxu0 0.0
  %2525 = vmatmul.mubr.f32.gmra.mxu0 %v2453
  %v2526 = vpop.f32.mrf.mxu0
  %v2527 = vadd.f32 0.0, %v2526
  %v2528 = vpop.f32.mrf.mxu0
  %2529 = vdwg.mxu0
  %v2530 = vadd.f32 %v2241, %v2522
  %v2531 = vadd.f32 %v2246, %v2527
  %2532 = vrot.lane.b32.xlu0 %v1685, 104
  %v2533 = vpop.permute.xlu0 %2532
  %2534 = vrot.lane.b32.xlu0 %v1686, 104
  %v2535 = vpop.permute.xlu0 %2534
  %2536 = vrot.lane.b32.xlu0 %v1672, 72
  %v2537 = vpop.permute.xlu0 %2536
  %2538 = vrot.lane.b32.xlu0 %v1677, 72
  %v2539 = vpop.permute.xlu0 %2538
  %v2540 = vsel %vm177, %v2533, 0
  %v2542 = vsel %vm177, %v2535, 0
  %v2544 = vsel %vm177, %v2537, 0
  %v2546 = vsel %vm177, %v2539, 0
  %2548 = vmatprep.subr.mxu0 0.0
  %2549 = vmatpush1.xpose.msra.mxu0 0.0
  %2550 = vmatprep.subr.mxu0 0.0
  %2551 = vmatpush1.xpose.msra.mxu0 0.0
  %2552 = vmatprep.subr.mxu0 0.0
  %2553 = vmatpush1.xpose.msra.mxu0 0.0
  %2554 = vmatprep.subr.mxu0 0.0
  %2555 = vmatpush1.xpose.msra.mxu0 0.0
  %2556 = vmatprep.subr.mxu0 0.0
  %2557 = vmatpush1.xpose.msra.mxu0 0.0
  %2558 = vmatprep.subr.mxu0 0.0
  %2559 = vmatpush1.xpose.msra.mxu0 0.0
  %2560 = vmatprep.subr.mxu0 0.0
  %2561 = vmatpush1.xpose.msra.mxu0 0.0
  %2562 = vmatprep.subr.mxu0 0.0
  %2563 = vmatpush1.xpose.msra.mxu0 0.0
  %2564 = vmatprep.subr.mxu0 0.0
  %2565 = vmatpush1.xpose.msra.mxu0 0.0
  %2566 = vmatprep.subr.mxu0 0.0
  %2567 = vmatpush1.xpose.msra.mxu0 0.0
  %2568 = vmatprep.subr.mxu0 0.0
  %2569 = vmatpush1.xpose.msra.mxu0 0.0
  %2570 = vmatprep.subr.mxu0 0.0
  %2571 = vmatpush1.xpose.msra.mxu0 0.0
  %2572 = vmatprep.subr.mxu0 0.0
  %2573 = vmatpush1.xpose.msra.mxu0 0.0
  %2574 = vmatprep.subr.mxu0 0.0
  %2575 = vmatpush1.xpose.msra.mxu0 0.0
  %2576 = vmatprep.subr.mxu0 0.0
  %2577 = vmatpush1.xpose.msra.mxu0 %v2546
  %2578 = vmatprep.subr.mxu0 0.0
  %2579 = vmatpush1.xpose.msra.mxu0 %v2544
  %2580 = vmatprep.subr.mxu0 0.0
  %2581 = vmatpush2.xpose.msra.mxu0 0.0
  %2582 = vmatprep.subr.mxu0 0.0
  %2583 = vmatpush2.xpose.msra.mxu0 0.0
  %2584 = vmatprep.subr.mxu0 0.0
  %2585 = vmatpush2.xpose.msra.mxu0 0.0
  %2586 = vmatprep.subr.mxu0 0.0
  %2587 = vmatpush2.xpose.msra.mxu0 0.0
  %2588 = vmatprep.subr.mxu0 0.0
  %2589 = vmatpush2.xpose.msra.mxu0 0.0
  %2590 = vmatprep.subr.mxu0 0.0
  %2591 = vmatpush2.xpose.msra.mxu0 0.0
  %2592 = vmatprep.subr.mxu0 0.0
  %2593 = vmatpush2.xpose.msra.mxu0 0.0
  %2594 = vmatprep.subr.mxu0 0.0
  %2595 = vmatpush2.xpose.msra.mxu0 0.0
  %2596 = vmatprep.subr.mxu0 0.0
  %2597 = vmatpush2.xpose.msra.mxu0 0.0
  %2598 = vmatprep.subr.mxu0 0.0
  %2599 = vmatpush2.xpose.msra.mxu0 0.0
  %2600 = vmatprep.subr.mxu0 0.0
  %2601 = vmatpush2.xpose.msra.mxu0 0.0
  %2602 = vmatprep.subr.mxu0 0.0
  %2603 = vmatpush2.xpose.msra.mxu0 0.0
  %2604 = vmatprep.subr.mxu0 0.0
  %2605 = vmatpush2.xpose.msra.mxu0 0.0
  %2606 = vmatprep.subr.mxu0 0.0
  %2607 = vmatpush2.xpose.msra.mxu0 0.0
  %2608 = vmatprep.subr.mxu0 0.0
  %2609 = vmatpush2.xpose.msra.mxu0 0.0
  %2610 = vmatprep.subr.mxu0 0.0
  %2611 = vmatpush2.xpose.msra.mxu0 0.0
  %2612 = vmatprep.mubr.f32.mxu0 0.0
  %2613 = vmatmul.mubr.f32.gmra.mxu0 %v2540
  %v2614 = vpop.f32.mrf.mxu0
  %v2615 = vadd.f32 %v33, %v2614
  %v2616 = vpop.f32.mrf.mxu0
  %2617 = vmatprep.mubr.f32.mxu0 0.0
  %2618 = vmatmul.mubr.f32.gmra.mxu0 %v2542
  %v2619 = vpop.f32.mrf.mxu0
  %v2620 = vadd.f32 %v34, %v2619
  %v2621 = vpop.f32.mrf.mxu0
  %2622 = vdwg.mxu0
  %v2623 = vsel %vm263, %v2615, -inf
  %2624 = vmax.xlane.f32.xlu0 %v2623
  %v2625 = vpop.xlane.xlu0 %2624
  %v2626 = vsel %vm263, %v2620, -inf
  %2627 = vmax.xlane.f32.xlu0 %v2626
  %v2628 = vpop.xlane.xlu0 %2627
  %v2629 = vsub.f32 %v2615, %v2625
  %v2630 = vsub.f32 %v2620, %v2628
  %v2631 = vmul.f32 %v2629, 1.442695
  %v2632 = vpow.pop %v2631
  %v2633 = vmul.f32 %v2630, 1.442695
  %v2634 = vpow.pop %v2633
  %v2635 = vsel %vm263, %v2632, 0.0
  %2636 = vadd.xlane.f32.xlu0 %v2635
  %v2637 = vpop.xlane.xlu0 %2636
  %v2638 = vsel %vm263, %v2634, 0.0
  %2639 = vadd.xlane.f32.xlu0 %v2638
  %v2640 = vpop.xlane.xlu0 %2639
  %v2641 = vrcp.pop %v2637
  %v2642 = vrcp.pop %v2640
  %v2643 = vmul.f32 %v2632, %v2641
  %v2644 = vmul.f32 %v2634, %v2642
  %2645 = vrot.lane.b32.xlu0 %v1672, 40
  %v2646 = vpop.permute.xlu0 %2645
  %2647 = vrot.lane.b32.xlu0 %v1677, 40
  %v2648 = vpop.permute.xlu0 %2647
  %v2652 = vsel %vm263, %v2643, 0
  %v2655 = vsel %vm263, %v2644, 0
  %2657 = vmatprep.subr.mxu0 0.0
  %2658 = vmatpush1.msra.mxu0 0.0
  %2659 = vmatprep.subr.mxu0 0.0
  %2660 = vmatpush1.msra.mxu0 0.0
  %2661 = vmatprep.subr.mxu0 0.0
  %2662 = vmatpush1.msra.mxu0 0.0
  %2663 = vmatprep.subr.mxu0 0.0
  %2664 = vmatpush1.msra.mxu0 0.0
  %2665 = vmatprep.subr.mxu0 0.0
  %2666 = vmatpush1.msra.mxu0 0.0
  %2667 = vmatprep.subr.mxu0 0.0
  %2668 = vmatpush1.msra.mxu0 0.0
  %2669 = vmatprep.subr.mxu0 0.0
  %2670 = vmatpush1.msra.mxu0 0.0
  %2671 = vmatprep.subr.mxu0 0.0
  %2672 = vmatpush1.msra.mxu0 0.0
  %2673 = vmatprep.subr.mxu0 0.0
  %2674 = vmatpush1.msra.mxu0 0.0
  %2675 = vmatprep.subr.mxu0 0.0
  %2676 = vmatpush1.msra.mxu0 0.0
  %2677 = vmatprep.subr.mxu0 0.0
  %2678 = vmatpush1.msra.mxu0 0.0
  %2679 = vmatprep.subr.mxu0 0.0
  %2680 = vmatpush1.msra.mxu0 0.0
  %2681 = vmatprep.subr.mxu0 0.0
  %2682 = vmatpush1.msra.mxu0 0.0
  %2683 = vmatprep.subr.mxu0 0.0
  %2684 = vmatpush1.msra.mxu0 0.0
  %2685 = vmatprep.subr.mxu0 0.0
  %2686 = vmatpush1.msra.mxu0 %v2648
  %2687 = vmatprep.subr.mxu0 0.0
  %2688 = vmatpush1.msra.mxu0 %v2646
  %2689 = vmatprep.subr.mxu0 0.0
  %2690 = vmatpush2.msra.mxu0 0.0
  %2691 = vmatprep.subr.mxu0 0.0
  %2692 = vmatpush2.msra.mxu0 0.0
  %2693 = vmatprep.subr.mxu0 0.0
  %2694 = vmatpush2.msra.mxu0 0.0
  %2695 = vmatprep.subr.mxu0 0.0
  %2696 = vmatpush2.msra.mxu0 0.0
  %2697 = vmatprep.subr.mxu0 0.0
  %2698 = vmatpush2.msra.mxu0 0.0
  %2699 = vmatprep.subr.mxu0 0.0
  %2700 = vmatpush2.msra.mxu0 0.0
  %2701 = vmatprep.subr.mxu0 0.0
  %2702 = vmatpush2.msra.mxu0 0.0
  %2703 = vmatprep.subr.mxu0 0.0
  %2704 = vmatpush2.msra.mxu0 0.0
  %2705 = vmatprep.subr.mxu0 0.0
  %2706 = vmatpush2.msra.mxu0 0.0
  %2707 = vmatprep.subr.mxu0 0.0
  %2708 = vmatpush2.msra.mxu0 0.0
  %2709 = vmatprep.subr.mxu0 0.0
  %2710 = vmatpush2.msra.mxu0 0.0
  %2711 = vmatprep.subr.mxu0 0.0
  %2712 = vmatpush2.msra.mxu0 0.0
  %2713 = vmatprep.subr.mxu0 0.0
  %2714 = vmatpush2.msra.mxu0 0.0
  %2715 = vmatprep.subr.mxu0 0.0
  %2716 = vmatpush2.msra.mxu0 0.0
  %2717 = vmatprep.subr.mxu0 0.0
  %2718 = vmatpush2.msra.mxu0 0.0
  %2719 = vmatprep.subr.mxu0 0.0
  %2720 = vmatpush2.msra.mxu0 0.0
  %2721 = vmatprep.mubr.f32.mxu0 0.0
  %2722 = vmatmul.mubr.f32.gmra.mxu0 %v2652
  %v2723 = vpop.f32.mrf.mxu0
  %v2724 = vadd.f32 0.0, %v2723
  %v2725 = vpop.f32.mrf.mxu0
  %2726 = vmatprep.mubr.f32.mxu0 0.0
  %2727 = vmatmul.mubr.f32.gmra.mxu0 %v2655
  %v2728 = vpop.f32.mrf.mxu0
  %v2729 = vadd.f32 0.0, %v2728
  %v2730 = vpop.f32.mrf.mxu0
  %2731 = vdwg.mxu0
  %v2733 = vsel %vm177, %v2724, 0
  %v2736 = vsel %vm177, %v2729, 0
  %2738 = vmatprep.subr.mxu0 0.0
  %2739 = vmatpush1.msra.mxu0 0.0
  %2740 = vmatprep.subr.mxu0 0.0
  %2741 = vmatpush1.msra.mxu0 0.0
  %2742 = vmatprep.subr.mxu0 0.0
  %2743 = vmatpush1.msra.mxu0 0.0
  %2744 = vmatprep.subr.mxu0 0.0
  %2745 = vmatpush1.msra.mxu0 0.0
  %2746 = vmatprep.subr.mxu0 0.0
  %2747 = vmatpush1.msra.mxu0 0.0
  %2748 = vmatprep.subr.mxu0 0.0
  %2749 = vmatpush1.msra.mxu0 0.0
  %2750 = vmatprep.subr.mxu0 0.0
  %2751 = vmatpush1.msra.mxu0 0.0
  %2752 = vmatprep.subr.mxu0 0.0
  %2753 = vmatpush1.msra.mxu0 0.0
  %2754 = vmatprep.subr.mxu0 0.0
  %2755 = vmatpush1.msra.mxu0 0.0
  %2756 = vmatprep.subr.mxu0 0.0
  %2757 = vmatpush1.msra.mxu0 0.0
  %2758 = vmatprep.subr.mxu0 0.0
  %2759 = vmatpush1.msra.mxu0 0.0
  %2760 = vmatprep.subr.mxu0 0.0
  %2761 = vmatpush1.msra.mxu0 0.0
  %2762 = vmatprep.subr.mxu0 0.0
  %2763 = vmatpush1.msra.mxu0 0.0
  %2764 = vmatprep.subr.mxu0 0.0
  %2765 = vmatpush1.msra.mxu0 0.0
  %2766 = vmatprep.subr.mxu0 0.0
  %2767 = vmatpush1.msra.mxu0 0.0
  %2768 = vmatprep.subr.mxu0 0.0
  %2769 = vmatpush1.msra.mxu0 %v1684
  %2770 = vmatprep.subr.mxu0 0.0
  %2771 = vmatpush2.msra.mxu0 0.0
  %2772 = vmatprep.subr.mxu0 0.0
  %2773 = vmatpush2.msra.mxu0 0.0
  %2774 = vmatprep.subr.mxu0 0.0
  %2775 = vmatpush2.msra.mxu0 0.0
  %2776 = vmatprep.subr.mxu0 0.0
  %2777 = vmatpush2.msra.mxu0 0.0
  %2778 = vmatprep.subr.mxu0 0.0
  %2779 = vmatpush2.msra.mxu0 0.0
  %2780 = vmatprep.subr.mxu0 0.0
  %2781 = vmatpush2.msra.mxu0 0.0
  %2782 = vmatprep.subr.mxu0 0.0
  %2783 = vmatpush2.msra.mxu0 0.0
  %2784 = vmatprep.subr.mxu0 0.0
  %2785 = vmatpush2.msra.mxu0 0.0
  %2786 = vmatprep.subr.mxu0 0.0
  %2787 = vmatpush2.msra.mxu0 0.0
  %2788 = vmatprep.subr.mxu0 0.0
  %2789 = vmatpush2.msra.mxu0 0.0
  %2790 = vmatprep.subr.mxu0 0.0
  %2791 = vmatpush2.msra.mxu0 0.0
  %2792 = vmatprep.subr.mxu0 0.0
  %2793 = vmatpush2.msra.mxu0 0.0
  %2794 = vmatprep.subr.mxu0 0.0
  %2795 = vmatpush2.msra.mxu0 0.0
  %2796 = vmatprep.subr.mxu0 0.0
  %2797 = vmatpush2.msra.mxu0 0.0
  %2798 = vmatprep.subr.mxu0 0.0
  %2799 = vmatpush2.msra.mxu0 0.0
  %2800 = vmatprep.subr.mxu0 0.0
  %2801 = vmatpush2.msra.mxu0 0.0
  %2802 = vmatprep.mubr.f32.mxu0 0.0
  %2803 = vmatmul.mubr.f32.gmra.mxu0 %v2733
  %v2804 = vpop.f32.mrf.mxu0
  %v2805 = vadd.f32 0.0, %v2804
  %v2806 = vpop.f32.mrf.mxu0
  %2807 = vmatprep.mubr.f32.mxu0 0.0
  %2808 = vmatmul.mubr.f32.gmra.mxu0 %v2736
  %v2809 = vpop.f32.mrf.mxu0
  %v2810 = vadd.f32 0.0, %v2809
  %v2811 = vpop.f32.mrf.mxu0
  %2812 = vdwg.mxu0
  %v2813 = vadd.f32 %v2530, %v2805
  %v2814 = vadd.f32 %v2531, %v2810
  %v2815 = vlaneseq
  %v2816 = vshrl.u32 %v2815, 7
  %v2817 = vsub.s32 4, %v2816
  %v2818 = vrot.slane %v1551, %v2817
  %v2819 = vadd.f32 %v2813, %v2818
  %v2820 = vadd.f32 %v2814, %v2818
  %v2821 = vadd.f32 %v1548, %v2819
  %v2822 = vadd.f32 %v1549, %v2820
  %v2823 = vsel %vm36, %v2821, 0.0
  %2824 = vadd.xlane.f32.xlu0 %v2823
  %v2825 = vpop.xlane.xlu0 %2824
  %v2826 = vsel %vm36, %v2822, 0.0
  %2827 = vadd.xlane.f32.xlu0 %v2826
  %v2828 = vpop.xlane.xlu0 %2827
  %v2829 = vmul.f32 %v2825, %v43
  %v2830 = vmul.f32 %v2828, %v43
  %v2831 = vsub.f32 %v2821, %v2829
  %v2832 = vsub.f32 %v2822, %v2830
  %v2833 = vmul.f32 %v2831, %v2831
  %v2834 = vmul.f32 %v2832, %v2832
  %v2835 = vsel %vm36, %v2833, 0.0
  %2836 = vadd.xlane.f32.xlu0 %v2835
  %v2837 = vpop.xlane.xlu0 %2836
  %v2838 = vsel %vm36, %v2834, 0.0
  %2839 = vadd.xlane.f32.xlu0 %v2838
  %v2840 = vpop.xlane.xlu0 %2839
  %v2841 = vmul.f32 %v2837, %v43
  %v2842 = vmul.f32 %v2840, %v43
  %v2843 = vadd.f32 %v2841, 1e-05
  %v2844 = vadd.f32 %v2842, 1e-05
  %v2845 = vrsqrt.pop %v2843
  %v2846 = vrsqrt.pop %v2844
  %v2847 = vmul.f32 %v2831, %v2845
  %v2848 = vmul.f32 %v2832, %v2846
  %v2849 = vlaneseq
  %v2850 = vshrl.u32 %v2849, 7
  %v2851 = vsub.s32 5, %v2850
  %v2852 = vrot.slane %v1551, %v2851
  %v2853 = vmul.f32 %v2847, %v2852
  %v2854 = vmul.f32 %v2848, %v2852
  %v2855 = vlaneseq
  %v2856 = vshrl.u32 %v2855, 7
  %v2857 = vsub.s32 6, %v2856
  %v2858 = vrot.slane %v1551, %v2857
  %v2859 = vadd.f32 %v2853, %v2858
  %v2860 = vadd.f32 %v2854, %v2858
  %s2861 = scalar_lea.vmem %s4, 32
  %v2862 = vld [vmem:[%s2861] sm:$0xff]
  %v2863 = vld [vmem:[%s2861 + $0x8] sm:$0xff]
  %v2864 = vld [vmem:[%s2861 + $0x10] sm:$0xff]
  %v2865 = vld [vmem:[%s2861 + $0x18] sm:$0xff]
  %v2866 = vlaneseq
  %v2867 = vshrl.u32 %v2866, 7
  %v2868 = vsub.s32 1, %v2867
  %v2869 = vrot.slane %v1551, %v2868
  %v2871 = vsel %vm36, %v2859, 0
  %v2874 = vsel %vm36, %v2860, 0
  %2876 = vmatprep.subr.mxu0 0.0
  %2877 = vmatpush1.msra.mxu0 0.0
  %2878 = vmatprep.subr.mxu0 0.0
  %2879 = vmatpush1.msra.mxu0 0.0
  %2880 = vmatprep.subr.mxu0 0.0
  %2881 = vmatpush1.msra.mxu0 0.0
  %2882 = vmatprep.subr.mxu0 0.0
  %2883 = vmatpush1.msra.mxu0 0.0
  %2884 = vmatprep.subr.mxu0 0.0
  %2885 = vmatpush1.msra.mxu0 0.0
  %2886 = vmatprep.subr.mxu0 0.0
  %2887 = vmatpush1.msra.mxu0 0.0
  %2888 = vmatprep.subr.mxu0 0.0
  %2889 = vmatpush1.msra.mxu0 0.0
  %2890 = vmatprep.subr.mxu0 0.0
  %2891 = vmatpush1.msra.mxu0 0.0
  %2892 = vmatprep.subr.mxu0 0.0
  %2893 = vmatpush1.msra.mxu0 0.0
  %2894 = vmatprep.subr.mxu0 0.0
  %2895 = vmatpush1.msra.mxu0 0.0
  %2896 = vmatprep.subr.mxu0 0.0
  %2897 = vmatpush1.msra.mxu0 0.0
  %2898 = vmatprep.subr.mxu0 0.0
  %2899 = vmatpush1.msra.mxu0 0.0
  %2900 = vmatprep.subr.mxu0 0.0
  %2901 = vmatpush1.msra.mxu0 %v2865
  %2902 = vmatprep.subr.mxu0 0.0
  %2903 = vmatpush1.msra.mxu0 %v2864
  %2904 = vmatprep.subr.mxu0 0.0
  %2905 = vmatpush1.msra.mxu0 %v2863
  %2906 = vmatprep.subr.mxu0 0.0
  %2907 = vmatpush1.msra.mxu0 %v2862
  %2908 = vmatprep.subr.mxu0 0.0
  %2909 = vmatpush2.msra.mxu0 0.0
  %2910 = vmatprep.subr.mxu0 0.0
  %2911 = vmatpush2.msra.mxu0 0.0
  %2912 = vmatprep.subr.mxu0 0.0
  %2913 = vmatpush2.msra.mxu0 0.0
  %2914 = vmatprep.subr.mxu0 0.0
  %2915 = vmatpush2.msra.mxu0 0.0
  %2916 = vmatprep.subr.mxu0 0.0
  %2917 = vmatpush2.msra.mxu0 0.0
  %2918 = vmatprep.subr.mxu0 0.0
  %2919 = vmatpush2.msra.mxu0 0.0
  %2920 = vmatprep.subr.mxu0 0.0
  %2921 = vmatpush2.msra.mxu0 0.0
  %2922 = vmatprep.subr.mxu0 0.0
  %2923 = vmatpush2.msra.mxu0 0.0
  %2924 = vmatprep.subr.mxu0 0.0
  %2925 = vmatpush2.msra.mxu0 0.0
  %2926 = vmatprep.subr.mxu0 0.0
  %2927 = vmatpush2.msra.mxu0 0.0
  %2928 = vmatprep.subr.mxu0 0.0
  %2929 = vmatpush2.msra.mxu0 0.0
  %2930 = vmatprep.subr.mxu0 0.0
  %2931 = vmatpush2.msra.mxu0 0.0
  %2932 = vmatprep.subr.mxu0 0.0
  %2933 = vmatpush2.msra.mxu0 0.0
  %2934 = vmatprep.subr.mxu0 0.0
  %2935 = vmatpush2.msra.mxu0 0.0
  %2936 = vmatprep.subr.mxu0 0.0
  %2937 = vmatpush2.msra.mxu0 0.0
  %2938 = vmatprep.subr.mxu0 0.0
  %2939 = vmatpush2.msra.mxu0 0.0
  %2940 = vmatprep.mubr.f32.mxu0 0.0
  %2941 = vmatmul.mubr.f32.gmra.mxu0 %v2871
  %v2942 = vpop.f32.mrf.mxu0
  %v2943 = vadd.f32 %v2869, %v2942
  %v2944 = vpop.f32.mrf.mxu0
  %2945 = vmatprep.mubr.f32.mxu0 0.0
  %2946 = vmatmul.mubr.f32.gmra.mxu0 %v2874
  %v2947 = vpop.f32.mrf.mxu0
  %v2948 = vadd.f32 %v2869, %v2947
  %v2949 = vpop.f32.mrf.mxu0
  %2950 = vdwg.mxu0
  %v2951 = vmul.f32 %v2943, 1.702
  %v2952 = vmul.f32 %v2948, 1.702
  %v2953 = vxor.u32 %v2951, 2147483648
  %v2954 = vxor.u32 %v2952, 2147483648
  %v2955 = vmul.f32 %v2953, 1.442695
  %v2956 = vpow.pop %v2955
  %v2957 = vmul.f32 %v2954, 1.442695
  %v2958 = vpow.pop %v2957
  %v2959 = vadd.f32 %v2956, 1.0
  %v2960 = vadd.f32 %v2958, 1.0
  %v2961 = vrcp.pop %v2959
  %v2962 = vmul.f32 1.0, %v2961
  %v2963 = vrcp.pop %v2960
  %v2964 = vmul.f32 1.0, %v2963
  %v2965 = vmul.f32 %v2943, %v2962
  %v2966 = vmul.f32 %v2948, %v2964
  %s2967 = scalar_lea.vmem %s5, 64
  %v2968 = vld [vmem:[%s2967] sm:$0xff]
  %v2969 = vld [vmem:[%s2967 + $0x8] sm:$0xff]
  %v2970 = vld [vmem:[%s2967 + $0x10] sm:$0xff]
  %v2971 = vld [vmem:[%s2967 + $0x18] sm:$0xff]
  %v2972 = vld [vmem:[%s2967 + $0x20] sm:$0xff]
  %v2973 = vld [vmem:[%s2967 + $0x28] sm:$0xff]
  %v2974 = vld [vmem:[%s2967 + $0x30] sm:$0xff]
  %v2975 = vld [vmem:[%s2967 + $0x38] sm:$0xff]
  %v2977 = vsel %vm1460, %v2965, 0
  %v2980 = vsel %vm1460, %v2966, 0
  %2982 = vmatprep.subr.mxu0 0.0
  %2983 = vmatpush1.msra.mxu0 0.0
  %2984 = vmatprep.subr.mxu0 0.0
  %2985 = vmatpush1.msra.mxu0 0.0
  %2986 = vmatprep.subr.mxu0 0.0
  %2987 = vmatpush1.msra.mxu0 0.0
  %2988 = vmatprep.subr.mxu0 0.0
  %2989 = vmatpush1.msra.mxu0 0.0
  %2990 = vmatprep.subr.mxu0 0.0
  %2991 = vmatpush1.msra.mxu0 0.0
  %2992 = vmatprep.subr.mxu0 0.0
  %2993 = vmatpush1.msra.mxu0 0.0
  %2994 = vmatprep.subr.mxu0 0.0
  %2995 = vmatpush1.msra.mxu0 0.0
  %2996 = vmatprep.subr.mxu0 0.0
  %2997 = vmatpush1.msra.mxu0 0.0
  %2998 = vmatprep.subr.mxu0 0.0
  %2999 = vmatpush1.msra.mxu0 %v2975
  %3000 = vmatprep.subr.mxu0 0.0
  %3001 = vmatpush1.msra.mxu0 %v2974
  %3002 = vmatprep.subr.mxu0 0.0
  %3003 = vmatpush1.msra.mxu0 %v2973
  %3004 = vmatprep.subr.mxu0 0.0
  %3005 = vmatpush1.msra.mxu0 %v2972
  %3006 = vmatprep.subr.mxu0 0.0
  %3007 = vmatpush1.msra.mxu0 %v2971
  %3008 = vmatprep.subr.mxu0 0.0
  %3009 = vmatpush1.msra.mxu0 %v2970
  %3010 = vmatprep.subr.mxu0 0.0
  %3011 = vmatpush1.msra.mxu0 %v2969
  %3012 = vmatprep.subr.mxu0 0.0
  %3013 = vmatpush1.msra.mxu0 %v2968
  %3014 = vmatprep.subr.mxu0 0.0
  %3015 = vmatpush2.msra.mxu0 0.0
  %3016 = vmatprep.subr.mxu0 0.0
  %3017 = vmatpush2.msra.mxu0 0.0
  %3018 = vmatprep.subr.mxu0 0.0
  %3019 = vmatpush2.msra.mxu0 0.0
  %3020 = vmatprep.subr.mxu0 0.0
  %3021 = vmatpush2.msra.mxu0 0.0
  %3022 = vmatprep.subr.mxu0 0.0
  %3023 = vmatpush2.msra.mxu0 0.0
  %3024 = vmatprep.subr.mxu0 0.0
  %3025 = vmatpush2.msra.mxu0 0.0
  %3026 = vmatprep.subr.mxu0 0.0
  %3027 = vmatpush2.msra.mxu0 0.0
  %3028 = vmatprep.subr.mxu0 0.0
  %3029 = vmatpush2.msra.mxu0 0.0
  %3030 = vmatprep.subr.mxu0 0.0
  %3031 = vmatpush2.msra.mxu0 0.0
  %3032 = vmatprep.subr.mxu0 0.0
  %3033 = vmatpush2.msra.mxu0 0.0
  %3034 = vmatprep.subr.mxu0 0.0
  %3035 = vmatpush2.msra.mxu0 0.0
  %3036 = vmatprep.subr.mxu0 0.0
  %3037 = vmatpush2.msra.mxu0 0.0
  %3038 = vmatprep.subr.mxu0 0.0
  %3039 = vmatpush2.msra.mxu0 0.0
  %3040 = vmatprep.subr.mxu0 0.0
  %3041 = vmatpush2.msra.mxu0 0.0
  %3042 = vmatprep.subr.mxu0 0.0
  %3043 = vmatpush2.msra.mxu0 0.0
  %3044 = vmatprep.subr.mxu0 0.0
  %3045 = vmatpush2.msra.mxu0 0.0
  %3046 = vmatprep.mubr.f32.mxu0 0.0
  %3047 = vmatmul.mubr.f32.gmra.mxu0 %v2977
  %v3048 = vpop.f32.mrf.mxu0
  %v3049 = vadd.f32 0.0, %v3048
  %v3050 = vpop.f32.mrf.mxu0
  %3051 = vmatprep.mubr.f32.mxu0 0.0
  %3052 = vmatmul.mubr.f32.gmra.mxu0 %v2980
  %v3053 = vpop.f32.mrf.mxu0
  %v3054 = vadd.f32 0.0, %v3053
  %v3055 = vpop.f32.mrf.mxu0
  %3056 = vdwg.mxu0
  %v3057 = vadd.f32 %v2821, %v3049
  %v3058 = vadd.f32 %v2822, %v3054
  %v3059 = vlaneseq
  %v3060 = vshrl.u32 %v3059, 7
  %v3061 = vsub.s32 7, %v3060
  %v3062 = vrot.slane %v1551, %v3061
  %v3063 = vadd.f32 %v3057, %v3062
  %v3064 = vadd.f32 %v3058, %v3062
  %v3065 = vld [vmem:[%s7] sm:$0x1]
  %v3066 = vld [vmem:[%s7 + $0x1] sm:$0x1]
  %v3067 = vsel %vm36, %v3063, 0.0
  %3068 = vadd.xlane.f32.xlu0 %v3067
  %v3069 = vpop.xlane.xlu0 %3068
  %v3070 = vsel %vm36, %v3064, 0.0
  %3071 = vadd.xlane.f32.xlu0 %v3070
  %v3072 = vpop.xlane.xlu0 %3071
  %v3073 = vmul.f32 %v3069, %v43
  %v3074 = vmul.f32 %v3072, %v43
  %v3075 = vsub.f32 %v3063, %v3073
  %v3076 = vsub.f32 %v3064, %v3074
  %v3077 = vmul.f32 %v3075, %v3075
  %v3078 = vmul.f32 %v3076, %v3076
  %v3079 = vsel %vm36, %v3077, 0.0
  %3080 = vadd.xlane.f32.xlu0 %v3079
  %v3081 = vpop.xlane.xlu0 %3080
  %v3082 = vsel %vm36, %v3078, 0.0
  %3083 = vadd.xlane.f32.xlu0 %v3082
  %v3084 = vpop.xlane.xlu0 %3083
  %v3085 = vmul.f32 %v3081, %v43
  %v3086 = vmul.f32 %v3084, %v43
  %v3087 = vadd.f32 %v3085, 1e-05
  %v3088 = vadd.f32 %v3086, 1e-05
  %v3089 = vrsqrt.pop %v3087
  %v3090 = vrsqrt.pop %v3088
  %v3091 = vmul.f32 %v3075, %v3089
  %v3092 = vmul.f32 %v3076, %v3090
  %v3093 = vlaneseq
  %v3094 = vshrl.u32 %v3093, 7
  %v3095 = vsub.s32 0, %v3094
  %v3096 = vrot.slane %v3065, %v3095
  %v3097 = vmul.f32 %v3091, %v3096
  %v3098 = vmul.f32 %v3092, %v3096
  %v3099 = vlaneseq
  %v3100 = vshrl.u32 %v3099, 7
  %v3101 = vsub.s32 0, %v3100
  %v3102 = vrot.slane %v3066, %v3101
  %v3103 = vadd.f32 %v3097, %v3102
  %v3104 = vadd.f32 %v3098, %v3102
  %3105 = vst.msk [vmem:[%s8] sm:$0xff] %vm36, %v3103
  %3106 = vst.msk [vmem:[%s8 + $0x8] sm:$0xff] %vm36, %v3104
  %v3107 = vmul.f32 %v3103, %v3103
  %v3108 = vmul.f32 %v3104, %v3104
  %v3109 = vsel %vm36, %v3107, 0.0
  %3110 = vadd.xlane.f32.xlu0 %v3109
  %v3111 = vpop.xlane.xlu0 %3110
  %v3112 = vsel %vm36, %v3108, 0.0
  %3113 = vadd.xlane.f32.xlu0 %v3112
  %v3114 = vpop.xlane.xlu0 %3113
  %v3115 = vadd.f32 %v3111, 1.0
  %v3116 = vadd.f32 %v3114, 1.0
  %v3117 = vrsqrt.pop %v3115
  %v3118 = vmul.f32 %v3115, %v3117
  %vm3119 = vcmp.eq.f32.partialorder %v3115, inf
  %v3120 = vsel %vm3119, %v3115, %v3118
  %vm3121 = vcmp.eq.f32.partialorder %v3115, 0.0
  %v3122 = vand.u32 %v3115, 2147483648
  %v3123 = vsel %vm3121, %v3122, %v3120
  %v3124 = vrsqrt.pop %v3116
  %v3125 = vmul.f32 %v3116, %v3124
  %vm3126 = vcmp.eq.f32.partialorder %v3116, inf
  %v3127 = vsel %vm3126, %v3116, %v3125
  %vm3128 = vcmp.eq.f32.partialorder %v3116, 0.0
  %v3129 = vand.u32 %v3116, 2147483648
  %v3130 = vsel %vm3128, %v3129, %v3127
  %vm3131 = vcmask 7168
  %3132 = vst.msk [vmem:[%s9] sm:$0xff] %vm3131, %v3123
  %3133 = vst.msk [vmem:[%s9 + $0x8] sm:$0xff] %vm3131, %v3130
  // Predicated region
  $region34: #{hyp_clip_text_transformer.1} parent=0 // pred_check
    _
  $region35: #{hyp_clip_text_transformer.1} parent=0 // pred_check_branch
    %3135 = sbr.rel (0) target = $region37
  $region36: #{hyp_clip_text_transformer.1} parent=0 // pred_region
    _
  $region37: #{hyp_clip_text_transformer.1} parent=0 // pred_fallthru
    _
  // Predicated region
  $region38: #{hyp_clip_text_transformer.1} parent=0 // pred_check
    _
  $region39: #{hyp_clip_text_transformer.1} parent=0 // pred_check_branch
    %3137 = sbr.rel (0) target = $region41
  $region40: #{hyp_clip_text_transformer.1} parent=0 // pred_region
    _
  $region41: #{hyp_clip_text_transformer.1} parent=0 // pred_fallthru
    _
  // Predicated region
  $region42: #{hyp_clip_text_transformer.1} parent=0 // pred_check
    _
  $region43: #{hyp_clip_text_transformer.1} parent=0 // pred_check_branch
    %3139 = sbr.rel (0) target = $region45
  $region44: #{hyp_clip_text_transformer.1} parent=0 // pred_region
    _
  $region45: #{hyp_clip_text_transformer.1} parent=0 // pred_fallthru
    _
  // Predicated region
  $region46: #{hyp_clip_text_transformer.1} parent=0 // pred_check
    _
  $region47: #{hyp_clip_text_transformer.1} parent=0 // pred_check_branch
    %3141 = sbr.rel (0) target = $region49
  $region48: #{hyp_clip_text_transformer.1} parent=0 // pred_region
    _
  $region49: #{hyp_clip_text_transformer.1} parent=0 // pred_fallthru
    _

</llo_original>
